<compile_context>
chip_gen: v5e
topology: v5e:2x2
jax: 0.10.0
libtpu: 0.0.40
codegen_flags: <defaults>
</compile_context>

<pallas_src>
import jax
import jax.numpy as jnp
from jax.experimental import pallas as pl
from jax.experimental.pallas import tpu as pltpu


# ------------------------------ Pallas kernel ------------------------------ #

def _pool2x2(x_flat, h, w):
    """2x2 max-pool on a value: rows ordered (h, w), lanes = channels.

    x_flat: (h*w, 128) f32  ->  (h//2, w//2, 128) f32, all on values
    (no scratch, no masked column stores).
    """
    x = x_flat.reshape(h // 2, 2, w, 128)
    x = jnp.maximum(x[:, 0], x[:, 1])                 # pool H  -> (h//2, w, 128)
    x = x.reshape(h // 2, w // 2, 2, 128)
    return jnp.maximum(x[:, :, 0, :], x[:, :, 1, :])  # pool W  -> (h//2, w//2, 128)


def _mnist_kernel(x_ref, w1_ref, b1_ref, w2_ref, b2_ref,
                  wf1_ref, bf1_ref, wf2_ref, bf2_ref, wf3_ref, bf3_ref,
                  out_ref, p1_ref):
    f32, bf16 = jnp.float32, jnp.bfloat16

    # ---------------- conv1 (im2col matmul) + ReLU + pool1 -----------------
    # 3 chunks of 8 output rows (192 patch rows) keep the f32 accumulator and
    # the pooling working set in vregs; pool1 result is one dense store/chunk.
    for hb in range(3):
        rows = x_ref[0, 192 * hb:192 * (hb + 1), :]            # (192, 128) bf16
        a1 = jnp.dot(rows, w1_ref[...], preferred_element_type=f32)
        a1 = jnp.maximum(a1 + b1_ref[...], 0.0)                # (192, 128) f32
        p1_ref[4 * hb:4 * hb + 4, :, :] = _pool2x2(a1, 8, 24)  # (4, 12, 128)

    # ---------------- conv2 (kw packed into K lanes) + ReLU + pool2 --------
    # For each kh: rotate the five kw-shifted 16-channel slabs into disjoint
    # lane groups (kw*16 .. kw*16+15), sum them (exact: disjoint lanes), and
    # do ONE K=128 dot with the kw-packed weight.  5 dots instead of 25.
    acc2 = jnp.zeros((64, 128), f32)
    for kh in range(5):
        packed = p1_ref[kh:kh + 8, 0:8, :].reshape(64, 128)    # kw = 0
        for kw in range(1, 5):
            slab = p1_ref[kh:kh + 8, kw:kw + 8, :].reshape(64, 128)
            packed = packed + pltpu.roll(slab, 16 * kw, axis=1)
        acc2 = acc2 + jnp.dot(packed.astype(bf16), w2_ref[kh],
                              preferred_element_type=f32)
    a2 = jnp.maximum(acc2 + b2_ref[...], 0.0)                  # (64, 128) f32
    p2 = _pool2x2(a2, 8, 8)                                    # (4, 4, 128) value

    # ---------------- fc1 (1024 -> 120, padded 128) + ReLU ------------------
    # The NCHW flatten of PyTorch is absorbed into the fc1 weight permutation,
    # so the contraction runs as 16 per-position channel dots over p2.
    # TODO(synk): could be one K=2048 dot after a lanes-flatten reshape of p2;
    # kept as 16 accumulated dots for lowering robustness (negligible cost).
    accf = jnp.zeros((1, 128), f32)
    for h in range(4):
        for w in range(4):
            row = p2[h, w:w + 1, :].astype(bf16)               # (1, 128)
            accf = accf + jnp.dot(row, wf1_ref[h * 4 + w],
                                  preferred_element_type=f32)
    f1 = jnp.maximum(accf + bf1_ref[...], 0.0)

    # ---------------- fc2 (120 -> 84) + ReLU, fc3 (84 -> 10) ----------------
    f2 = jnp.dot(f1.astype(bf16), wf2_ref[...],
                 preferred_element_type=f32) + bf2_ref[...]
    f2 = jnp.maximum(f2, 0.0)
    f3 = jnp.dot(f2.astype(bf16), wf3_ref[...],
                 preferred_element_type=f32) + bf3_ref[...]
    out_ref[...] = f3.reshape(1, 1, 128)                       # lane-dense store


# --------------------------- wrapper / weight prep -------------------------- #

def _prepare_inputs(params, x_nchw):
    """Build the wrapper-side im2col patches and lane-dense, packed weights."""
    n = x_nchw.shape[0]
    f32, bf16 = jnp.float32, jnp.bfloat16

    # conv1 im2col in the wrapper (single input channel -> tiny): row = ho*24+wo,
    # K lane = kh*5 + kw, padded 25 -> 128, shipped to the kernel as bf16.
    x = x_nchw[:, 0, :, :].astype(f32)                                  # (n,28,28)
    patches = jnp.stack(
        [x[:, kh:kh + 24, kw:kw + 24] for kh in range(5) for kw in range(5)],
        axis=-1)                                                        # (n,24,24,25)
    patches = patches.reshape(n, 576, 25)
    patches = jnp.pad(patches, ((0, 0), (0, 0), (0, 103))).astype(bf16)  # (n,576,128)

    # conv1 weight: [kh*5+kw, co], padded to (128, 128).
    w1 = params["conv1_w"].reshape(16, 25).T                            # (25, 16)
    w1p = jnp.zeros((128, 128), f32).at[:25, :16].set(w1).astype(bf16)
    b1p = jnp.zeros((1, 128), f32).at[0, :16].set(params["conv1_b"])

    # conv2 weight with kw packed into the contraction lanes: for each kh the
    # K lane kw*16+ci holds conv2_w[co, ci, kh, kw] (80/128 real lanes).  The
    # same values are mirrored at lanes (128-16*kw)+ci so the dot is correct
    # for either rotation-direction convention of pltpu.roll (the unused
    # mirror lanes only ever multiply zeros in the packed activation).
    w2 = jnp.transpose(params["conv2_w"], (2, 3, 1, 0))                 # (kh,kw,ci,co)
    w2p = jnp.zeros((5, 128, 128), f32)
    for kw in range(5):
        w2p = w2p.at[:, 16 * kw:16 * kw + 16, :64].set(w2[:, kw])
        alt = (128 - 16 * kw) % 128
        w2p = w2p.at[:, alt:alt + 16, :64].set(w2[:, kw])
    w2p = w2p.astype(bf16)
    b2p = jnp.zeros((1, 128), f32).at[0, :64].set(params["conv2_b"])

    # fc1: PyTorch flattens NCHW (idx = c*16 + h*4 + w); permute the weight so
    # the kernel can contract the NHWC-lane activation position by position:
    # wf1p[h*4+w, c, o] = fc1_w[o, c*16 + h*4 + w].
    wf1 = params["fc1_w"].reshape(120, 64, 16).transpose(2, 1, 0)       # [hw, c, o]
    wf1p = jnp.zeros((16, 128, 128), f32).at[:, :64, :120].set(wf1).astype(bf16)
    bf1p = jnp.zeros((1, 128), f32).at[0, :120].set(params["fc1_b"])

    wf2p = jnp.zeros((128, 128), f32).at[:120, :84].set(params["fc2_w"].T).astype(bf16)
    bf2p = jnp.zeros((1, 128), f32).at[0, :84].set(params["fc2_b"])
    wf3p = jnp.zeros((128, 128), f32).at[:84, :10].set(params["fc3_w"].T).astype(bf16)
    bf3p = jnp.zeros((1, 128), f32).at[0, :10].set(params["fc3_b"])

    return (patches, w1p, b1p, w2p, b2p, wf1p, bf1p, wf2p, bf2p, wf3p, bf3p)


@jax.jit
def mnist_net_forward(params, x_nchw):
    """Forward pass matching MnistNet.forward. x_nchw: (N, 1, 28, 28) f32."""
    n = x_nchw.shape[0]
    args = _prepare_inputs(params, x_nchw)

    const2 = lambda i: (0, 0)        # weights / biases: VMEM-resident across grid
    const3 = lambda i: (0, 0, 0)

    grid_spec = pltpu.PrefetchScalarGridSpec(
        num_scalar_prefetch=0,
        grid=(n,),                                              # one sample / step
        in_specs=[
            pl.BlockSpec((1, 576, 128), lambda i: (i, 0, 0)),   # im2col patches
            pl.BlockSpec((128, 128), const2),                   # conv1 w
            pl.BlockSpec((1, 128), const2),                     # conv1 b
            pl.BlockSpec((5, 128, 128), const3),                # conv2 w (kw-packed)
            pl.BlockSpec((1, 128), const2),                     # conv2 b
            pl.BlockSpec((16, 128, 128), const3),               # fc1 w
            pl.BlockSpec((1, 128), const2),                     # fc1 b
            pl.BlockSpec((128, 128), const2),                   # fc2 w
            pl.BlockSpec((1, 128), const2),                     # fc2 b
            pl.BlockSpec((128, 128), const2),                   # fc3 w
            pl.BlockSpec((1, 128), const2),                     # fc3 b
        ],
        out_specs=pl.BlockSpec((1, 1, 128), lambda i: (i, 0, 0)),
        scratch_shapes=[pltpu.VMEM((12, 12, 128), jnp.float32)],  # pool1 output
    )

    out_padded = pl.pallas_call(
        _mnist_kernel,
        out_shape=jax.ShapeDtypeStruct((n, 1, 128), jnp.float32),
        grid_spec=grid_spec,
        compiler_params=pltpu.CompilerParams(
            dimension_semantics=("parallel",),                  # megacore batch split
            vmem_limit_bytes=32 * 1024 * 1024),
    )(*args)
    return out_padded[:, 0, :10]


# ------------------------ pure-JAX reference (f32) -------------------------- #

def _reference_forward(params, x):
    dn = ("NCHW", "OIHW", "NCHW")
    y = jax.lax.conv_general_dilated(x, params["conv1_w"], (1, 1), "VALID",
                                     dimension_numbers=dn)
    y = jax.nn.relu(y + params["conv1_b"][None, :, None, None])
    y = jax.lax.reduce_window(y, -jnp.inf, jax.lax.max,
                              (1, 1, 2, 2), (1, 1, 2, 2), "VALID")
    y = jax.lax.conv_general_dilated(y, params["conv2_w"], (1, 1), "VALID",
                                     dimension_numbers=dn)
    y = jax.nn.relu(y + params["conv2_b"][None, :, None, None])
    y = jax.lax.reduce_window(y, -jnp.inf, jax.lax.max,
                              (1, 1, 2, 2), (1, 1, 2, 2), "VALID")
    y = y.reshape(y.shape[0], -1)                  # NCHW flatten, as in PyTorch
    y = jax.nn.relu(y @ params["fc1_w"].T + params["fc1_b"])
    y = jax.nn.relu(y @ params["fc2_w"].T + params["fc2_b"])
    return y @ params["fc3_w"].T + params["fc3_b"]


def init_params(key):
    """Deterministic PyTorch-style uniform(-1/sqrt(fan_in), 1/sqrt(fan_in)) init."""
    def uniform(k, shape, fan_in):
        bound = 1.0 / float(fan_in) ** 0.5
        return jax.random.uniform(k, shape, jnp.float32, -bound, bound)

    ks = jax.random.split(key, 10)
    return {
        "conv1_w": uniform(ks[0], (16, 1, 5, 5), 1 * 5 * 5),
        "conv1_b": uniform(ks[1], (16,), 1 * 5 * 5),
        "conv2_w": uniform(ks[2], (64, 16, 5, 5), 16 * 5 * 5),
        "conv2_b": uniform(ks[3], (64,), 16 * 5 * 5),
        "fc1_w": uniform(ks[4], (120, 64 * 4 * 4), 64 * 4 * 4),
        "fc1_b": uniform(ks[5], (120,), 64 * 4 * 4),
        "fc2_w": uniform(ks[6], (84, 120), 120),
        "fc2_b": uniform(ks[7], (84,), 120),
        "fc3_w": uniform(ks[8], (10, 84), 84),
        "fc3_b": uniform(ks[9], (10,), 84),
    }


if __name__ == "__main__":
    key = jax.random.PRNGKey(0)
    pkey, xkey = jax.random.split(key)
    params = init_params(pkey)
    # MNIST-shaped input (28x28 required by the fc1 dimensions), small batch.
    x = jax.random.normal(xkey, (2, 1, 28, 28), jnp.float32)

    out = jax.block_until_ready(mnist_net_forward(params, x))
    assert out.shape == (2, 10), out.shape
    assert out.dtype == jnp.float32

    ref = jax.block_until_ready(_reference_forward(params, x))
    max_err = float(jnp.max(jnp.abs(out - ref)))
    assert max_err < 5e-2, f"max abs error vs reference: {max_err}"

    print("KERNEL_OK")
</pallas_src>

<mosaic_0001>
module attributes {stable_mosaic.version = 11 : i64} {
  func.func @_mnist_kernel(%arg0: i32, %arg1: memref<1x576x128xbf16, #tpu.memory_space<vmem>>, %arg2: memref<128x128xbf16, #tpu.memory_space<vmem>>, %arg3: memref<1x128xf32, #tpu.memory_space<vmem>>, %arg4: memref<5x128x128xbf16, #tpu.memory_space<vmem>>, %arg5: memref<1x128xf32, #tpu.memory_space<vmem>>, %arg6: memref<16x128x128xbf16, #tpu.memory_space<vmem>>, %arg7: memref<1x128xf32, #tpu.memory_space<vmem>>, %arg8: memref<128x128xbf16, #tpu.memory_space<vmem>>, %arg9: memref<1x128xf32, #tpu.memory_space<vmem>>, %arg10: memref<128x128xbf16, #tpu.memory_space<vmem>>, %arg11: memref<1x128xf32, #tpu.memory_space<vmem>>, %arg12: memref<1x1x128xf32, #tpu.memory_space<vmem>>, %arg13: memref<12x12x128xf32, #tpu.memory_space<vmem>>) attributes {dimension_semantics = [#tpu.dimension_semantics<parallel>], iteration_bounds = array<i64: 2>, scalar_prefetch = 0 : i64, scratch_operands = 1 : i64, tpu.core_type = #tpu.core_type<tc>, window_params = [{transform_indices = @transform_0, window_bounds = array<i64: 1, 576, 128>}, {pipeline_mode = #tpu.pipeline_mode<synchronous>, transform_indices = @transform_1, window_bounds = array<i64: 128, 128>}, {pipeline_mode = #tpu.pipeline_mode<synchronous>, transform_indices = @transform_2, window_bounds = array<i64: 1, 128>}, {pipeline_mode = #tpu.pipeline_mode<synchronous>, transform_indices = @transform_3, window_bounds = array<i64: 5, 128, 128>}, {pipeline_mode = #tpu.pipeline_mode<synchronous>, transform_indices = @transform_4, window_bounds = array<i64: 1, 128>}, {pipeline_mode = #tpu.pipeline_mode<synchronous>, transform_indices = @transform_5, window_bounds = array<i64: 16, 128, 128>}, {pipeline_mode = #tpu.pipeline_mode<synchronous>, transform_indices = @transform_6, window_bounds = array<i64: 1, 128>}, {pipeline_mode = #tpu.pipeline_mode<synchronous>, transform_indices = @transform_7, window_bounds = array<i64: 128, 128>}, {pipeline_mode = #tpu.pipeline_mode<synchronous>, transform_indices = @transform_8, window_bounds = array<i64: 1, 128>}, {pipeline_mode = #tpu.pipeline_mode<synchronous>, transform_indices = @transform_9, window_bounds = array<i64: 128, 128>}, {pipeline_mode = #tpu.pipeline_mode<synchronous>, transform_indices = @transform_10, window_bounds = array<i64: 1, 128>}, {transform_indices = @transform_11, window_bounds = array<i64: 1, 1, 128>}]} {
    %c0 = arith.constant 0 : index
    %c0_0 = arith.constant 0 : index
    %c0_1 = arith.constant 0 : index
    %0 = vector.load %arg1[%c0, %c0_0, %c0_1] : memref<1x576x128xbf16, #tpu.memory_space<vmem>>, vector<1x192x128xbf16>
    %1 = vector.shape_cast %0 : vector<1x192x128xbf16> to vector<192x128xbf16>
    %c0_2 = arith.constant 0 : index
    %c0_3 = arith.constant 0 : index
    %2 = vector.load %arg2[%c0_2, %c0_3] : memref<128x128xbf16, #tpu.memory_space<vmem>>, vector<128x128xbf16>
    %cst = arith.constant dense<0.000000e+00> : vector<192x128xf32>
    %3 = tpu.matmul %1, %2, %cst {dimension_numbers = #tpu.dot_dimension_numbers<[1], [0], [0], [1], [0, 0, 1, 1], [], []>} : vector<192x128xbf16>, vector<128x128xbf16>, vector<192x128xf32> -> vector<192x128xf32>
    %c0_4 = arith.constant 0 : index
    %c0_5 = arith.constant 0 : index
    %4 = vector.load %arg3[%c0_4, %c0_5] : memref<1x128xf32, #tpu.memory_space<vmem>>, vector<1x128xf32>
    %5 = vector.broadcast %4 : vector<1x128xf32> to vector<192x128xf32>
    %6 = arith.addf %3, %5 : vector<192x128xf32>
    %cst_6 = arith.constant 0.000000e+00 : f32
    %7 = vector.broadcast %cst_6 : f32 to vector<192x128xf32>
    %8 = arith.maximumf %6, %7 : vector<192x128xf32>
    %9 = vector.shape_cast %8 : vector<192x128xf32> to vector<4x2x24x128xf32>
    %10 = vector.extract_strided_slice %9 {offsets = [0, 0, 0, 0], sizes = [4, 1, 24, 128], strides = [1, 1, 1, 1]} : vector<4x2x24x128xf32> to vector<4x1x24x128xf32>
    %11 = vector.shape_cast %10 : vector<4x1x24x128xf32> to vector<4x24x128xf32>
    %12 = vector.extract_strided_slice %9 {offsets = [0, 1, 0, 0], sizes = [4, 1, 24, 128], strides = [1, 1, 1, 1]} : vector<4x2x24x128xf32> to vector<4x1x24x128xf32>
    %13 = vector.shape_cast %12 : vector<4x1x24x128xf32> to vector<4x24x128xf32>
    %14 = arith.maximumf %11, %13 : vector<4x24x128xf32>
    %15 = vector.shape_cast %14 : vector<4x24x128xf32> to vector<4x12x2x128xf32>
    %16 = vector.extract_strided_slice %15 {offsets = [0, 0, 0, 0], sizes = [4, 12, 1, 128], strides = [1, 1, 1, 1]} : vector<4x12x2x128xf32> to vector<4x12x1x128xf32>
    %17 = vector.shape_cast %16 : vector<4x12x1x128xf32> to vector<4x12x128xf32>
    %18 = vector.extract_strided_slice %15 {offsets = [0, 0, 1, 0], sizes = [4, 12, 1, 128], strides = [1, 1, 1, 1]} : vector<4x12x2x128xf32> to vector<4x12x1x128xf32>
    %19 = vector.shape_cast %18 : vector<4x12x1x128xf32> to vector<4x12x128xf32>
    %20 = arith.maximumf %17, %19 : vector<4x12x128xf32>
    %c0_7 = arith.constant 0 : index
    %c0_8 = arith.constant 0 : index
    %c0_9 = arith.constant 0 : index
    %21 = vector.load %arg13[%c0_7, %c0_8, %c0_9] : memref<12x12x128xf32, #tpu.memory_space<vmem>>, vector<4x12x128xf32>
    tpu.vector_store %arg13[%c0_7, %c0_8, %c0_9], %20 {strides = array<i32>} : memref<12x12x128xf32, #tpu.memory_space<vmem>>, vector<4x12x128xf32>,
    %c0_10 = arith.constant 0 : index
    %c192 = arith.constant 192 : index
    %c0_11 = arith.constant 0 : index
    %22 = vector.load %arg1[%c0_10, %c192, %c0_11] : memref<1x576x128xbf16, #tpu.memory_space<vmem>>, vector<1x192x128xbf16>
    %23 = vector.shape_cast %22 : vector<1x192x128xbf16> to vector<192x128xbf16>
    %c0_12 = arith.constant 0 : index
    %c0_13 = arith.constant 0 : index
    %24 = vector.load %arg2[%c0_12, %c0_13] : memref<128x128xbf16, #tpu.memory_space<vmem>>, vector<128x128xbf16>
    %cst_14 = arith.constant dense<0.000000e+00> : vector<192x128xf32>
    %25 = tpu.matmul %23, %24, %cst_14 {dimension_numbers = #tpu.dot_dimension_numbers<[1], [0], [0], [1], [0, 0, 1, 1], [], []>} : vector<192x128xbf16>, vector<128x128xbf16>, vector<192x128xf32> -> vector<192x128xf32>
    %c0_15 = arith.constant 0 : index
    %c0_16 = arith.constant 0 : index
    %26 = vector.load %arg3[%c0_15, %c0_16] : memref<1x128xf32, #tpu.memory_space<vmem>>, vector<1x128xf32>
    %27 = vector.broadcast %26 : vector<1x128xf32> to vector<192x128xf32>
    %28 = arith.addf %25, %27 : vector<192x128xf32>
    %cst_17 = arith.constant 0.000000e+00 : f32
    %29 = vector.broadcast %cst_17 : f32 to vector<192x128xf32>
    %30 = arith.maximumf %28, %29 : vector<192x128xf32>
    %31 = vector.shape_cast %30 : vector<192x128xf32> to vector<4x2x24x128xf32>
    %32 = vector.extract_strided_slice %31 {offsets = [0, 0, 0, 0], sizes = [4, 1, 24, 128], strides = [1, 1, 1, 1]} : vector<4x2x24x128xf32> to vector<4x1x24x128xf32>
    %33 = vector.shape_cast %32 : vector<4x1x24x128xf32> to vector<4x24x128xf32>
    %34 = vector.extract_strided_slice %31 {offsets = [0, 1, 0, 0], sizes = [4, 1, 24, 128], strides = [1, 1, 1, 1]} : vector<4x2x24x128xf32> to vector<4x1x24x128xf32>
    %35 = vector.shape_cast %34 : vector<4x1x24x128xf32> to vector<4x24x128xf32>
    %36 = arith.maximumf %33, %35 : vector<4x24x128xf32>
    %37 = vector.shape_cast %36 : vector<4x24x128xf32> to vector<4x12x2x128xf32>
    %38 = vector.extract_strided_slice %37 {offsets = [0, 0, 0, 0], sizes = [4, 12, 1, 128], strides = [1, 1, 1, 1]} : vector<4x12x2x128xf32> to vector<4x12x1x128xf32>
    %39 = vector.shape_cast %38 : vector<4x12x1x128xf32> to vector<4x12x128xf32>
    %40 = vector.extract_strided_slice %37 {offsets = [0, 0, 1, 0], sizes = [4, 12, 1, 128], strides = [1, 1, 1, 1]} : vector<4x12x2x128xf32> to vector<4x12x1x128xf32>
    %41 = vector.shape_cast %40 : vector<4x12x1x128xf32> to vector<4x12x128xf32>
    %42 = arith.maximumf %39, %41 : vector<4x12x128xf32>
    %c4 = arith.constant 4 : index
    %c0_18 = arith.constant 0 : index
    %c0_19 = arith.constant 0 : index
    %43 = vector.load %arg13[%c4, %c0_18, %c0_19] : memref<12x12x128xf32, #tpu.memory_space<vmem>>, vector<4x12x128xf32>
    tpu.vector_store %arg13[%c4, %c0_18, %c0_19], %42 {strides = array<i32>} : memref<12x12x128xf32, #tpu.memory_space<vmem>>, vector<4x12x128xf32>,
    %c0_20 = arith.constant 0 : index
    %c384 = arith.constant 384 : index
    %c0_21 = arith.constant 0 : index
    %44 = vector.load %arg1[%c0_20, %c384, %c0_21] : memref<1x576x128xbf16, #tpu.memory_space<vmem>>, vector<1x192x128xbf16>
    %45 = vector.shape_cast %44 : vector<1x192x128xbf16> to vector<192x128xbf16>
    %c0_22 = arith.constant 0 : index
    %c0_23 = arith.constant 0 : index
    %46 = vector.load %arg2[%c0_22, %c0_23] : memref<128x128xbf16, #tpu.memory_space<vmem>>, vector<128x128xbf16>
    %cst_24 = arith.constant dense<0.000000e+00> : vector<192x128xf32>
    %47 = tpu.matmul %45, %46, %cst_24 {dimension_numbers = #tpu.dot_dimension_numbers<[1], [0], [0], [1], [0, 0, 1, 1], [], []>} : vector<192x128xbf16>, vector<128x128xbf16>, vector<192x128xf32> -> vector<192x128xf32>
    %c0_25 = arith.constant 0 : index
    %c0_26 = arith.constant 0 : index
    %48 = vector.load %arg3[%c0_25, %c0_26] : memref<1x128xf32, #tpu.memory_space<vmem>>, vector<1x128xf32>
    %49 = vector.broadcast %48 : vector<1x128xf32> to vector<192x128xf32>
    %50 = arith.addf %47, %49 : vector<192x128xf32>
    %cst_27 = arith.constant 0.000000e+00 : f32
    %51 = vector.broadcast %cst_27 : f32 to vector<192x128xf32>
    %52 = arith.maximumf %50, %51 : vector<192x128xf32>
    %53 = vector.shape_cast %52 : vector<192x128xf32> to vector<4x2x24x128xf32>
    %54 = vector.extract_strided_slice %53 {offsets = [0, 0, 0, 0], sizes = [4, 1, 24, 128], strides = [1, 1, 1, 1]} : vector<4x2x24x128xf32> to vector<4x1x24x128xf32>
    %55 = vector.shape_cast %54 : vector<4x1x24x128xf32> to vector<4x24x128xf32>
    %56 = vector.extract_strided_slice %53 {offsets = [0, 1, 0, 0], sizes = [4, 1, 24, 128], strides = [1, 1, 1, 1]} : vector<4x2x24x128xf32> to vector<4x1x24x128xf32>
    %57 = vector.shape_cast %56 : vector<4x1x24x128xf32> to vector<4x24x128xf32>
    %58 = arith.maximumf %55, %57 : vector<4x24x128xf32>
    %59 = vector.shape_cast %58 : vector<4x24x128xf32> to vector<4x12x2x128xf32>
    %60 = vector.extract_strided_slice %59 {offsets = [0, 0, 0, 0], sizes = [4, 12, 1, 128], strides = [1, 1, 1, 1]} : vector<4x12x2x128xf32> to vector<4x12x1x128xf32>
    %61 = vector.shape_cast %60 : vector<4x12x1x128xf32> to vector<4x12x128xf32>
    %62 = vector.extract_strided_slice %59 {offsets = [0, 0, 1, 0], sizes = [4, 12, 1, 128], strides = [1, 1, 1, 1]} : vector<4x12x2x128xf32> to vector<4x12x1x128xf32>
    %63 = vector.shape_cast %62 : vector<4x12x1x128xf32> to vector<4x12x128xf32>
    %64 = arith.maximumf %61, %63 : vector<4x12x128xf32>
    %c8 = arith.constant 8 : index
    %c0_28 = arith.constant 0 : index
    %c0_29 = arith.constant 0 : index
    %65 = vector.load %arg13[%c8, %c0_28, %c0_29] : memref<12x12x128xf32, #tpu.memory_space<vmem>>, vector<4x12x128xf32>
    tpu.vector_store %arg13[%c8, %c0_28, %c0_29], %64 {strides = array<i32>} : memref<12x12x128xf32, #tpu.memory_space<vmem>>, vector<4x12x128xf32>,
    %cst_30 = arith.constant 0.000000e+00 : f32
    %66 = vector.broadcast %cst_30 : f32 to vector<64x128xf32>
    %c0_31 = arith.constant 0 : index
    %c0_32 = arith.constant 0 : index
    %c0_33 = arith.constant 0 : index
    %67 = vector.load %arg13[%c0_31, %c0_32, %c0_33] : memref<12x12x128xf32, #tpu.memory_space<vmem>>, vector<8x8x128xf32>
    %68 = vector.shape_cast %67 : vector<8x8x128xf32> to vector<64x128xf32>
    %c0_34 = arith.constant 0 : index
    %c1 = arith.constant 1 : index
    %c0_35 = arith.constant 0 : index
    %69 = vector.load %arg13[%c0_34, %c1, %c0_35] : memref<12x12x128xf32, #tpu.memory_space<vmem>>, vector<8x8x128xf32>
    %70 = vector.shape_cast %69 : vector<8x8x128xf32> to vector<64x128xf32>
    %c16_i32 = arith.constant 16 : i32
    %71 = tpu.dynamic_rotate %70 by %c16_i32 dim 1 : vector<64x128xf32>, i32 -> vector<64x128xf32>
    %72 = arith.addf %68, %71 : vector<64x128xf32>
    %c0_36 = arith.constant 0 : index
    %c2 = arith.constant 2 : index
    %c0_37 = arith.constant 0 : index
    %73 = vector.load %arg13[%c0_36, %c2, %c0_37] : memref<12x12x128xf32, #tpu.memory_space<vmem>>, vector<8x8x128xf32>
    %74 = vector.shape_cast %73 : vector<8x8x128xf32> to vector<64x128xf32>
    %c32_i32 = arith.constant 32 : i32
    %75 = tpu.dynamic_rotate %74 by %c32_i32 dim 1 : vector<64x128xf32>, i32 -> vector<64x128xf32>
    %76 = arith.addf %72, %75 : vector<64x128xf32>
    %c0_38 = arith.constant 0 : index
    %c3 = arith.constant 3 : index
    %c0_39 = arith.constant 0 : index
    %77 = vector.load %arg13[%c0_38, %c3, %c0_39] : memref<12x12x128xf32, #tpu.memory_space<vmem>>, vector<8x8x128xf32>
    %78 = vector.shape_cast %77 : vector<8x8x128xf32> to vector<64x128xf32>
    %c48_i32 = arith.constant 48 : i32
    %79 = tpu.dynamic_rotate %78 by %c48_i32 dim 1 : vector<64x128xf32>, i32 -> vector<64x128xf32>
    %80 = arith.addf %76, %79 : vector<64x128xf32>
    %c0_40 = arith.constant 0 : index
    %c4_41 = arith.constant 4 : index
    %c0_42 = arith.constant 0 : index
    %81 = vector.load %arg13[%c0_40, %c4_41, %c0_42] : memref<12x12x128xf32, #tpu.memory_space<vmem>>, vector<8x8x128xf32>
    %82 = vector.shape_cast %81 : vector<8x8x128xf32> to vector<64x128xf32>
    %c64_i32 = arith.constant 64 : i32
    %83 = tpu.dynamic_rotate %82 by %c64_i32 dim 1 : vector<64x128xf32>, i32 -> vector<64x128xf32>
    %84 = arith.addf %80, %83 : vector<64x128xf32>
    %85 = arith.truncf %84 : vector<64x128xf32> to vector<64x128xbf16>
    %c0_43 = arith.constant 0 : index
    %c0_44 = arith.constant 0 : index
    %c0_45 = arith.constant 0 : index
    %86 = vector.load %arg4[%c0_43, %c0_44, %c0_45] : memref<5x128x128xbf16, #tpu.memory_space<vmem>>, vector<1x128x128xbf16>
    %87 = vector.shape_cast %86 : vector<1x128x128xbf16> to vector<128x128xbf16>
    %cst_46 = arith.constant dense<0.000000e+00> : vector<64x128xf32>
    %88 = tpu.matmul %85, %87, %cst_46 {dimension_numbers = #tpu.dot_dimension_numbers<[1], [0], [0], [1], [0, 0, 1, 1], [], []>} : vector<64x128xbf16>, vector<128x128xbf16>, vector<64x128xf32> -> vector<64x128xf32>
    %89 = arith.addf %66, %88 : vector<64x128xf32>
    %c1_47 = arith.constant 1 : index
    %c0_48 = arith.constant 0 : index
    %c0_49 = arith.constant 0 : index
    %90 = vector.load %arg13[%c1_47, %c0_48, %c0_49] : memref<12x12x128xf32, #tpu.memory_space<vmem>>, vector<8x8x128xf32>
    %91 = vector.shape_cast %90 : vector<8x8x128xf32> to vector<64x128xf32>
    %c1_50 = arith.constant 1 : index
    %c1_51 = arith.constant 1 : index
    %c0_52 = arith.constant 0 : index
    %92 = vector.load %arg13[%c1_50, %c1_51, %c0_52] : memref<12x12x128xf32, #tpu.memory_space<vmem>>, vector<8x8x128xf32>
    %93 = vector.shape_cast %92 : vector<8x8x128xf32> to vector<64x128xf32>
    %c16_i32_53 = arith.constant 16 : i32
    %94 = tpu.dynamic_rotate %93 by %c16_i32_53 dim 1 : vector<64x128xf32>, i32 -> vector<64x128xf32>
    %95 = arith.addf %91, %94 : vector<64x128xf32>
    %c1_54 = arith.constant 1 : index
    %c2_55 = arith.constant 2 : index
    %c0_56 = arith.constant 0 : index
    %96 = vector.load %arg13[%c1_54, %c2_55, %c0_56] : memref<12x12x128xf32, #tpu.memory_space<vmem>>, vector<8x8x128xf32>
    %97 = vector.shape_cast %96 : vector<8x8x128xf32> to vector<64x128xf32>
    %c32_i32_57 = arith.constant 32 : i32
    %98 = tpu.dynamic_rotate %97 by %c32_i32_57 dim 1 : vector<64x128xf32>, i32 -> vector<64x128xf32>
    %99 = arith.addf %95, %98 : vector<64x128xf32>
    %c1_58 = arith.constant 1 : index
    %c3_59 = arith.constant 3 : index
    %c0_60 = arith.constant 0 : index
    %100 = vector.load %arg13[%c1_58, %c3_59, %c0_60] : memref<12x12x128xf32, #tpu.memory_space<vmem>>, vector<8x8x128xf32>
    %101 = vector.shape_cast %100 : vector<8x8x128xf32> to vector<64x128xf32>
    %c48_i32_61 = arith.constant 48 : i32
    %102 = tpu.dynamic_rotate %101 by %c48_i32_61 dim 1 : vector<64x128xf32>, i32 -> vector<64x128xf32>
    %103 = arith.addf %99, %102 : vector<64x128xf32>
    %c1_62 = arith.constant 1 : index
    %c4_63 = arith.constant 4 : index
    %c0_64 = arith.constant 0 : index
    %104 = vector.load %arg13[%c1_62, %c4_63, %c0_64] : memref<12x12x128xf32, #tpu.memory_space<vmem>>, vector<8x8x128xf32>
    %105 = vector.shape_cast %104 : vector<8x8x128xf32> to vector<64x128xf32>
    %c64_i32_65 = arith.constant 64 : i32
    %106 = tpu.dynamic_rotate %105 by %c64_i32_65 dim 1 : vector<64x128xf32>, i32 -> vector<64x128xf32>
    %107 = arith.addf %103, %106 : vector<64x128xf32>
    %108 = arith.truncf %107 : vector<64x128xf32> to vector<64x128xbf16>
    %c1_66 = arith.constant 1 : index
    %c0_67 = arith.constant 0 : index
    %c0_68 = arith.constant 0 : index
    %109 = vector.load %arg4[%c1_66, %c0_67, %c0_68] : memref<5x128x128xbf16, #tpu.memory_space<vmem>>, vector<1x128x128xbf16>
    %110 = vector.shape_cast %109 : vector<1x128x128xbf16> to vector<128x128xbf16>
    %cst_69 = arith.constant dense<0.000000e+00> : vector<64x128xf32>
    %111 = tpu.matmul %108, %110, %cst_69 {dimension_numbers = #tpu.dot_dimension_numbers<[1], [0], [0], [1], [0, 0, 1, 1], [], []>} : vector<64x128xbf16>, vector<128x128xbf16>, vector<64x128xf32> -> vector<64x128xf32>
    %112 = arith.addf %89, %111 : vector<64x128xf32>
    %c2_70 = arith.constant 2 : index
    %c0_71 = arith.constant 0 : index
    %c0_72 = arith.constant 0 : index
    %113 = vector.load %arg13[%c2_70, %c0_71, %c0_72] : memref<12x12x128xf32, #tpu.memory_space<vmem>>, vector<8x8x128xf32>
    %114 = vector.shape_cast %113 : vector<8x8x128xf32> to vector<64x128xf32>
    %c2_73 = arith.constant 2 : index
    %c1_74 = arith.constant 1 : index
    %c0_75 = arith.constant 0 : index
    %115 = vector.load %arg13[%c2_73, %c1_74, %c0_75] : memref<12x12x128xf32, #tpu.memory_space<vmem>>, vector<8x8x128xf32>
    %116 = vector.shape_cast %115 : vector<8x8x128xf32> to vector<64x128xf32>
    %c16_i32_76 = arith.constant 16 : i32
    %117 = tpu.dynamic_rotate %116 by %c16_i32_76 dim 1 : vector<64x128xf32>, i32 -> vector<64x128xf32>
    %118 = arith.addf %114, %117 : vector<64x128xf32>
    %c2_77 = arith.constant 2 : index
    %c2_78 = arith.constant 2 : index
    %c0_79 = arith.constant 0 : index
    %119 = vector.load %arg13[%c2_77, %c2_78, %c0_79] : memref<12x12x128xf32, #tpu.memory_space<vmem>>, vector<8x8x128xf32>
    %120 = vector.shape_cast %119 : vector<8x8x128xf32> to vector<64x128xf32>
    %c32_i32_80 = arith.constant 32 : i32
    %121 = tpu.dynamic_rotate %120 by %c32_i32_80 dim 1 : vector<64x128xf32>, i32 -> vector<64x128xf32>
    %122 = arith.addf %118, %121 : vector<64x128xf32>
    %c2_81 = arith.constant 2 : index
    %c3_82 = arith.constant 3 : index
    %c0_83 = arith.constant 0 : index
    %123 = vector.load %arg13[%c2_81, %c3_82, %c0_83] : memref<12x12x128xf32, #tpu.memory_space<vmem>>, vector<8x8x128xf32>
    %124 = vector.shape_cast %123 : vector<8x8x128xf32> to vector<64x128xf32>
    %c48_i32_84 = arith.constant 48 : i32
    %125 = tpu.dynamic_rotate %124 by %c48_i32_84 dim 1 : vector<64x128xf32>, i32 -> vector<64x128xf32>
    %126 = arith.addf %122, %125 : vector<64x128xf32>
    %c2_85 = arith.constant 2 : index
    %c4_86 = arith.constant 4 : index
    %c0_87 = arith.constant 0 : index
    %127 = vector.load %arg13[%c2_85, %c4_86, %c0_87] : memref<12x12x128xf32, #tpu.memory_space<vmem>>, vector<8x8x128xf32>
    %128 = vector.shape_cast %127 : vector<8x8x128xf32> to vector<64x128xf32>
    %c64_i32_88 = arith.constant 64 : i32
    %129 = tpu.dynamic_rotate %128 by %c64_i32_88 dim 1 : vector<64x128xf32>, i32 -> vector<64x128xf32>
    %130 = arith.addf %126, %129 : vector<64x128xf32>
    %131 = arith.truncf %130 : vector<64x128xf32> to vector<64x128xbf16>
    %c2_89 = arith.constant 2 : index
    %c0_90 = arith.constant 0 : index
    %c0_91 = arith.constant 0 : index
    %132 = vector.load %arg4[%c2_89, %c0_90, %c0_91] : memref<5x128x128xbf16, #tpu.memory_space<vmem>>, vector<1x128x128xbf16>
    %133 = vector.shape_cast %132 : vector<1x128x128xbf16> to vector<128x128xbf16>
    %cst_92 = arith.constant dense<0.000000e+00> : vector<64x128xf32>
    %134 = tpu.matmul %131, %133, %cst_92 {dimension_numbers = #tpu.dot_dimension_numbers<[1], [0], [0], [1], [0, 0, 1, 1], [], []>} : vector<64x128xbf16>, vector<128x128xbf16>, vector<64x128xf32> -> vector<64x128xf32>
    %135 = arith.addf %112, %134 : vector<64x128xf32>
    %c3_93 = arith.constant 3 : index
    %c0_94 = arith.constant 0 : index
    %c0_95 = arith.constant 0 : index
    %136 = vector.load %arg13[%c3_93, %c0_94, %c0_95] : memref<12x12x128xf32, #tpu.memory_space<vmem>>, vector<8x8x128xf32>
    %137 = vector.shape_cast %136 : vector<8x8x128xf32> to vector<64x128xf32>
    %c3_96 = arith.constant 3 : index
    %c1_97 = arith.constant 1 : index
    %c0_98 = arith.constant 0 : index
    %138 = vector.load %arg13[%c3_96, %c1_97, %c0_98] : memref<12x12x128xf32, #tpu.memory_space<vmem>>, vector<8x8x128xf32>
    %139 = vector.shape_cast %138 : vector<8x8x128xf32> to vector<64x128xf32>
    %c16_i32_99 = arith.constant 16 : i32
    %140 = tpu.dynamic_rotate %139 by %c16_i32_99 dim 1 : vector<64x128xf32>, i32 -> vector<64x128xf32>
    %141 = arith.addf %137, %140 : vector<64x128xf32>
    %c3_100 = arith.constant 3 : index
    %c2_101 = arith.constant 2 : index
    %c0_102 = arith.constant 0 : index
    %142 = vector.load %arg13[%c3_100, %c2_101, %c0_102] : memref<12x12x128xf32, #tpu.memory_space<vmem>>, vector<8x8x128xf32>
    %143 = vector.shape_cast %142 : vector<8x8x128xf32> to vector<64x128xf32>
    %c32_i32_103 = arith.constant 32 : i32
    %144 = tpu.dynamic_rotate %143 by %c32_i32_103 dim 1 : vector<64x128xf32>, i32 -> vector<64x128xf32>
    %145 = arith.addf %141, %144 : vector<64x128xf32>
    %c3_104 = arith.constant 3 : index
    %c3_105 = arith.constant 3 : index
    %c0_106 = arith.constant 0 : index
    %146 = vector.load %arg13[%c3_104, %c3_105, %c0_106] : memref<12x12x128xf32, #tpu.memory_space<vmem>>, vector<8x8x128xf32>
    %147 = vector.shape_cast %146 : vector<8x8x128xf32> to vector<64x128xf32>
    %c48_i32_107 = arith.constant 48 : i32
    %148 = tpu.dynamic_rotate %147 by %c48_i32_107 dim 1 : vector<64x128xf32>, i32 -> vector<64x128xf32>
    %149 = arith.addf %145, %148 : vector<64x128xf32>
    %c3_108 = arith.constant 3 : index
    %c4_109 = arith.constant 4 : index
    %c0_110 = arith.constant 0 : index
    %150 = vector.load %arg13[%c3_108, %c4_109, %c0_110] : memref<12x12x128xf32, #tpu.memory_space<vmem>>, vector<8x8x128xf32>
    %151 = vector.shape_cast %150 : vector<8x8x128xf32> to vector<64x128xf32>
    %c64_i32_111 = arith.constant 64 : i32
    %152 = tpu.dynamic_rotate %151 by %c64_i32_111 dim 1 : vector<64x128xf32>, i32 -> vector<64x128xf32>
    %153 = arith.addf %149, %152 : vector<64x128xf32>
    %154 = arith.truncf %153 : vector<64x128xf32> to vector<64x128xbf16>
    %c3_112 = arith.constant 3 : index
    %c0_113 = arith.constant 0 : index
    %c0_114 = arith.constant 0 : index
    %155 = vector.load %arg4[%c3_112, %c0_113, %c0_114] : memref<5x128x128xbf16, #tpu.memory_space<vmem>>, vector<1x128x128xbf16>
    %156 = vector.shape_cast %155 : vector<1x128x128xbf16> to vector<128x128xbf16>
    %cst_115 = arith.constant dense<0.000000e+00> : vector<64x128xf32>
    %157 = tpu.matmul %154, %156, %cst_115 {dimension_numbers = #tpu.dot_dimension_numbers<[1], [0], [0], [1], [0, 0, 1, 1], [], []>} : vector<64x128xbf16>, vector<128x128xbf16>, vector<64x128xf32> -> vector<64x128xf32>
    %158 = arith.addf %135, %157 : vector<64x128xf32>
    %c4_116 = arith.constant 4 : index
    %c0_117 = arith.constant 0 : index
    %c0_118 = arith.constant 0 : index
    %159 = vector.load %arg13[%c4_116, %c0_117, %c0_118] : memref<12x12x128xf32, #tpu.memory_space<vmem>>, vector<8x8x128xf32>
    %160 = vector.shape_cast %159 : vector<8x8x128xf32> to vector<64x128xf32>
    %c4_119 = arith.constant 4 : index
    %c1_120 = arith.constant 1 : index
    %c0_121 = arith.constant 0 : index
    %161 = vector.load %arg13[%c4_119, %c1_120, %c0_121] : memref<12x12x128xf32, #tpu.memory_space<vmem>>, vector<8x8x128xf32>
    %162 = vector.shape_cast %161 : vector<8x8x128xf32> to vector<64x128xf32>
    %c16_i32_122 = arith.constant 16 : i32
    %163 = tpu.dynamic_rotate %162 by %c16_i32_122 dim 1 : vector<64x128xf32>, i32 -> vector<64x128xf32>
    %164 = arith.addf %160, %163 : vector<64x128xf32>
    %c4_123 = arith.constant 4 : index
    %c2_124 = arith.constant 2 : index
    %c0_125 = arith.constant 0 : index
    %165 = vector.load %arg13[%c4_123, %c2_124, %c0_125] : memref<12x12x128xf32, #tpu.memory_space<vmem>>, vector<8x8x128xf32>
    %166 = vector.shape_cast %165 : vector<8x8x128xf32> to vector<64x128xf32>
    %c32_i32_126 = arith.constant 32 : i32
    %167 = tpu.dynamic_rotate %166 by %c32_i32_126 dim 1 : vector<64x128xf32>, i32 -> vector<64x128xf32>
    %168 = arith.addf %164, %167 : vector<64x128xf32>
    %c4_127 = arith.constant 4 : index
    %c3_128 = arith.constant 3 : index
    %c0_129 = arith.constant 0 : index
    %169 = vector.load %arg13[%c4_127, %c3_128, %c0_129] : memref<12x12x128xf32, #tpu.memory_space<vmem>>, vector<8x8x128xf32>
    %170 = vector.shape_cast %169 : vector<8x8x128xf32> to vector<64x128xf32>
    %c48_i32_130 = arith.constant 48 : i32
    %171 = tpu.dynamic_rotate %170 by %c48_i32_130 dim 1 : vector<64x128xf32>, i32 -> vector<64x128xf32>
    %172 = arith.addf %168, %171 : vector<64x128xf32>
    %c4_131 = arith.constant 4 : index
    %c4_132 = arith.constant 4 : index
    %c0_133 = arith.constant 0 : index
    %173 = vector.load %arg13[%c4_131, %c4_132, %c0_133] : memref<12x12x128xf32, #tpu.memory_space<vmem>>, vector<8x8x128xf32>
    %174 = vector.shape_cast %173 : vector<8x8x128xf32> to vector<64x128xf32>
    %c64_i32_134 = arith.constant 64 : i32
    %175 = tpu.dynamic_rotate %174 by %c64_i32_134 dim 1 : vector<64x128xf32>, i32 -> vector<64x128xf32>
    %176 = arith.addf %172, %175 : vector<64x128xf32>
    %177 = arith.truncf %176 : vector<64x128xf32> to vector<64x128xbf16>
    %c4_135 = arith.constant 4 : index
    %c0_136 = arith.constant 0 : index
    %c0_137 = arith.constant 0 : index
    %178 = vector.load %arg4[%c4_135, %c0_136, %c0_137] : memref<5x128x128xbf16, #tpu.memory_space<vmem>>, vector<1x128x128xbf16>
    %179 = vector.shape_cast %178 : vector<1x128x128xbf16> to vector<128x128xbf16>
    %cst_138 = arith.constant dense<0.000000e+00> : vector<64x128xf32>
    %180 = tpu.matmul %177, %179, %cst_138 {dimension_numbers = #tpu.dot_dimension_numbers<[1], [0], [0], [1], [0, 0, 1, 1], [], []>} : vector<64x128xbf16>, vector<128x128xbf16>, vector<64x128xf32> -> vector<64x128xf32>
    %181 = arith.addf %158, %180 : vector<64x128xf32>
    %c0_139 = arith.constant 0 : index
    %c0_140 = arith.constant 0 : index
    %182 = vector.load %arg5[%c0_139, %c0_140] : memref<1x128xf32, #tpu.memory_space<vmem>>, vector<1x128xf32>
    %183 = vector.broadcast %182 : vector<1x128xf32> to vector<64x128xf32>
    %184 = arith.addf %181, %183 : vector<64x128xf32>
    %cst_141 = arith.constant 0.000000e+00 : f32
    %185 = vector.broadcast %cst_141 : f32 to vector<64x128xf32>
    %186 = arith.maximumf %184, %185 : vector<64x128xf32>
    %187 = vector.shape_cast %186 : vector<64x128xf32> to vector<4x2x8x128xf32>
    %188 = vector.extract_strided_slice %187 {offsets = [0, 0, 0, 0], sizes = [4, 1, 8, 128], strides = [1, 1, 1, 1]} : vector<4x2x8x128xf32> to vector<4x1x8x128xf32>
    %189 = vector.shape_cast %188 : vector<4x1x8x128xf32> to vector<4x8x128xf32>
    %190 = vector.extract_strided_slice %187 {offsets = [0, 1, 0, 0], sizes = [4, 1, 8, 128], strides = [1, 1, 1, 1]} : vector<4x2x8x128xf32> to vector<4x1x8x128xf32>
    %191 = vector.shape_cast %190 : vector<4x1x8x128xf32> to vector<4x8x128xf32>
    %192 = arith.maximumf %189, %191 : vector<4x8x128xf32>
    %193 = vector.shape_cast %192 : vector<4x8x128xf32> to vector<4x4x2x128xf32>
    %194 = vector.extract_strided_slice %193 {offsets = [0, 0, 0, 0], sizes = [4, 4, 1, 128], strides = [1, 1, 1, 1]} : vector<4x4x2x128xf32> to vector<4x4x1x128xf32>
    %195 = vector.shape_cast %194 : vector<4x4x1x128xf32> to vector<4x4x128xf32>
    %196 = vector.extract_strided_slice %193 {offsets = [0, 0, 1, 0], sizes = [4, 4, 1, 128], strides = [1, 1, 1, 1]} : vector<4x4x2x128xf32> to vector<4x4x1x128xf32>
    %197 = vector.shape_cast %196 : vector<4x4x1x128xf32> to vector<4x4x128xf32>
    %198 = arith.maximumf %195, %197 : vector<4x4x128xf32>
    %cst_142 = arith.constant 0.000000e+00 : f32
    %199 = vector.broadcast %cst_142 : f32 to vector<1x128xf32>
    %200 = vector.extract_strided_slice %198 {offsets = [0, 0, 0], sizes = [1, 1, 128], strides = [1, 1, 1]} : vector<4x4x128xf32> to vector<1x1x128xf32>
    %201 = vector.shape_cast %200 : vector<1x1x128xf32> to vector<1x128xf32>
    %202 = arith.truncf %201 : vector<1x128xf32> to vector<1x128xbf16>
    %c0_143 = arith.constant 0 : index
    %c0_144 = arith.constant 0 : index
    %c0_145 = arith.constant 0 : index
    %203 = vector.load %arg6[%c0_143, %c0_144, %c0_145] : memref<16x128x128xbf16, #tpu.memory_space<vmem>>, vector<1x128x128xbf16>
    %204 = vector.shape_cast %203 : vector<1x128x128xbf16> to vector<128x128xbf16>
    %cst_146 = arith.constant dense<0.000000e+00> : vector<1x128xf32>
    %205 = tpu.matmul %202, %204, %cst_146 {dimension_numbers = #tpu.dot_dimension_numbers<[1], [0], [0], [1], [0, 0, 1, 1], [], []>} : vector<1x128xbf16>, vector<128x128xbf16>, vector<1x128xf32> -> vector<1x128xf32>
    %206 = arith.addf %199, %205 : vector<1x128xf32>
    %207 = vector.extract_strided_slice %198 {offsets = [0, 1, 0], sizes = [1, 1, 128], strides = [1, 1, 1]} : vector<4x4x128xf32> to vector<1x1x128xf32>
    %208 = vector.shape_cast %207 : vector<1x1x128xf32> to vector<1x128xf32>
    %209 = arith.truncf %208 : vector<1x128xf32> to vector<1x128xbf16>
    %c1_147 = arith.constant 1 : index
    %c0_148 = arith.constant 0 : index
    %c0_149 = arith.constant 0 : index
    %210 = vector.load %arg6[%c1_147, %c0_148, %c0_149] : memref<16x128x128xbf16, #tpu.memory_space<vmem>>, vector<1x128x128xbf16>
    %211 = vector.shape_cast %210 : vector<1x128x128xbf16> to vector<128x128xbf16>
    %cst_150 = arith.constant dense<0.000000e+00> : vector<1x128xf32>
    %212 = tpu.matmul %209, %211, %cst_150 {dimension_numbers = #tpu.dot_dimension_numbers<[1], [0], [0], [1], [0, 0, 1, 1], [], []>} : vector<1x128xbf16>, vector<128x128xbf16>, vector<1x128xf32> -> vector<1x128xf32>
    %213 = arith.addf %206, %212 : vector<1x128xf32>
    %214 = vector.extract_strided_slice %198 {offsets = [0, 2, 0], sizes = [1, 1, 128], strides = [1, 1, 1]} : vector<4x4x128xf32> to vector<1x1x128xf32>
    %215 = vector.shape_cast %214 : vector<1x1x128xf32> to vector<1x128xf32>
    %216 = arith.truncf %215 : vector<1x128xf32> to vector<1x128xbf16>
    %c2_151 = arith.constant 2 : index
    %c0_152 = arith.constant 0 : index
    %c0_153 = arith.constant 0 : index
    %217 = vector.load %arg6[%c2_151, %c0_152, %c0_153] : memref<16x128x128xbf16, #tpu.memory_space<vmem>>, vector<1x128x128xbf16>
    %218 = vector.shape_cast %217 : vector<1x128x128xbf16> to vector<128x128xbf16>
    %cst_154 = arith.constant dense<0.000000e+00> : vector<1x128xf32>
    %219 = tpu.matmul %216, %218, %cst_154 {dimension_numbers = #tpu.dot_dimension_numbers<[1], [0], [0], [1], [0, 0, 1, 1], [], []>} : vector<1x128xbf16>, vector<128x128xbf16>, vector<1x128xf32> -> vector<1x128xf32>
    %220 = arith.addf %213, %219 : vector<1x128xf32>
    %221 = vector.extract_strided_slice %198 {offsets = [0, 3, 0], sizes = [1, 1, 128], strides = [1, 1, 1]} : vector<4x4x128xf32> to vector<1x1x128xf32>
    %222 = vector.shape_cast %221 : vector<1x1x128xf32> to vector<1x128xf32>
    %223 = arith.truncf %222 : vector<1x128xf32> to vector<1x128xbf16>
    %c3_155 = arith.constant 3 : index
    %c0_156 = arith.constant 0 : index
    %c0_157 = arith.constant 0 : index
    %224 = vector.load %arg6[%c3_155, %c0_156, %c0_157] : memref<16x128x128xbf16, #tpu.memory_space<vmem>>, vector<1x128x128xbf16>
    %225 = vector.shape_cast %224 : vector<1x128x128xbf16> to vector<128x128xbf16>
    %cst_158 = arith.constant dense<0.000000e+00> : vector<1x128xf32>
    %226 = tpu.matmul %223, %225, %cst_158 {dimension_numbers = #tpu.dot_dimension_numbers<[1], [0], [0], [1], [0, 0, 1, 1], [], []>} : vector<1x128xbf16>, vector<128x128xbf16>, vector<1x128xf32> -> vector<1x128xf32>
    %227 = arith.addf %220, %226 : vector<1x128xf32>
    %228 = vector.extract_strided_slice %198 {offsets = [1, 0, 0], sizes = [1, 1, 128], strides = [1, 1, 1]} : vector<4x4x128xf32> to vector<1x1x128xf32>
    %229 = vector.shape_cast %228 : vector<1x1x128xf32> to vector<1x128xf32>
    %230 = arith.truncf %229 : vector<1x128xf32> to vector<1x128xbf16>
    %c4_159 = arith.constant 4 : index
    %c0_160 = arith.constant 0 : index
    %c0_161 = arith.constant 0 : index
    %231 = vector.load %arg6[%c4_159, %c0_160, %c0_161] : memref<16x128x128xbf16, #tpu.memory_space<vmem>>, vector<1x128x128xbf16>
    %232 = vector.shape_cast %231 : vector<1x128x128xbf16> to vector<128x128xbf16>
    %cst_162 = arith.constant dense<0.000000e+00> : vector<1x128xf32>
    %233 = tpu.matmul %230, %232, %cst_162 {dimension_numbers = #tpu.dot_dimension_numbers<[1], [0], [0], [1], [0, 0, 1, 1], [], []>} : vector<1x128xbf16>, vector<128x128xbf16>, vector<1x128xf32> -> vector<1x128xf32>
    %234 = arith.addf %227, %233 : vector<1x128xf32>
    %235 = vector.extract_strided_slice %198 {offsets = [1, 1, 0], sizes = [1, 1, 128], strides = [1, 1, 1]} : vector<4x4x128xf32> to vector<1x1x128xf32>
    %236 = vector.shape_cast %235 : vector<1x1x128xf32> to vector<1x128xf32>
    %237 = arith.truncf %236 : vector<1x128xf32> to vector<1x128xbf16>
    %c5 = arith.constant 5 : index
    %c0_163 = arith.constant 0 : index
    %c0_164 = arith.constant 0 : index
    %238 = vector.load %arg6[%c5, %c0_163, %c0_164] : memref<16x128x128xbf16, #tpu.memory_space<vmem>>, vector<1x128x128xbf16>
    %239 = vector.shape_cast %238 : vector<1x128x128xbf16> to vector<128x128xbf16>
    %cst_165 = arith.constant dense<0.000000e+00> : vector<1x128xf32>
    %240 = tpu.matmul %237, %239, %cst_165 {dimension_numbers = #tpu.dot_dimension_numbers<[1], [0], [0], [1], [0, 0, 1, 1], [], []>} : vector<1x128xbf16>, vector<128x128xbf16>, vector<1x128xf32> -> vector<1x128xf32>
    %241 = arith.addf %234, %240 : vector<1x128xf32>
    %242 = vector.extract_strided_slice %198 {offsets = [1, 2, 0], sizes = [1, 1, 128], strides = [1, 1, 1]} : vector<4x4x128xf32> to vector<1x1x128xf32>
    %243 = vector.shape_cast %242 : vector<1x1x128xf32> to vector<1x128xf32>
    %244 = arith.truncf %243 : vector<1x128xf32> to vector<1x128xbf16>
    %c6 = arith.constant 6 : index
    %c0_166 = arith.constant 0 : index
    %c0_167 = arith.constant 0 : index
    %245 = vector.load %arg6[%c6, %c0_166, %c0_167] : memref<16x128x128xbf16, #tpu.memory_space<vmem>>, vector<1x128x128xbf16>
    %246 = vector.shape_cast %245 : vector<1x128x128xbf16> to vector<128x128xbf16>
    %cst_168 = arith.constant dense<0.000000e+00> : vector<1x128xf32>
    %247 = tpu.matmul %244, %246, %cst_168 {dimension_numbers = #tpu.dot_dimension_numbers<[1], [0], [0], [1], [0, 0, 1, 1], [], []>} : vector<1x128xbf16>, vector<128x128xbf16>, vector<1x128xf32> -> vector<1x128xf32>
    %248 = arith.addf %241, %247 : vector<1x128xf32>
    %249 = vector.extract_strided_slice %198 {offsets = [1, 3, 0], sizes = [1, 1, 128], strides = [1, 1, 1]} : vector<4x4x128xf32> to vector<1x1x128xf32>
    %250 = vector.shape_cast %249 : vector<1x1x128xf32> to vector<1x128xf32>
    %251 = arith.truncf %250 : vector<1x128xf32> to vector<1x128xbf16>
    %c7 = arith.constant 7 : index
    %c0_169 = arith.constant 0 : index
    %c0_170 = arith.constant 0 : index
    %252 = vector.load %arg6[%c7, %c0_169, %c0_170] : memref<16x128x128xbf16, #tpu.memory_space<vmem>>, vector<1x128x128xbf16>
    %253 = vector.shape_cast %252 : vector<1x128x128xbf16> to vector<128x128xbf16>
    %cst_171 = arith.constant dense<0.000000e+00> : vector<1x128xf32>
    %254 = tpu.matmul %251, %253, %cst_171 {dimension_numbers = #tpu.dot_dimension_numbers<[1], [0], [0], [1], [0, 0, 1, 1], [], []>} : vector<1x128xbf16>, vector<128x128xbf16>, vector<1x128xf32> -> vector<1x128xf32>
    %255 = arith.addf %248, %254 : vector<1x128xf32>
    %256 = vector.extract_strided_slice %198 {offsets = [2, 0, 0], sizes = [1, 1, 128], strides = [1, 1, 1]} : vector<4x4x128xf32> to vector<1x1x128xf32>
    %257 = vector.shape_cast %256 : vector<1x1x128xf32> to vector<1x128xf32>
    %258 = arith.truncf %257 : vector<1x128xf32> to vector<1x128xbf16>
    %c8_172 = arith.constant 8 : index
    %c0_173 = arith.constant 0 : index
    %c0_174 = arith.constant 0 : index
    %259 = vector.load %arg6[%c8_172, %c0_173, %c0_174] : memref<16x128x128xbf16, #tpu.memory_space<vmem>>, vector<1x128x128xbf16>
    %260 = vector.shape_cast %259 : vector<1x128x128xbf16> to vector<128x128xbf16>
    %cst_175 = arith.constant dense<0.000000e+00> : vector<1x128xf32>
    %261 = tpu.matmul %258, %260, %cst_175 {dimension_numbers = #tpu.dot_dimension_numbers<[1], [0], [0], [1], [0, 0, 1, 1], [], []>} : vector<1x128xbf16>, vector<128x128xbf16>, vector<1x128xf32> -> vector<1x128xf32>
    %262 = arith.addf %255, %261 : vector<1x128xf32>
    %263 = vector.extract_strided_slice %198 {offsets = [2, 1, 0], sizes = [1, 1, 128], strides = [1, 1, 1]} : vector<4x4x128xf32> to vector<1x1x128xf32>
    %264 = vector.shape_cast %263 : vector<1x1x128xf32> to vector<1x128xf32>
    %265 = arith.truncf %264 : vector<1x128xf32> to vector<1x128xbf16>
    %c9 = arith.constant 9 : index
    %c0_176 = arith.constant 0 : index
    %c0_177 = arith.constant 0 : index
    %266 = vector.load %arg6[%c9, %c0_176, %c0_177] : memref<16x128x128xbf16, #tpu.memory_space<vmem>>, vector<1x128x128xbf16>
    %267 = vector.shape_cast %266 : vector<1x128x128xbf16> to vector<128x128xbf16>
    %cst_178 = arith.constant dense<0.000000e+00> : vector<1x128xf32>
    %268 = tpu.matmul %265, %267, %cst_178 {dimension_numbers = #tpu.dot_dimension_numbers<[1], [0], [0], [1], [0, 0, 1, 1], [], []>} : vector<1x128xbf16>, vector<128x128xbf16>, vector<1x128xf32> -> vector<1x128xf32>
    %269 = arith.addf %262, %268 : vector<1x128xf32>
    %270 = vector.extract_strided_slice %198 {offsets = [2, 2, 0], sizes = [1, 1, 128], strides = [1, 1, 1]} : vector<4x4x128xf32> to vector<1x1x128xf32>
    %271 = vector.shape_cast %270 : vector<1x1x128xf32> to vector<1x128xf32>
    %272 = arith.truncf %271 : vector<1x128xf32> to vector<1x128xbf16>
    %c10 = arith.constant 10 : index
    %c0_179 = arith.constant 0 : index
    %c0_180 = arith.constant 0 : index
    %273 = vector.load %arg6[%c10, %c0_179, %c0_180] : memref<16x128x128xbf16, #tpu.memory_space<vmem>>, vector<1x128x128xbf16>
    %274 = vector.shape_cast %273 : vector<1x128x128xbf16> to vector<128x128xbf16>
    %cst_181 = arith.constant dense<0.000000e+00> : vector<1x128xf32>
    %275 = tpu.matmul %272, %274, %cst_181 {dimension_numbers = #tpu.dot_dimension_numbers<[1], [0], [0], [1], [0, 0, 1, 1], [], []>} : vector<1x128xbf16>, vector<128x128xbf16>, vector<1x128xf32> -> vector<1x128xf32>
    %276 = arith.addf %269, %275 : vector<1x128xf32>
    %277 = vector.extract_strided_slice %198 {offsets = [2, 3, 0], sizes = [1, 1, 128], strides = [1, 1, 1]} : vector<4x4x128xf32> to vector<1x1x128xf32>
    %278 = vector.shape_cast %277 : vector<1x1x128xf32> to vector<1x128xf32>
    %279 = arith.truncf %278 : vector<1x128xf32> to vector<1x128xbf16>
    %c11 = arith.constant 11 : index
    %c0_182 = arith.constant 0 : index
    %c0_183 = arith.constant 0 : index
    %280 = vector.load %arg6[%c11, %c0_182, %c0_183] : memref<16x128x128xbf16, #tpu.memory_space<vmem>>, vector<1x128x128xbf16>
    %281 = vector.shape_cast %280 : vector<1x128x128xbf16> to vector<128x128xbf16>
    %cst_184 = arith.constant dense<0.000000e+00> : vector<1x128xf32>
    %282 = tpu.matmul %279, %281, %cst_184 {dimension_numbers = #tpu.dot_dimension_numbers<[1], [0], [0], [1], [0, 0, 1, 1], [], []>} : vector<1x128xbf16>, vector<128x128xbf16>, vector<1x128xf32> -> vector<1x128xf32>
    %283 = arith.addf %276, %282 : vector<1x128xf32>
    %284 = vector.extract_strided_slice %198 {offsets = [3, 0, 0], sizes = [1, 1, 128], strides = [1, 1, 1]} : vector<4x4x128xf32> to vector<1x1x128xf32>
    %285 = vector.shape_cast %284 : vector<1x1x128xf32> to vector<1x128xf32>
    %286 = arith.truncf %285 : vector<1x128xf32> to vector<1x128xbf16>
    %c12 = arith.constant 12 : index
    %c0_185 = arith.constant 0 : index
    %c0_186 = arith.constant 0 : index
    %287 = vector.load %arg6[%c12, %c0_185, %c0_186] : memref<16x128x128xbf16, #tpu.memory_space<vmem>>, vector<1x128x128xbf16>
    %288 = vector.shape_cast %287 : vector<1x128x128xbf16> to vector<128x128xbf16>
    %cst_187 = arith.constant dense<0.000000e+00> : vector<1x128xf32>
    %289 = tpu.matmul %286, %288, %cst_187 {dimension_numbers = #tpu.dot_dimension_numbers<[1], [0], [0], [1], [0, 0, 1, 1], [], []>} : vector<1x128xbf16>, vector<128x128xbf16>, vector<1x128xf32> -> vector<1x128xf32>
    %290 = arith.addf %283, %289 : vector<1x128xf32>
    %291 = vector.extract_strided_slice %198 {offsets = [3, 1, 0], sizes = [1, 1, 128], strides = [1, 1, 1]} : vector<4x4x128xf32> to vector<1x1x128xf32>
    %292 = vector.shape_cast %291 : vector<1x1x128xf32> to vector<1x128xf32>
    %293 = arith.truncf %292 : vector<1x128xf32> to vector<1x128xbf16>
    %c13 = arith.constant 13 : index
    %c0_188 = arith.constant 0 : index
    %c0_189 = arith.constant 0 : index
    %294 = vector.load %arg6[%c13, %c0_188, %c0_189] : memref<16x128x128xbf16, #tpu.memory_space<vmem>>, vector<1x128x128xbf16>
    %295 = vector.shape_cast %294 : vector<1x128x128xbf16> to vector<128x128xbf16>
    %cst_190 = arith.constant dense<0.000000e+00> : vector<1x128xf32>
    %296 = tpu.matmul %293, %295, %cst_190 {dimension_numbers = #tpu.dot_dimension_numbers<[1], [0], [0], [1], [0, 0, 1, 1], [], []>} : vector<1x128xbf16>, vector<128x128xbf16>, vector<1x128xf32> -> vector<1x128xf32>
    %297 = arith.addf %290, %296 : vector<1x128xf32>
    %298 = vector.extract_strided_slice %198 {offsets = [3, 2, 0], sizes = [1, 1, 128], strides = [1, 1, 1]} : vector<4x4x128xf32> to vector<1x1x128xf32>
    %299 = vector.shape_cast %298 : vector<1x1x128xf32> to vector<1x128xf32>
    %300 = arith.truncf %299 : vector<1x128xf32> to vector<1x128xbf16>
    %c14 = arith.constant 14 : index
    %c0_191 = arith.constant 0 : index
    %c0_192 = arith.constant 0 : index
    %301 = vector.load %arg6[%c14, %c0_191, %c0_192] : memref<16x128x128xbf16, #tpu.memory_space<vmem>>, vector<1x128x128xbf16>
    %302 = vector.shape_cast %301 : vector<1x128x128xbf16> to vector<128x128xbf16>
    %cst_193 = arith.constant dense<0.000000e+00> : vector<1x128xf32>
    %303 = tpu.matmul %300, %302, %cst_193 {dimension_numbers = #tpu.dot_dimension_numbers<[1], [0], [0], [1], [0, 0, 1, 1], [], []>} : vector<1x128xbf16>, vector<128x128xbf16>, vector<1x128xf32> -> vector<1x128xf32>
    %304 = arith.addf %297, %303 : vector<1x128xf32>
    %305 = vector.extract_strided_slice %198 {offsets = [3, 3, 0], sizes = [1, 1, 128], strides = [1, 1, 1]} : vector<4x4x128xf32> to vector<1x1x128xf32>
    %306 = vector.shape_cast %305 : vector<1x1x128xf32> to vector<1x128xf32>
    %307 = arith.truncf %306 : vector<1x128xf32> to vector<1x128xbf16>
    %c15 = arith.constant 15 : index
    %c0_194 = arith.constant 0 : index
    %c0_195 = arith.constant 0 : index
    %308 = vector.load %arg6[%c15, %c0_194, %c0_195] : memref<16x128x128xbf16, #tpu.memory_space<vmem>>, vector<1x128x128xbf16>
    %309 = vector.shape_cast %308 : vector<1x128x128xbf16> to vector<128x128xbf16>
    %cst_196 = arith.constant dense<0.000000e+00> : vector<1x128xf32>
    %310 = tpu.matmul %307, %309, %cst_196 {dimension_numbers = #tpu.dot_dimension_numbers<[1], [0], [0], [1], [0, 0, 1, 1], [], []>} : vector<1x128xbf16>, vector<128x128xbf16>, vector<1x128xf32> -> vector<1x128xf32>
    %311 = arith.addf %304, %310 : vector<1x128xf32>
    %c0_197 = arith.constant 0 : index
    %c0_198 = arith.constant 0 : index
    %312 = vector.load %arg7[%c0_197, %c0_198] : memref<1x128xf32, #tpu.memory_space<vmem>>, vector<1x128xf32>
    %313 = arith.addf %311, %312 : vector<1x128xf32>
    %cst_199 = arith.constant 0.000000e+00 : f32
    %314 = vector.broadcast %cst_199 : f32 to vector<1x128xf32>
    %315 = arith.maximumf %313, %314 : vector<1x128xf32>
    %316 = arith.truncf %315 : vector<1x128xf32> to vector<1x128xbf16>
    %c0_200 = arith.constant 0 : index
    %c0_201 = arith.constant 0 : index
    %317 = vector.load %arg8[%c0_200, %c0_201] : memref<128x128xbf16, #tpu.memory_space<vmem>>, vector<128x128xbf16>
    %cst_202 = arith.constant dense<0.000000e+00> : vector<1x128xf32>
    %318 = tpu.matmul %316, %317, %cst_202 {dimension_numbers = #tpu.dot_dimension_numbers<[1], [0], [0], [1], [0, 0, 1, 1], [], []>} : vector<1x128xbf16>, vector<128x128xbf16>, vector<1x128xf32> -> vector<1x128xf32>
    %c0_203 = arith.constant 0 : index
    %c0_204 = arith.constant 0 : index
    %319 = vector.load %arg9[%c0_203, %c0_204] : memref<1x128xf32, #tpu.memory_space<vmem>>, vector<1x128xf32>
    %320 = arith.addf %318, %319 : vector<1x128xf32>
    %cst_205 = arith.constant 0.000000e+00 : f32
    %321 = vector.broadcast %cst_205 : f32 to vector<1x128xf32>
    %322 = arith.maximumf %320, %321 : vector<1x128xf32>
    %323 = arith.truncf %322 : vector<1x128xf32> to vector<1x128xbf16>
    %c0_206 = arith.constant 0 : index
    %c0_207 = arith.constant 0 : index
    %324 = vector.load %arg10[%c0_206, %c0_207] : memref<128x128xbf16, #tpu.memory_space<vmem>>, vector<128x128xbf16>
    %cst_208 = arith.constant dense<0.000000e+00> : vector<1x128xf32>
    %325 = tpu.matmul %323, %324, %cst_208 {dimension_numbers = #tpu.dot_dimension_numbers<[1], [0], [0], [1], [0, 0, 1, 1], [], []>} : vector<1x128xbf16>, vector<128x128xbf16>, vector<1x128xf32> -> vector<1x128xf32>
    %c0_209 = arith.constant 0 : index
    %c0_210 = arith.constant 0 : index
    %326 = vector.load %arg11[%c0_209, %c0_210] : memref<1x128xf32, #tpu.memory_space<vmem>>, vector<1x128xf32>
    %327 = arith.addf %325, %326 : vector<1x128xf32>
    %328 = vector.shape_cast %327 : vector<1x128xf32> to vector<1x1x128xf32>
    %c0_211 = arith.constant 0 : index
    %c0_212 = arith.constant 0 : index
    %c0_213 = arith.constant 0 : index
    %329 = vector.load %arg12[%c0_211, %c0_212, %c0_213] : memref<1x1x128xf32, #tpu.memory_space<vmem>>, vector<1x1x128xf32>
    tpu.vector_store %arg12[%c0_211, %c0_212, %c0_213], %328 {strides = array<i32>} : memref<1x1x128xf32, #tpu.memory_space<vmem>>, vector<1x1x128xf32>,
    return
  }
  func.func @transform_0(%arg0: i32) -> (i32, i32, i32) {
    %c0_i32 = arith.constant 0 : i32
    %c0_i32_0 = arith.constant 0 : i32
    %c0_i32_1 = arith.constant 0 : i32
    return %arg0, %c0_i32, %c0_i32_0 : i32, i32, i32
  }
  func.func @transform_1(%arg0: i32) -> (i32, i32) {
    %c0_i32 = arith.constant 0 : i32
    %c0_i32_0 = arith.constant 0 : i32
    %c0_i32_1 = arith.constant 0 : i32
    return %c0_i32, %c0_i32_0 : i32, i32
  }
  func.func @transform_2(%arg0: i32) -> (i32, i32) {
    %c0_i32 = arith.constant 0 : i32
    %c0_i32_0 = arith.constant 0 : i32
    %c0_i32_1 = arith.constant 0 : i32
    return %c0_i32, %c0_i32_0 : i32, i32
  }
  func.func @transform_3(%arg0: i32) -> (i32, i32, i32) {
    %c0_i32 = arith.constant 0 : i32
    %c0_i32_0 = arith.constant 0 : i32
    %c0_i32_1 = arith.constant 0 : i32
    %c0_i32_2 = arith.constant 0 : i32
    return %c0_i32, %c0_i32_0, %c0_i32_1 : i32, i32, i32
  }
  func.func @transform_4(%arg0: i32) -> (i32, i32) {
    %c0_i32 = arith.constant 0 : i32
    %c0_i32_0 = arith.constant 0 : i32
    %c0_i32_1 = arith.constant 0 : i32
    return %c0_i32, %c0_i32_0 : i32, i32
  }
  func.func @transform_5(%arg0: i32) -> (i32, i32, i32) {
    %c0_i32 = arith.constant 0 : i32
    %c0_i32_0 = arith.constant 0 : i32
    %c0_i32_1 = arith.constant 0 : i32
    %c0_i32_2 = arith.constant 0 : i32
    return %c0_i32, %c0_i32_0, %c0_i32_1 : i32, i32, i32
  }
  func.func @transform_6(%arg0: i32) -> (i32, i32) {
    %c0_i32 = arith.constant 0 : i32
    %c0_i32_0 = arith.constant 0 : i32
    %c0_i32_1 = arith.constant 0 : i32
    return %c0_i32, %c0_i32_0 : i32, i32
  }
  func.func @transform_7(%arg0: i32) -> (i32, i32) {
    %c0_i32 = arith.constant 0 : i32
    %c0_i32_0 = arith.constant 0 : i32
    %c0_i32_1 = arith.constant 0 : i32
    return %c0_i32, %c0_i32_0 : i32, i32
  }
  func.func @transform_8(%arg0: i32) -> (i32, i32) {
    %c0_i32 = arith.constant 0 : i32
    %c0_i32_0 = arith.constant 0 : i32
    %c0_i32_1 = arith.constant 0 : i32
    return %c0_i32, %c0_i32_0 : i32, i32
  }
  func.func @transform_9(%arg0: i32) -> (i32, i32) {
    %c0_i32 = arith.constant 0 : i32
    %c0_i32_0 = arith.constant 0 : i32
    %c0_i32_1 = arith.constant 0 : i32
    return %c0_i32, %c0_i32_0 : i32, i32
  }
  func.func @transform_10(%arg0: i32) -> (i32, i32) {
    %c0_i32 = arith.constant 0 : i32
    %c0_i32_0 = arith.constant 0 : i32
    %c0_i32_1 = arith.constant 0 : i32
    return %c0_i32, %c0_i32_0 : i32, i32
  }
  func.func @transform_11(%arg0: i32) -> (i32, i32, i32) {
    %c0_i32 = arith.constant 0 : i32
    %c0_i32_0 = arith.constant 0 : i32
    %c0_i32_1 = arith.constant 0 : i32
    return %arg0, %c0_i32, %c0_i32_0 : i32, i32, i32
  }
}

</mosaic_0001>

<llo_original>
// kernel: mnist_net_forward.1
$region0: #{mnist_net_forward.1}
  #allocation0 [shape = 'u32[]', space=smem, size = 0x4, offset = 0x4, fixed_abs, tag = 'smem constant byte address 0x4 - core index']
  #allocation1 [shape = 'u32[72,128]{1,0:T(1,128)}', space=vmem, size = 0x9000, scoped, tag = 'internal scratch']
  #allocation2 [shape = 'f32[12,12,128]{2,1,0:T(8,128)}', space=vmem, size = 0x18000, scoped, tag = 'scratch operand']
  %s0 = inlined_call_operand.vmem [shape: bf16[2,576,128], index: 0, kind: input, shape index: {}]
  %s1 = inlined_call_operand.vmem [shape: bf16[128,128], index: 1, kind: input, shape index: {}]
  %s2 = inlined_call_operand.vmem [shape: f32[1,128], index: 2, kind: input, shape index: {}]
  %s3 = inlined_call_operand.vmem [shape: bf16[5,128,128], index: 3, kind: input, shape index: {}]
  %s4 = inlined_call_operand.vmem [shape: f32[1,128], index: 4, kind: input, shape index: {}]
  %s5 = inlined_call_operand.vmem [shape: bf16[16,128,128], index: 5, kind: input, shape index: {}]
  %s6 = inlined_call_operand.vmem [shape: f32[1,128], index: 6, kind: input, shape index: {}]
  %s7 = inlined_call_operand.vmem [shape: bf16[128,128], index: 7, kind: input, shape index: {}]
  %s8 = inlined_call_operand.vmem [shape: f32[1,128], index: 8, kind: input, shape index: {}]
  %s9 = inlined_call_operand.vmem [shape: bf16[128,128], index: 9, kind: input, shape index: {}]
  %s10 = inlined_call_operand.vmem [shape: f32[1,128], index: 10, kind: input, shape index: {}]
  %s11 = inlined_call_operand.hbm [shape: f32[2,1,128], index: 11, kind: output, shape index: {}]
  %s12 = sld [smem:[#allocation0]]
  $region77: #{mnist_net_forward.1} parent=0
    _
  %s14 = ssub.s32 1, %s12
  %s15 = scalar_select 0, %s14, %s12
  $region1: #{mnist_net_forward.1} parent=0
    #allocation3 [shape = 'u8[1024]{0}', space=vmem, size = 0x400, scoped, tag = 'output window, operand 0']
    #allocation4 [shape = 's32[2]{0}', space=sflag, size = 0x8, scoped, tag = 'scoped memory for mnist_net_forward.1']
    %16 = vsyncpa [#allocation4], 0
    %s17 = scalar_lea.sflag [#allocation4], 1
    %18 = vsyncpa %s17, 0
    loop: start=0, step=1, limit=4
    $region2: #{mnist_net_forward.1} parent=1 // loop_pre_header
      _
    $region3: #{mnist_net_forward.1} parent=1 // loop_header
      %s20 = sphi 0, %s24
      %p21 = scmp.ge.s32.totalorder %s20, 4
      %s30 = sphi 0, %s32
      %s33 = sphi 0, %s30
      %s34 = sphi 0, %s33
      %s50 = sphi 0, %s34
      %s54 = sphi 0, %s54
      %s56 = sphi 0, %s54
      %s57 = sphi 0, %s56
      %s71 = sphi 0, %s57
      %s75 = sphi 0, %s75
      %s77 = sphi 0, %s75
      %s78 = sphi 0, %s77
      %s92 = sphi 0, %s78
      %s96 = sphi 0, %s96
      %s98 = sphi 0, %s96
      %s99 = sphi 0, %s98
      %s113 = sphi 0, %s99
      %s117 = sphi 0, %s117
      %s119 = sphi 0, %s117
      %s120 = sphi 0, %s119
      %s134 = sphi 0, %s120
      %s138 = sphi 0, %s138
      %s140 = sphi 0, %s138
      %s141 = sphi 0, %s140
      %s155 = sphi 0, %s141
      %s159 = sphi 0, %s159
      %s161 = sphi 0, %s159
      %s162 = sphi 0, %s161
      %s176 = sphi 0, %s162
      %s180 = sphi 0, %s180
      %s182 = sphi 0, %s180
      %s183 = sphi 0, %s182
      %s197 = sphi 0, %s183
      %s201 = sphi 0, %s201
      %s203 = sphi 0, %s201
      %s204 = sphi 0, %s203
      %s218 = sphi 0, %s204
      %s222 = sphi 0, %s222
      %s224 = sphi 0, %s222
      %s225 = sphi 0, %s224
      %s239 = sphi 0, %s225
      %s243 = sphi 0, %s243
      %s245 = sphi 0, %s243
      %s246 = sphi 0, %s245
      %s260 = sphi 0, %s246
      %s266 = sphi 0, %s268
      %s269 = sphi 0, %s266
      %s270 = sphi 0, %s269
      %s286 = sphi 0, %s270
    $region4: #{mnist_net_forward.1} parent=1 // loop_header_branch
      %23 = sbr.rel (%p21) target = $region8
    $region5: #{mnist_net_forward.1} parent=1 // loop_body
      %s25 = ssub.s32 %s20, 1
      %s26 = ssub.s32 %s20, 2
      %s27 = sadd.s32 %s20, 1
      %s28 = ssub.s32 %s20, %s27
      %p29 = scmp.eq.s32.totalorder %s28, 0
      %s31 = sadd.s32 %s30, 1
      %s32 = scalar_select %p29, %s30, %s31
      %p35 = pneg %p29
      %p36 = scmp.eq.s32.totalorder %s20, 1
      %p37 = por %p35, %p36
      %p38 = scmp.ne.s32.totalorder %s30, %s33
      %p39 = scmp.eq.s32.totalorder %s20, 0
      %p40 = por %p38, %p39
      %p41 = scmp.ne.s32.totalorder %s30, %s33
      %p42 = scmp.eq.s32.totalorder %s25, 1
      %p43 = por %p41, %p42
      %p44 = scmp.ne.s32.totalorder %s33, %s34
      %p45 = scmp.eq.s32.totalorder %s25, 0
      %p46 = por %p44, %p45
      %p47 = scmp.ne.s32.totalorder %s33, %s34
      %p48 = scmp.eq.s32.totalorder %s26, 1
      %p49 = por %p47, %p48
      %p51 = scmp.ne.s32.totalorder %s34, %s50
      %p52 = scmp.eq.s32.totalorder %s26, 0
      %p53 = por %p51, %p52
      %s55 = sadd.s32 %s54, 1
      %p58 = scmp.eq.s32.totalorder %s20, 1
      %p59 = scmp.ne.s32.totalorder %s54, %s56
      %p60 = scmp.eq.s32.totalorder %s20, 0
      %p61 = por %p59, %p60
      %p62 = scmp.ne.s32.totalorder %s54, %s56
      %p63 = scmp.eq.s32.totalorder %s25, 1
      %p64 = por %p62, %p63
      %p65 = scmp.ne.s32.totalorder %s56, %s57
      %p66 = scmp.eq.s32.totalorder %s25, 0
      %p67 = por %p65, %p66
      %p68 = scmp.ne.s32.totalorder %s56, %s57
      %p69 = scmp.eq.s32.totalorder %s26, 1
      %p70 = por %p68, %p69
      %p72 = scmp.ne.s32.totalorder %s57, %s71
      %p73 = scmp.eq.s32.totalorder %s26, 0
      %p74 = por %p72, %p73
      %s76 = sadd.s32 %s75, 1
      %p79 = scmp.eq.s32.totalorder %s20, 1
      %p80 = scmp.ne.s32.totalorder %s75, %s77
      %p81 = scmp.eq.s32.totalorder %s20, 0
      %p82 = por %p80, %p81
      %p83 = scmp.ne.s32.totalorder %s75, %s77
      %p84 = scmp.eq.s32.totalorder %s25, 1
      %p85 = por %p83, %p84
      %p86 = scmp.ne.s32.totalorder %s77, %s78
      %p87 = scmp.eq.s32.totalorder %s25, 0
      %p88 = por %p86, %p87
      %p89 = scmp.ne.s32.totalorder %s77, %s78
      %p90 = scmp.eq.s32.totalorder %s26, 1
      %p91 = por %p89, %p90
      %p93 = scmp.ne.s32.totalorder %s78, %s92
      %p94 = scmp.eq.s32.totalorder %s26, 0
      %p95 = por %p93, %p94
      %s97 = sadd.s32 %s96, 1
      %p100 = scmp.eq.s32.totalorder %s20, 1
      %p101 = scmp.ne.s32.totalorder %s96, %s98
      %p102 = scmp.eq.s32.totalorder %s20, 0
      %p103 = por %p101, %p102
      %p104 = scmp.ne.s32.totalorder %s96, %s98
      %p105 = scmp.eq.s32.totalorder %s25, 1
      %p106 = por %p104, %p105
      %p107 = scmp.ne.s32.totalorder %s98, %s99
      %p108 = scmp.eq.s32.totalorder %s25, 0
      %p109 = por %p107, %p108
      %p110 = scmp.ne.s32.totalorder %s98, %s99
      %p111 = scmp.eq.s32.totalorder %s26, 1
      %p112 = por %p110, %p111
      %p114 = scmp.ne.s32.totalorder %s99, %s113
      %p115 = scmp.eq.s32.totalorder %s26, 0
      %p116 = por %p114, %p115
      %s118 = sadd.s32 %s117, 1
      %p121 = scmp.eq.s32.totalorder %s20, 1
      %p122 = scmp.ne.s32.totalorder %s117, %s119
      %p123 = scmp.eq.s32.totalorder %s20, 0
      %p124 = por %p122, %p123
      %p125 = scmp.ne.s32.totalorder %s117, %s119
      %p126 = scmp.eq.s32.totalorder %s25, 1
      %p127 = por %p125, %p126
      %p128 = scmp.ne.s32.totalorder %s119, %s120
      %p129 = scmp.eq.s32.totalorder %s25, 0
      %p130 = por %p128, %p129
      %p131 = scmp.ne.s32.totalorder %s119, %s120
      %p132 = scmp.eq.s32.totalorder %s26, 1
      %p133 = por %p131, %p132
      %p135 = scmp.ne.s32.totalorder %s120, %s134
      %p136 = scmp.eq.s32.totalorder %s26, 0
      %p137 = por %p135, %p136
      %s139 = sadd.s32 %s138, 1
      %p142 = scmp.eq.s32.totalorder %s20, 1
      %p143 = scmp.ne.s32.totalorder %s138, %s140
      %p144 = scmp.eq.s32.totalorder %s20, 0
      %p145 = por %p143, %p144
      %p146 = scmp.ne.s32.totalorder %s138, %s140
      %p147 = scmp.eq.s32.totalorder %s25, 1
      %p148 = por %p146, %p147
      %p149 = scmp.ne.s32.totalorder %s140, %s141
      %p150 = scmp.eq.s32.totalorder %s25, 0
      %p151 = por %p149, %p150
      %p152 = scmp.ne.s32.totalorder %s140, %s141
      %p153 = scmp.eq.s32.totalorder %s26, 1
      %p154 = por %p152, %p153
      %p156 = scmp.ne.s32.totalorder %s141, %s155
      %p157 = scmp.eq.s32.totalorder %s26, 0
      %p158 = por %p156, %p157
      %s160 = sadd.s32 %s159, 1
      %p163 = scmp.eq.s32.totalorder %s20, 1
      %p164 = scmp.ne.s32.totalorder %s159, %s161
      %p165 = scmp.eq.s32.totalorder %s20, 0
      %p166 = por %p164, %p165
      %p167 = scmp.ne.s32.totalorder %s159, %s161
      %p168 = scmp.eq.s32.totalorder %s25, 1
      %p169 = por %p167, %p168
      %p170 = scmp.ne.s32.totalorder %s161, %s162
      %p171 = scmp.eq.s32.totalorder %s25, 0
      %p172 = por %p170, %p171
      %p173 = scmp.ne.s32.totalorder %s161, %s162
      %p174 = scmp.eq.s32.totalorder %s26, 1
      %p175 = por %p173, %p174
      %p177 = scmp.ne.s32.totalorder %s162, %s176
      %p178 = scmp.eq.s32.totalorder %s26, 0
      %p179 = por %p177, %p178
      %s181 = sadd.s32 %s180, 1
      %p184 = scmp.eq.s32.totalorder %s20, 1
      %p185 = scmp.ne.s32.totalorder %s180, %s182
      %p186 = scmp.eq.s32.totalorder %s20, 0
      %p187 = por %p185, %p186
      %p188 = scmp.ne.s32.totalorder %s180, %s182
      %p189 = scmp.eq.s32.totalorder %s25, 1
      %p190 = por %p188, %p189
      %p191 = scmp.ne.s32.totalorder %s182, %s183
      %p192 = scmp.eq.s32.totalorder %s25, 0
      %p193 = por %p191, %p192
      %p194 = scmp.ne.s32.totalorder %s182, %s183
      %p195 = scmp.eq.s32.totalorder %s26, 1
      %p196 = por %p194, %p195
      %p198 = scmp.ne.s32.totalorder %s183, %s197
      %p199 = scmp.eq.s32.totalorder %s26, 0
      %p200 = por %p198, %p199
      %s202 = sadd.s32 %s201, 1
      %p205 = scmp.eq.s32.totalorder %s20, 1
      %p206 = scmp.ne.s32.totalorder %s201, %s203
      %p207 = scmp.eq.s32.totalorder %s20, 0
      %p208 = por %p206, %p207
      %p209 = scmp.ne.s32.totalorder %s201, %s203
      %p210 = scmp.eq.s32.totalorder %s25, 1
      %p211 = por %p209, %p210
      %p212 = scmp.ne.s32.totalorder %s203, %s204
      %p213 = scmp.eq.s32.totalorder %s25, 0
      %p214 = por %p212, %p213
      %p215 = scmp.ne.s32.totalorder %s203, %s204
      %p216 = scmp.eq.s32.totalorder %s26, 1
      %p217 = por %p215, %p216
      %p219 = scmp.ne.s32.totalorder %s204, %s218
      %p220 = scmp.eq.s32.totalorder %s26, 0
      %p221 = por %p219, %p220
      %s223 = sadd.s32 %s222, 1
      %p226 = scmp.eq.s32.totalorder %s20, 1
      %p227 = scmp.ne.s32.totalorder %s222, %s224
      %p228 = scmp.eq.s32.totalorder %s20, 0
      %p229 = por %p227, %p228
      %p230 = scmp.ne.s32.totalorder %s222, %s224
      %p231 = scmp.eq.s32.totalorder %s25, 1
      %p232 = por %p230, %p231
      %p233 = scmp.ne.s32.totalorder %s224, %s225
      %p234 = scmp.eq.s32.totalorder %s25, 0
      %p235 = por %p233, %p234
      %p236 = scmp.ne.s32.totalorder %s224, %s225
      %p237 = scmp.eq.s32.totalorder %s26, 1
      %p238 = por %p236, %p237
      %p240 = scmp.ne.s32.totalorder %s225, %s239
      %p241 = scmp.eq.s32.totalorder %s26, 0
      %p242 = por %p240, %p241
      %s244 = sadd.s32 %s243, 1
      %p247 = scmp.eq.s32.totalorder %s20, 1
      %p248 = scmp.ne.s32.totalorder %s243, %s245
      %p249 = scmp.eq.s32.totalorder %s20, 0
      %p250 = por %p248, %p249
      %p251 = scmp.ne.s32.totalorder %s243, %s245
      %p252 = scmp.eq.s32.totalorder %s25, 1
      %p253 = por %p251, %p252
      %p254 = scmp.ne.s32.totalorder %s245, %s246
      %p255 = scmp.eq.s32.totalorder %s25, 0
      %p256 = por %p254, %p255
      %p257 = scmp.ne.s32.totalorder %s245, %s246
      %p258 = scmp.eq.s32.totalorder %s26, 1
      %p259 = por %p257, %p258
      %p261 = scmp.ne.s32.totalorder %s246, %s260
      %p262 = scmp.eq.s32.totalorder %s26, 0
      %p263 = por %p261, %p262
      %s264 = ssub.s32 %s20, %s27
      %p265 = scmp.eq.s32.totalorder %s264, 0
      %s267 = sadd.s32 %s266, 1
      %s268 = scalar_select %p265, %s266, %s267
      %p271 = pneg %p265
      %p272 = scmp.eq.s32.totalorder %s20, 1
      %p273 = por %p271, %p272
      %p274 = scmp.ne.s32.totalorder %s266, %s269
      %p275 = scmp.eq.s32.totalorder %s20, 0
      %p276 = por %p274, %p275
      %p277 = scmp.ne.s32.totalorder %s266, %s269
      %p278 = scmp.eq.s32.totalorder %s25, 1
      %p279 = por %p277, %p278
      %p280 = scmp.ne.s32.totalorder %s269, %s270
      %p281 = scmp.eq.s32.totalorder %s25, 0
      %p282 = por %p280, %p281
      %p283 = scmp.ne.s32.totalorder %s269, %s270
      %p284 = scmp.eq.s32.totalorder %s26, 1
      %p285 = por %p283, %p284
      %p287 = scmp.ne.s32.totalorder %s270, %s286
      %p288 = scmp.eq.s32.totalorder %s26, 0
      %p289 = por %p287, %p288
      %p290 = scmp.le.s32.totalorder 1, %s20
      %p291 = scmp.lt.s32.totalorder %s20, 3
      %p292 = pnand %p290, %p291
      %p293 = pneg %p292
      // Predicated region
      $region9: #{mnist_net_forward.1} parent=5 // pred_check
        _
      $region10: #{mnist_net_forward.1} parent=5 // pred_check_branch
        %295 = sbr.rel (%p292) target = $region12
      $region11: #{mnist_net_forward.1} parent=5 // pred_region
        %s296 = ssub.s32 %s20, 1
        // Predicated region
        $region13: #{mnist_net_forward.1} parent=11 // pred_check
          %p297 = pneg %p67
        $region14: #{mnist_net_forward.1} parent=11 // pred_check_branch
          %299 = sbr.rel (%p297) target = $region16
        $region15: #{mnist_net_forward.1} parent=11 // pred_region
          _
        $region16: #{mnist_net_forward.1} parent=11 // pred_fallthru
          _
        // Predicated region
        $region17: #{mnist_net_forward.1} parent=11 // pred_check
          %p300 = pneg %p88
        $region18: #{mnist_net_forward.1} parent=11 // pred_check_branch
          %302 = sbr.rel (%p300) target = $region20
        $region19: #{mnist_net_forward.1} parent=11 // pred_region
          _
        $region20: #{mnist_net_forward.1} parent=11 // pred_fallthru
          _
        // Predicated region
        $region21: #{mnist_net_forward.1} parent=11 // pred_check
          %p303 = pneg %p109
        $region22: #{mnist_net_forward.1} parent=11 // pred_check_branch
          %305 = sbr.rel (%p303) target = $region24
        $region23: #{mnist_net_forward.1} parent=11 // pred_region
          _
        $region24: #{mnist_net_forward.1} parent=11 // pred_fallthru
          _
        // Predicated region
        $region25: #{mnist_net_forward.1} parent=11 // pred_check
          %p306 = pneg %p130
        $region26: #{mnist_net_forward.1} parent=11 // pred_check_branch
          %308 = sbr.rel (%p306) target = $region28
        $region27: #{mnist_net_forward.1} parent=11 // pred_region
          _
        $region28: #{mnist_net_forward.1} parent=11 // pred_fallthru
          _
        // Predicated region
        $region29: #{mnist_net_forward.1} parent=11 // pred_check
          %p309 = pneg %p151
        $region30: #{mnist_net_forward.1} parent=11 // pred_check_branch
          %311 = sbr.rel (%p309) target = $region32
        $region31: #{mnist_net_forward.1} parent=11 // pred_region
          _
        $region32: #{mnist_net_forward.1} parent=11 // pred_fallthru
          _
        // Predicated region
        $region33: #{mnist_net_forward.1} parent=11 // pred_check
          %p312 = pneg %p172
        $region34: #{mnist_net_forward.1} parent=11 // pred_check_branch
          %314 = sbr.rel (%p312) target = $region36
        $region35: #{mnist_net_forward.1} parent=11 // pred_region
          _
        $region36: #{mnist_net_forward.1} parent=11 // pred_fallthru
          _
        // Predicated region
        $region37: #{mnist_net_forward.1} parent=11 // pred_check
          %p315 = pneg %p193
        $region38: #{mnist_net_forward.1} parent=11 // pred_check_branch
          %317 = sbr.rel (%p315) target = $region40
        $region39: #{mnist_net_forward.1} parent=11 // pred_region
          _
        $region40: #{mnist_net_forward.1} parent=11 // pred_fallthru
          _
        // Predicated region
        $region41: #{mnist_net_forward.1} parent=11 // pred_check
          %p318 = pneg %p214
        $region42: #{mnist_net_forward.1} parent=11 // pred_check_branch
          %320 = sbr.rel (%p318) target = $region44
        $region43: #{mnist_net_forward.1} parent=11 // pred_region
          _
        $region44: #{mnist_net_forward.1} parent=11 // pred_fallthru
          _
        // Predicated region
        $region45: #{mnist_net_forward.1} parent=11 // pred_check
          %p321 = pneg %p235
        $region46: #{mnist_net_forward.1} parent=11 // pred_check_branch
          %323 = sbr.rel (%p321) target = $region48
        $region47: #{mnist_net_forward.1} parent=11 // pred_region
          _
        $region48: #{mnist_net_forward.1} parent=11 // pred_fallthru
          _
        // Predicated region
        $region49: #{mnist_net_forward.1} parent=11 // pred_check
          %p324 = pneg %p256
        $region50: #{mnist_net_forward.1} parent=11 // pred_check_branch
          %326 = sbr.rel (%p324) target = $region52
        $region51: #{mnist_net_forward.1} parent=11 // pred_region
          _
        $region52: #{mnist_net_forward.1} parent=11 // pred_fallthru
          _
      $region12: #{mnist_net_forward.1} parent=5 // pred_fallthru
        _
      %p327 = scmp.lt.s32.totalorder %s20, 2
      // Predicated region
      $region53: #{mnist_net_forward.1} parent=5 // pred_check
        %p328 = pneg %p327
      $region54: #{mnist_net_forward.1} parent=5 // pred_check_branch
        %330 = sbr.rel (%p328) target = $region56
      $region55: #{mnist_net_forward.1} parent=5 // pred_region
        // Predicated region
        $region57: #{mnist_net_forward.1} parent=55 // pred_check
          %p331 = pneg %p40
        $region58: #{mnist_net_forward.1} parent=55 // pred_check_branch
          %333 = sbr.rel (%p331) target = $region60
        $region59: #{mnist_net_forward.1} parent=55 // pred_region
          %p334 = scmp.lt.s32.totalorder %s20, 1
          %s335 = scalar_select %p334, %s20, 1
          %s336 = smul.addr %s335, 72
          %s337 = smul.addr %s336, 4
          %s338 = scalar_lea.vmem %s0, %s337
        $region60: #{mnist_net_forward.1} parent=55 // pred_fallthru
          _
      $region56: #{mnist_net_forward.1} parent=5 // pred_fallthru
        _
      %p339 = scmp.le.s32.totalorder 1, %s20
      %p340 = scmp.lt.s32.totalorder %s20, 3
      %p341 = pnand %p339, %p340
      %p342 = pneg %p341
      // Predicated region
      $region61: #{mnist_net_forward.1} parent=5 // pred_check
        _
      $region62: #{mnist_net_forward.1} parent=5 // pred_check_branch
        %344 = sbr.rel (%p341) target = $region64
      $region63: #{mnist_net_forward.1} parent=5 // pred_region
        %s345 = ssub.s32 %s20, 1
        %p346 = scmp.lt.s32.totalorder %s25, 1
        %s347 = scalar_select %p346, %s25, 1
        %s348 = smul.addr %s347, 72
        %s349 = smul.addr %s348, 4
        %s350 = scalar_lea.vmem %s0, %s349
        %p351 = pneg %p46
        %p352 = pneg %p43
        %p353 = pneg %p67
        %p354 = pneg %p64
        %p355 = pneg %p88
        %p356 = pneg %p85
        %p357 = pneg %p109
        %p358 = pneg %p106
        %p359 = pneg %p130
        %p360 = pneg %p127
        %p361 = pneg %p151
        %p362 = pneg %p148
        %p363 = pneg %p172
        %p364 = pneg %p169
        %p365 = pneg %p193
        %p366 = pneg %p190
        %p367 = pneg %p214
        %p368 = pneg %p211
        %p369 = pneg %p235
        %p370 = pneg %p232
        %p371 = pneg %p256
        %p372 = pneg %p253
        %p373 = pneg %p282
        %p374 = pneg %p279
        %s375 = sand.u32 %s269, 1
        %s376 = scalar_lea.sflag [#allocation4], %s375
        %s377 = sand.u32 %s269, 1
        %s378 = scalar_lea.vmem [#allocation3], %s377
        %p379 = scmp.lt.s32.totalorder %s25, 1
        %s380 = scalar_select %p379, %s25, 1
        %s381 = smul.addr %s380, 72
        %s382 = smul.addr %s381, 4
        %s383 = scalar_lea.vmem %s0, %s382
        %v384 = vld [vmem:[%s383] sm:$0xf]
        %v385 = vld [vmem:[%s383 + $0x4] sm:$0xf]
        %v386 = vld [vmem:[%s383 + $0x8] sm:$0xf]
        %v387 = vld [vmem:[%s383 + $0xc] sm:$0xf]
        %v388 = vld [vmem:[%s383 + $0x10] sm:$0xf]
        %v389 = vld [vmem:[%s383 + $0x14] sm:$0xf]
        %v390 = vld [vmem:[%s383 + $0x18] sm:$0xf]
        %v391 = vld [vmem:[%s383 + $0x1c] sm:$0xf]
        %v392 = vld [vmem:[%s383 + $0x20] sm:$0xf]
        %v393 = vld [vmem:[%s383 + $0x24] sm:$0xf]
        %v394 = vld [vmem:[%s383 + $0x28] sm:$0xf]
        %v395 = vld [vmem:[%s383 + $0x2c] sm:$0xf]
        %v396 = vld [vmem:[%s383 + $0x30] sm:$0xf]
        %v397 = vld [vmem:[%s383 + $0x34] sm:$0xf]
        %v398 = vld [vmem:[%s383 + $0x38] sm:$0xf]
        %v399 = vld [vmem:[%s383 + $0x3c] sm:$0xf]
        %v400 = vld [vmem:[%s383 + $0x40] sm:$0xf]
        %v401 = vld [vmem:[%s383 + $0x44] sm:$0xf]
        %v402 = vld [vmem:[%s383 + $0x48] sm:$0xf]
        %v403 = vld [vmem:[%s383 + $0x4c] sm:$0xf]
        %v404 = vld [vmem:[%s383 + $0x50] sm:$0xf]
        %v405 = vld [vmem:[%s383 + $0x54] sm:$0xf]
        %v406 = vld [vmem:[%s383 + $0x58] sm:$0xf]
        %v407 = vld [vmem:[%s383 + $0x5c] sm:$0xf]
        %v408 = vld [vmem:[%s1] sm:$0xf]
        %v409 = vld [vmem:[%s1 + $0x4] sm:$0xf]
        %v410 = vld [vmem:[%s1 + $0x8] sm:$0xf]
        %v411 = vld [vmem:[%s1 + $0xc] sm:$0xf]
        %v412 = vld [vmem:[%s1 + $0x10] sm:$0xf]
        %v413 = vld [vmem:[%s1 + $0x14] sm:$0xf]
        %v414 = vld [vmem:[%s1 + $0x18] sm:$0xf]
        %v415 = vld [vmem:[%s1 + $0x1c] sm:$0xf]
        %v416 = vld [vmem:[%s1 + $0x20] sm:$0xf]
        %v417 = vld [vmem:[%s1 + $0x24] sm:$0xf]
        %v418 = vld [vmem:[%s1 + $0x28] sm:$0xf]
        %v419 = vld [vmem:[%s1 + $0x2c] sm:$0xf]
        %v420 = vld [vmem:[%s1 + $0x30] sm:$0xf]
        %v421 = vld [vmem:[%s1 + $0x34] sm:$0xf]
        %v422 = vld [vmem:[%s1 + $0x38] sm:$0xf]
        %v423 = vld [vmem:[%s1 + $0x3c] sm:$0xf]
        %v424 = vld [vmem:[%s2] sm:$0x1]
        %v426 = vperm.slane %v424, 0
        %v452 = vunpack.c.l.b16 %v384
        %v453 = vunpack.c.l.b16 %v385
        %v454 = vunpack.c.l.b16 %v386
        %v455 = vunpack.c.l.b16 %v387
        %v456 = vunpack.c.l.b16 %v388
        %v457 = vunpack.c.l.b16 %v389
        %v458 = vunpack.c.l.b16 %v390
        %v459 = vunpack.c.l.b16 %v391
        %v460 = vunpack.c.l.b16 %v392
        %v461 = vunpack.c.l.b16 %v393
        %v462 = vunpack.c.l.b16 %v394
        %v463 = vunpack.c.l.b16 %v395
        %v464 = vunpack.c.l.b16 %v396
        %v465 = vunpack.c.l.b16 %v397
        %v466 = vunpack.c.l.b16 %v398
        %v467 = vunpack.c.l.b16 %v399
        %v468 = vunpack.c.l.b16 %v400
        %v469 = vunpack.c.l.b16 %v401
        %v470 = vunpack.c.l.b16 %v402
        %v471 = vunpack.c.l.b16 %v403
        %v472 = vunpack.c.l.b16 %v404
        %v473 = vunpack.c.l.b16 %v405
        %v474 = vunpack.c.l.b16 %v406
        %v475 = vunpack.c.l.b16 %v407
        %v476 = vpack.c.b16 %v453, %v452
        %v477 = vpack.c.b16 %v455, %v454
        %v478 = vpack.c.b16 %v457, %v456
        %v479 = vpack.c.b16 %v459, %v458
        %v480 = vpack.c.b16 %v461, %v460
        %v481 = vpack.c.b16 %v463, %v462
        %v482 = vpack.c.b16 %v465, %v464
        %v483 = vpack.c.b16 %v467, %v466
        %v484 = vpack.c.b16 %v469, %v468
        %v485 = vpack.c.b16 %v471, %v470
        %v486 = vpack.c.b16 %v473, %v472
        %v487 = vpack.c.b16 %v475, %v474
        %v516 = vunpack.c.l.b16 %v408
        %v517 = vunpack.c.l.b16 %v409
        %v518 = vunpack.c.l.b16 %v410
        %v519 = vunpack.c.l.b16 %v411
        %v520 = vunpack.c.l.b16 %v412
        %v521 = vunpack.c.l.b16 %v413
        %v522 = vunpack.c.l.b16 %v414
        %v523 = vunpack.c.l.b16 %v415
        %v524 = vunpack.c.l.b16 %v416
        %v525 = vunpack.c.l.b16 %v417
        %v526 = vunpack.c.l.b16 %v418
        %v527 = vunpack.c.l.b16 %v419
        %v528 = vunpack.c.l.b16 %v420
        %v529 = vunpack.c.l.b16 %v421
        %v530 = vunpack.c.l.b16 %v422
        %v531 = vunpack.c.l.b16 %v423
        %v532 = vpack.c.b16 %v517, %v516
        %v533 = vpack.c.b16 %v519, %v518
        %v534 = vpack.c.b16 %v521, %v520
        %v535 = vpack.c.b16 %v523, %v522
        %v536 = vpack.c.b16 %v525, %v524
        %v537 = vpack.c.b16 %v527, %v526
        %v538 = vpack.c.b16 %v529, %v528
        %v539 = vpack.c.b16 %v531, %v530
        %548 = vmatpush.bf16.msra.mxu0 %v539
        %549 = vmatpush.bf16.msra.mxu0 %v538
        %550 = vmatpush.bf16.msra.mxu0 %v537
        %551 = vmatpush.bf16.msra.mxu0 %v536
        %552 = vmatpush.bf16.msra.mxu0 %v535
        %553 = vmatpush.bf16.msra.mxu0 %v534
        %554 = vmatpush.bf16.msra.mxu0 %v533
        %555 = vmatpush.bf16.msra.mxu0 %v532
        %556 = vmatmul.bf16.gmra.mxu0 %v476
        %v557 = vpop.f32.mrf.mxu0
        %v558 = vadd.f32 %v426, %v557
        %v559 = vpop.f32.mrf.mxu0
        %v560 = vadd.f32 %v426, %v559
        %561 = vmatmul.bf16.gmra.mxu0 %v477
        %v562 = vpop.f32.mrf.mxu0
        %v563 = vadd.f32 %v426, %v562
        %v564 = vpop.f32.mrf.mxu0
        %v565 = vadd.f32 %v426, %v564
        %566 = vmatmul.bf16.gmra.mxu0 %v478
        %v567 = vpop.f32.mrf.mxu0
        %v568 = vadd.f32 %v426, %v567
        %v569 = vpop.f32.mrf.mxu0
        %v570 = vadd.f32 %v426, %v569
        %571 = vmatmul.bf16.gmra.mxu0 %v479
        %v572 = vpop.f32.mrf.mxu0
        %v573 = vadd.f32 %v426, %v572
        %v574 = vpop.f32.mrf.mxu0
        %v575 = vadd.f32 %v426, %v574
        %576 = vmatmul.bf16.gmra.mxu0 %v480
        %v577 = vpop.f32.mrf.mxu0
        %v578 = vadd.f32 %v426, %v577
        %v579 = vpop.f32.mrf.mxu0
        %v580 = vadd.f32 %v426, %v579
        %581 = vmatmul.bf16.gmra.mxu0 %v481
        %v582 = vpop.f32.mrf.mxu0
        %v583 = vadd.f32 %v426, %v582
        %v584 = vpop.f32.mrf.mxu0
        %v585 = vadd.f32 %v426, %v584
        %586 = vmatmul.bf16.gmra.mxu0 %v482
        %v587 = vpop.f32.mrf.mxu0
        %v588 = vadd.f32 %v426, %v587
        %v589 = vpop.f32.mrf.mxu0
        %v590 = vadd.f32 %v426, %v589
        %591 = vmatmul.bf16.gmra.mxu0 %v483
        %v592 = vpop.f32.mrf.mxu0
        %v593 = vadd.f32 %v426, %v592
        %v594 = vpop.f32.mrf.mxu0
        %v595 = vadd.f32 %v426, %v594
        %596 = vmatmul.bf16.gmra.mxu0 %v484
        %v597 = vpop.f32.mrf.mxu0
        %v598 = vadd.f32 %v426, %v597
        %v599 = vpop.f32.mrf.mxu0
        %v600 = vadd.f32 %v426, %v599
        %601 = vmatmul.bf16.gmra.mxu0 %v485
        %v602 = vpop.f32.mrf.mxu0
        %v603 = vadd.f32 %v426, %v602
        %v604 = vpop.f32.mrf.mxu0
        %v605 = vadd.f32 %v426, %v604
        %606 = vmatmul.bf16.gmra.mxu0 %v486
        %v607 = vpop.f32.mrf.mxu0
        %v608 = vadd.f32 %v426, %v607
        %v609 = vpop.f32.mrf.mxu0
        %v610 = vadd.f32 %v426, %v609
        %611 = vmatmul.bf16.gmra.mxu0 %v487
        %v612 = vpop.f32.mrf.mxu0
        %v613 = vadd.f32 %v426, %v612
        %v614 = vpop.f32.mrf.mxu0
        %v615 = vadd.f32 %v426, %v614
        %616 = vdwg.mxu0
        %v617 = vmax.f32 %v558, 0.0
        %v618 = vmax.f32 %v560, 0.0
        %v619 = vmax.f32 %v563, 0.0
        %v620 = vmax.f32 %v565, 0.0
        %v621 = vmax.f32 %v568, 0.0
        %v622 = vmax.f32 %v570, 0.0
        %v623 = vmax.f32 %v573, 0.0
        %v624 = vmax.f32 %v575, 0.0
        %v625 = vmax.f32 %v578, 0.0
        %v626 = vmax.f32 %v580, 0.0
        %v627 = vmax.f32 %v583, 0.0
        %v628 = vmax.f32 %v585, 0.0
        %v629 = vmax.f32 %v588, 0.0
        %v630 = vmax.f32 %v590, 0.0
        %v631 = vmax.f32 %v593, 0.0
        %v632 = vmax.f32 %v595, 0.0
        %v633 = vmax.f32 %v598, 0.0
        %v634 = vmax.f32 %v600, 0.0
        %v635 = vmax.f32 %v603, 0.0
        %v636 = vmax.f32 %v605, 0.0
        %v637 = vmax.f32 %v608, 0.0
        %v638 = vmax.f32 %v610, 0.0
        %v639 = vmax.f32 %v613, 0.0
        %v640 = vmax.f32 %v615, 0.0
        %v641 = vmax.f32 %v617, %v620
        %v642 = vmax.f32 %v618, %v621
        %v643 = vmax.f32 %v619, %v622
        %v644 = vmax.f32 %v623, %v626
        %v645 = vmax.f32 %v624, %v627
        %v646 = vmax.f32 %v625, %v628
        %v647 = vmax.f32 %v629, %v632
        %v648 = vmax.f32 %v630, %v633
        %v649 = vmax.f32 %v631, %v634
        %v650 = vmax.f32 %v635, %v638
        %v651 = vmax.f32 %v636, %v639
        %v652 = vmax.f32 %v637, %v640
        %v665 = vrot.slane %v641, 2
        %v666 = vrot.slane %v641, 4
        %v667 = vrot.slane %v641, 6
        %v668 = vrot.slane %v642, 2
        %v669 = vrot.slane %v642, 4
        %v670 = vrot.slane %v642, 6
        %v671 = vrot.slane %v643, 2
        %v672 = vrot.slane %v643, 4
        %v673 = vrot.slane %v643, 6
        %v674 = vrot.slane %v644, 2
        %v675 = vrot.slane %v644, 4
        %v676 = vrot.slane %v644, 6
        %v677 = vrot.slane %v645, 2
        %v678 = vrot.slane %v645, 4
        %v679 = vrot.slane %v645, 6
        %v680 = vrot.slane %v646, 2
        %v681 = vrot.slane %v646, 4
        %v682 = vrot.slane %v646, 6
        %v683 = vrot.slane %v647, 2
        %v684 = vrot.slane %v647, 4
        %v685 = vrot.slane %v647, 6
        %v686 = vrot.slane %v648, 2
        %v687 = vrot.slane %v648, 4
        %v688 = vrot.slane %v648, 6
        %v689 = vrot.slane %v649, 2
        %v690 = vrot.slane %v649, 4
        %v691 = vrot.slane %v649, 6
        %v692 = vrot.slane %v650, 2
        %v693 = vrot.slane %v650, 4
        %v694 = vrot.slane %v650, 6
        %v695 = vrot.slane %v651, 2
        %v696 = vrot.slane %v651, 4
        %v697 = vrot.slane %v651, 6
        %v698 = vrot.slane %v652, 2
        %v699 = vrot.slane %v652, 4
        %v700 = vrot.slane %v652, 6
        %v737 = vrot.slane %v641, 7
        %v738 = vrot.slane %v737, 2
        %v739 = vrot.slane %v665, 7
        %v740 = vrot.slane %v739, 2
        %v741 = vrot.slane %v666, 7
        %v742 = vrot.slane %v741, 2
        %v743 = vrot.slane %v667, 7
        %v744 = vrot.slane %v743, 2
        %v745 = vrot.slane %v642, 7
        %v746 = vrot.slane %v745, 2
        %v747 = vrot.slane %v668, 7
        %v748 = vrot.slane %v747, 2
        %v749 = vrot.slane %v669, 7
        %v750 = vrot.slane %v749, 2
        %v751 = vrot.slane %v670, 7
        %v752 = vrot.slane %v751, 2
        %v753 = vrot.slane %v643, 7
        %v754 = vrot.slane %v753, 2
        %v755 = vrot.slane %v671, 7
        %v756 = vrot.slane %v755, 2
        %v757 = vrot.slane %v672, 7
        %v758 = vrot.slane %v757, 2
        %v759 = vrot.slane %v673, 7
        %v760 = vrot.slane %v759, 2
        %v761 = vrot.slane %v644, 7
        %v762 = vrot.slane %v761, 2
        %v763 = vrot.slane %v674, 7
        %v764 = vrot.slane %v763, 2
        %v765 = vrot.slane %v675, 7
        %v766 = vrot.slane %v765, 2
        %v767 = vrot.slane %v676, 7
        %v768 = vrot.slane %v767, 2
        %v769 = vrot.slane %v645, 7
        %v770 = vrot.slane %v769, 2
        %v771 = vrot.slane %v677, 7
        %v772 = vrot.slane %v771, 2
        %v773 = vrot.slane %v678, 7
        %v774 = vrot.slane %v773, 2
        %v775 = vrot.slane %v679, 7
        %v776 = vrot.slane %v775, 2
        %v777 = vrot.slane %v646, 7
        %v778 = vrot.slane %v777, 2
        %v779 = vrot.slane %v680, 7
        %v780 = vrot.slane %v779, 2
        %v781 = vrot.slane %v681, 7
        %v782 = vrot.slane %v781, 2
        %v783 = vrot.slane %v682, 7
        %v784 = vrot.slane %v783, 2
        %v785 = vrot.slane %v647, 7
        %v786 = vrot.slane %v785, 2
        %v787 = vrot.slane %v683, 7
        %v788 = vrot.slane %v787, 2
        %v789 = vrot.slane %v684, 7
        %v790 = vrot.slane %v789, 2
        %v791 = vrot.slane %v685, 7
        %v792 = vrot.slane %v791, 2
        %v793 = vrot.slane %v648, 7
        %v794 = vrot.slane %v793, 2
        %v795 = vrot.slane %v686, 7
        %v796 = vrot.slane %v795, 2
        %v797 = vrot.slane %v687, 7
        %v798 = vrot.slane %v797, 2
        %v799 = vrot.slane %v688, 7
        %v800 = vrot.slane %v799, 2
        %v801 = vrot.slane %v649, 7
        %v802 = vrot.slane %v801, 2
        %v803 = vrot.slane %v689, 7
        %v804 = vrot.slane %v803, 2
        %v805 = vrot.slane %v690, 7
        %v806 = vrot.slane %v805, 2
        %v807 = vrot.slane %v691, 7
        %v808 = vrot.slane %v807, 2
        %v809 = vrot.slane %v650, 7
        %v810 = vrot.slane %v809, 2
        %v811 = vrot.slane %v692, 7
        %v812 = vrot.slane %v811, 2
        %v813 = vrot.slane %v693, 7
        %v814 = vrot.slane %v813, 2
        %v815 = vrot.slane %v694, 7
        %v816 = vrot.slane %v815, 2
        %v817 = vrot.slane %v651, 7
        %v818 = vrot.slane %v817, 2
        %v819 = vrot.slane %v695, 7
        %v820 = vrot.slane %v819, 2
        %v821 = vrot.slane %v696, 7
        %v822 = vrot.slane %v821, 2
        %v823 = vrot.slane %v697, 7
        %v824 = vrot.slane %v823, 2
        %v825 = vrot.slane %v652, 7
        %v826 = vrot.slane %v825, 2
        %v827 = vrot.slane %v698, 7
        %v828 = vrot.slane %v827, 2
        %v829 = vrot.slane %v699, 7
        %v830 = vrot.slane %v829, 2
        %v831 = vrot.slane %v700, 7
        %v832 = vrot.slane %v831, 2
        %v881 = vmax.f32 %v641, %v738
        %v882 = vmax.f32 %v665, %v740
        %v883 = vmax.f32 %v666, %v742
        %v884 = vmax.f32 %v667, %v744
        %v885 = vmax.f32 %v642, %v746
        %v886 = vmax.f32 %v668, %v748
        %v887 = vmax.f32 %v669, %v750
        %v888 = vmax.f32 %v670, %v752
        %v889 = vmax.f32 %v643, %v754
        %v890 = vmax.f32 %v671, %v756
        %v891 = vmax.f32 %v672, %v758
        %v892 = vmax.f32 %v673, %v760
        %v893 = vmax.f32 %v644, %v762
        %v894 = vmax.f32 %v674, %v764
        %v895 = vmax.f32 %v675, %v766
        %v896 = vmax.f32 %v676, %v768
        %v897 = vmax.f32 %v645, %v770
        %v898 = vmax.f32 %v677, %v772
        %v899 = vmax.f32 %v678, %v774
        %v900 = vmax.f32 %v679, %v776
        %v901 = vmax.f32 %v646, %v778
        %v902 = vmax.f32 %v680, %v780
        %v903 = vmax.f32 %v681, %v782
        %v904 = vmax.f32 %v682, %v784
        %v905 = vmax.f32 %v647, %v786
        %v906 = vmax.f32 %v683, %v788
        %v907 = vmax.f32 %v684, %v790
        %v908 = vmax.f32 %v685, %v792
        %v909 = vmax.f32 %v648, %v794
        %v910 = vmax.f32 %v686, %v796
        %v911 = vmax.f32 %v687, %v798
        %v912 = vmax.f32 %v688, %v800
        %v913 = vmax.f32 %v649, %v802
        %v914 = vmax.f32 %v689, %v804
        %v915 = vmax.f32 %v690, %v806
        %v916 = vmax.f32 %v691, %v808
        %v917 = vmax.f32 %v650, %v810
        %v918 = vmax.f32 %v692, %v812
        %v919 = vmax.f32 %v693, %v814
        %v920 = vmax.f32 %v694, %v816
        %v921 = vmax.f32 %v651, %v818
        %v922 = vmax.f32 %v695, %v820
        %v923 = vmax.f32 %v696, %v822
        %v924 = vmax.f32 %v697, %v824
        %v925 = vmax.f32 %v652, %v826
        %v926 = vmax.f32 %v698, %v828
        %v927 = vmax.f32 %v699, %v830
        %v928 = vmax.f32 %v700, %v832
        %v977 = vperm.slane %v881, 0
        %v978 = vperm.slane %v882, 0
        %v979 = vperm.slane %v883, 0
        %v980 = vperm.slane %v884, 0
        %v981 = vperm.slane %v885, 0
        %v982 = vperm.slane %v886, 0
        %v983 = vperm.slane %v887, 0
        %v984 = vperm.slane %v888, 0
        %v985 = vperm.slane %v889, 0
        %v986 = vperm.slane %v890, 0
        %v987 = vperm.slane %v891, 0
        %v988 = vperm.slane %v892, 0
        %v989 = vperm.slane %v893, 0
        %v990 = vperm.slane %v894, 0
        %v991 = vperm.slane %v895, 0
        %v992 = vperm.slane %v896, 0
        %v993 = vperm.slane %v897, 0
        %v994 = vperm.slane %v898, 0
        %v995 = vperm.slane %v899, 0
        %v996 = vperm.slane %v900, 0
        %v997 = vperm.slane %v901, 0
        %v998 = vperm.slane %v902, 0
        %v999 = vperm.slane %v903, 0
        %v1000 = vperm.slane %v904, 0
        %v1001 = vperm.slane %v905, 0
        %v1002 = vperm.slane %v906, 0
        %v1003 = vperm.slane %v907, 0
        %v1004 = vperm.slane %v908, 0
        %v1005 = vperm.slane %v909, 0
        %v1006 = vperm.slane %v910, 0
        %v1007 = vperm.slane %v911, 0
        %v1008 = vperm.slane %v912, 0
        %v1009 = vperm.slane %v913, 0
        %v1010 = vperm.slane %v914, 0
        %v1011 = vperm.slane %v915, 0
        %v1012 = vperm.slane %v916, 0
        %v1013 = vperm.slane %v917, 0
        %v1014 = vperm.slane %v918, 0
        %v1015 = vperm.slane %v919, 0
        %v1016 = vperm.slane %v920, 0
        %v1017 = vperm.slane %v921, 0
        %v1018 = vperm.slane %v922, 0
        %v1019 = vperm.slane %v923, 0
        %v1020 = vperm.slane %v924, 0
        %v1021 = vperm.slane %v925, 0
        %v1022 = vperm.slane %v926, 0
        %v1023 = vperm.slane %v927, 0
        %v1024 = vperm.slane %v928, 0
        %vm1025 = vcmask 1041409
        %v1026 = vsel %vm1025, %v978, %v977
        %vm1027 = vcmask 1042434
        %v1028 = vsel %vm1027, %v979, %v1026
        %vm1029 = vcmask 1043459
        %v1030 = vsel %vm1029, %v980, %v1028
        %vm1031 = vcmask 1044484
        %v1032 = vsel %vm1031, %v981, %v1030
        %vm1033 = vcmask 1045509
        %v1034 = vsel %vm1033, %v982, %v1032
        %vm1035 = vcmask 1046534
        %v1036 = vsel %vm1035, %v983, %v1034
        %vm1037 = vcmask 1047559
        %v1038 = vsel %vm1037, %v984, %v1036
        %v1039 = vsel %vm1025, %v986, %v985
        %v1040 = vsel %vm1027, %v987, %v1039
        %v1041 = vsel %vm1029, %v988, %v1040
        %v1042 = vsel %vm1025, %v990, %v989
        %v1043 = vsel %vm1027, %v991, %v1042
        %v1044 = vsel %vm1029, %v992, %v1043
        %v1045 = vsel %vm1031, %v993, %v1044
        %v1046 = vsel %vm1033, %v994, %v1045
        %v1047 = vsel %vm1035, %v995, %v1046
        %v1048 = vsel %vm1037, %v996, %v1047
        %v1049 = vsel %vm1025, %v998, %v997
        %v1050 = vsel %vm1027, %v999, %v1049
        %v1051 = vsel %vm1029, %v1000, %v1050
        %v1052 = vsel %vm1025, %v1002, %v1001
        %v1053 = vsel %vm1027, %v1003, %v1052
        %v1054 = vsel %vm1029, %v1004, %v1053
        %v1055 = vsel %vm1031, %v1005, %v1054
        %v1056 = vsel %vm1033, %v1006, %v1055
        %v1057 = vsel %vm1035, %v1007, %v1056
        %v1058 = vsel %vm1037, %v1008, %v1057
        %v1059 = vsel %vm1025, %v1010, %v1009
        %v1060 = vsel %vm1027, %v1011, %v1059
        %v1061 = vsel %vm1029, %v1012, %v1060
        %v1062 = vsel %vm1025, %v1014, %v1013
        %v1063 = vsel %vm1027, %v1015, %v1062
        %v1064 = vsel %vm1029, %v1016, %v1063
        %v1065 = vsel %vm1031, %v1017, %v1064
        %v1066 = vsel %vm1033, %v1018, %v1065
        %v1067 = vsel %vm1035, %v1019, %v1066
        %v1068 = vsel %vm1037, %v1020, %v1067
        %v1069 = vsel %vm1025, %v1022, %v1021
        %v1070 = vsel %vm1027, %v1023, %v1069
        %v1071 = vsel %vm1029, %v1024, %v1070
        %1080 = vst [vmem:[#allocation2] sm:$0xff] %v1038
        %1081 = vst [vmem:[#allocation2 + $0x8] sm:$0xf] %v1041
        %1082 = vst [vmem:[#allocation2 + $0x10] sm:$0xff] %v1048
        %1083 = vst [vmem:[#allocation2 + $0x18] sm:$0xf] %v1051
        %1084 = vst [vmem:[#allocation2 + $0x20] sm:$0xff] %v1058
        %1085 = vst [vmem:[#allocation2 + $0x28] sm:$0xf] %v1061
        %1086 = vst [vmem:[#allocation2 + $0x30] sm:$0xff] %v1068
        %1087 = vst [vmem:[#allocation2 + $0x38] sm:$0xf] %v1071
        %v1088 = vld [vmem:[%s383 + $0x60] sm:$0xf]
        %v1089 = vld [vmem:[%s383 + $0x64] sm:$0xf]
        %v1090 = vld [vmem:[%s383 + $0x68] sm:$0xf]
        %v1091 = vld [vmem:[%s383 + $0x6c] sm:$0xf]
        %v1092 = vld [vmem:[%s383 + $0x70] sm:$0xf]
        %v1093 = vld [vmem:[%s383 + $0x74] sm:$0xf]
        %v1094 = vld [vmem:[%s383 + $0x78] sm:$0xf]
        %v1095 = vld [vmem:[%s383 + $0x7c] sm:$0xf]
        %v1096 = vld [vmem:[%s383 + $0x80] sm:$0xf]
        %v1097 = vld [vmem:[%s383 + $0x84] sm:$0xf]
        %v1098 = vld [vmem:[%s383 + $0x88] sm:$0xf]
        %v1099 = vld [vmem:[%s383 + $0x8c] sm:$0xf]
        %v1100 = vld [vmem:[%s383 + $0x90] sm:$0xf]
        %v1101 = vld [vmem:[%s383 + $0x94] sm:$0xf]
        %v1102 = vld [vmem:[%s383 + $0x98] sm:$0xf]
        %v1103 = vld [vmem:[%s383 + $0x9c] sm:$0xf]
        %v1104 = vld [vmem:[%s383 + $0xa0] sm:$0xf]
        %v1105 = vld [vmem:[%s383 + $0xa4] sm:$0xf]
        %v1106 = vld [vmem:[%s383 + $0xa8] sm:$0xf]
        %v1107 = vld [vmem:[%s383 + $0xac] sm:$0xf]
        %v1108 = vld [vmem:[%s383 + $0xb0] sm:$0xf]
        %v1109 = vld [vmem:[%s383 + $0xb4] sm:$0xf]
        %v1110 = vld [vmem:[%s383 + $0xb8] sm:$0xf]
        %v1111 = vld [vmem:[%s383 + $0xbc] sm:$0xf]
        %v1112 = vld [vmem:[%s1] sm:$0xf]
        %v1113 = vld [vmem:[%s1 + $0x4] sm:$0xf]
        %v1114 = vld [vmem:[%s1 + $0x8] sm:$0xf]
        %v1115 = vld [vmem:[%s1 + $0xc] sm:$0xf]
        %v1116 = vld [vmem:[%s1 + $0x10] sm:$0xf]
        %v1117 = vld [vmem:[%s1 + $0x14] sm:$0xf]
        %v1118 = vld [vmem:[%s1 + $0x18] sm:$0xf]
        %v1119 = vld [vmem:[%s1 + $0x1c] sm:$0xf]
        %v1120 = vld [vmem:[%s1 + $0x20] sm:$0xf]
        %v1121 = vld [vmem:[%s1 + $0x24] sm:$0xf]
        %v1122 = vld [vmem:[%s1 + $0x28] sm:$0xf]
        %v1123 = vld [vmem:[%s1 + $0x2c] sm:$0xf]
        %v1124 = vld [vmem:[%s1 + $0x30] sm:$0xf]
        %v1125 = vld [vmem:[%s1 + $0x34] sm:$0xf]
        %v1126 = vld [vmem:[%s1 + $0x38] sm:$0xf]
        %v1127 = vld [vmem:[%s1 + $0x3c] sm:$0xf]
        %v1128 = vld [vmem:[%s2] sm:$0x1]
        %v1130 = vperm.slane %v1128, 0
        %v1156 = vunpack.c.l.b16 %v1088
        %v1157 = vunpack.c.l.b16 %v1089
        %v1158 = vunpack.c.l.b16 %v1090
        %v1159 = vunpack.c.l.b16 %v1091
        %v1160 = vunpack.c.l.b16 %v1092
        %v1161 = vunpack.c.l.b16 %v1093
        %v1162 = vunpack.c.l.b16 %v1094
        %v1163 = vunpack.c.l.b16 %v1095
        %v1164 = vunpack.c.l.b16 %v1096
        %v1165 = vunpack.c.l.b16 %v1097
        %v1166 = vunpack.c.l.b16 %v1098
        %v1167 = vunpack.c.l.b16 %v1099
        %v1168 = vunpack.c.l.b16 %v1100
        %v1169 = vunpack.c.l.b16 %v1101
        %v1170 = vunpack.c.l.b16 %v1102
        %v1171 = vunpack.c.l.b16 %v1103
        %v1172 = vunpack.c.l.b16 %v1104
        %v1173 = vunpack.c.l.b16 %v1105
        %v1174 = vunpack.c.l.b16 %v1106
        %v1175 = vunpack.c.l.b16 %v1107
        %v1176 = vunpack.c.l.b16 %v1108
        %v1177 = vunpack.c.l.b16 %v1109
        %v1178 = vunpack.c.l.b16 %v1110
        %v1179 = vunpack.c.l.b16 %v1111
        %v1180 = vpack.c.b16 %v1157, %v1156
        %v1181 = vpack.c.b16 %v1159, %v1158
        %v1182 = vpack.c.b16 %v1161, %v1160
        %v1183 = vpack.c.b16 %v1163, %v1162
        %v1184 = vpack.c.b16 %v1165, %v1164
        %v1185 = vpack.c.b16 %v1167, %v1166
        %v1186 = vpack.c.b16 %v1169, %v1168
        %v1187 = vpack.c.b16 %v1171, %v1170
        %v1188 = vpack.c.b16 %v1173, %v1172
        %v1189 = vpack.c.b16 %v1175, %v1174
        %v1190 = vpack.c.b16 %v1177, %v1176
        %v1191 = vpack.c.b16 %v1179, %v1178
        %v1220 = vunpack.c.l.b16 %v1112
        %v1221 = vunpack.c.l.b16 %v1113
        %v1222 = vunpack.c.l.b16 %v1114
        %v1223 = vunpack.c.l.b16 %v1115
        %v1224 = vunpack.c.l.b16 %v1116
        %v1225 = vunpack.c.l.b16 %v1117
        %v1226 = vunpack.c.l.b16 %v1118
        %v1227 = vunpack.c.l.b16 %v1119
        %v1228 = vunpack.c.l.b16 %v1120
        %v1229 = vunpack.c.l.b16 %v1121
        %v1230 = vunpack.c.l.b16 %v1122
        %v1231 = vunpack.c.l.b16 %v1123
        %v1232 = vunpack.c.l.b16 %v1124
        %v1233 = vunpack.c.l.b16 %v1125
        %v1234 = vunpack.c.l.b16 %v1126
        %v1235 = vunpack.c.l.b16 %v1127
        %v1236 = vpack.c.b16 %v1221, %v1220
        %v1237 = vpack.c.b16 %v1223, %v1222
        %v1238 = vpack.c.b16 %v1225, %v1224
        %v1239 = vpack.c.b16 %v1227, %v1226
        %v1240 = vpack.c.b16 %v1229, %v1228
        %v1241 = vpack.c.b16 %v1231, %v1230
        %v1242 = vpack.c.b16 %v1233, %v1232
        %v1243 = vpack.c.b16 %v1235, %v1234
        %1252 = vmatpush.bf16.msra.mxu0 %v1243
        %1253 = vmatpush.bf16.msra.mxu0 %v1242
        %1254 = vmatpush.bf16.msra.mxu0 %v1241
        %1255 = vmatpush.bf16.msra.mxu0 %v1240
        %1256 = vmatpush.bf16.msra.mxu0 %v1239
        %1257 = vmatpush.bf16.msra.mxu0 %v1238
        %1258 = vmatpush.bf16.msra.mxu0 %v1237
        %1259 = vmatpush.bf16.msra.mxu0 %v1236
        %1260 = vmatmul.bf16.gmra.mxu0 %v1180
        %v1261 = vpop.f32.mrf.mxu0
        %v1262 = vadd.f32 %v1130, %v1261
        %v1263 = vpop.f32.mrf.mxu0
        %v1264 = vadd.f32 %v1130, %v1263
        %1265 = vmatmul.bf16.gmra.mxu0 %v1181
        %v1266 = vpop.f32.mrf.mxu0
        %v1267 = vadd.f32 %v1130, %v1266
        %v1268 = vpop.f32.mrf.mxu0
        %v1269 = vadd.f32 %v1130, %v1268
        %1270 = vmatmul.bf16.gmra.mxu0 %v1182
        %v1271 = vpop.f32.mrf.mxu0
        %v1272 = vadd.f32 %v1130, %v1271
        %v1273 = vpop.f32.mrf.mxu0
        %v1274 = vadd.f32 %v1130, %v1273
        %1275 = vmatmul.bf16.gmra.mxu0 %v1183
        %v1276 = vpop.f32.mrf.mxu0
        %v1277 = vadd.f32 %v1130, %v1276
        %v1278 = vpop.f32.mrf.mxu0
        %v1279 = vadd.f32 %v1130, %v1278
        %1280 = vmatmul.bf16.gmra.mxu0 %v1184
        %v1281 = vpop.f32.mrf.mxu0
        %v1282 = vadd.f32 %v1130, %v1281
        %v1283 = vpop.f32.mrf.mxu0
        %v1284 = vadd.f32 %v1130, %v1283
        %1285 = vmatmul.bf16.gmra.mxu0 %v1185
        %v1286 = vpop.f32.mrf.mxu0
        %v1287 = vadd.f32 %v1130, %v1286
        %v1288 = vpop.f32.mrf.mxu0
        %v1289 = vadd.f32 %v1130, %v1288
        %1290 = vmatmul.bf16.gmra.mxu0 %v1186
        %v1291 = vpop.f32.mrf.mxu0
        %v1292 = vadd.f32 %v1130, %v1291
        %v1293 = vpop.f32.mrf.mxu0
        %v1294 = vadd.f32 %v1130, %v1293
        %1295 = vmatmul.bf16.gmra.mxu0 %v1187
        %v1296 = vpop.f32.mrf.mxu0
        %v1297 = vadd.f32 %v1130, %v1296
        %v1298 = vpop.f32.mrf.mxu0
        %v1299 = vadd.f32 %v1130, %v1298
        %1300 = vmatmul.bf16.gmra.mxu0 %v1188
        %v1301 = vpop.f32.mrf.mxu0
        %v1302 = vadd.f32 %v1130, %v1301
        %v1303 = vpop.f32.mrf.mxu0
        %v1304 = vadd.f32 %v1130, %v1303
        %1305 = vmatmul.bf16.gmra.mxu0 %v1189
        %v1306 = vpop.f32.mrf.mxu0
        %v1307 = vadd.f32 %v1130, %v1306
        %v1308 = vpop.f32.mrf.mxu0
        %v1309 = vadd.f32 %v1130, %v1308
        %1310 = vmatmul.bf16.gmra.mxu0 %v1190
        %v1311 = vpop.f32.mrf.mxu0
        %v1312 = vadd.f32 %v1130, %v1311
        %v1313 = vpop.f32.mrf.mxu0
        %v1314 = vadd.f32 %v1130, %v1313
        %1315 = vmatmul.bf16.gmra.mxu0 %v1191
        %v1316 = vpop.f32.mrf.mxu0
        %v1317 = vadd.f32 %v1130, %v1316
        %v1318 = vpop.f32.mrf.mxu0
        %v1319 = vadd.f32 %v1130, %v1318
        %1320 = vdwg.mxu0
        %v1321 = vmax.f32 %v1262, 0.0
        %v1322 = vmax.f32 %v1264, 0.0
        %v1323 = vmax.f32 %v1267, 0.0
        %v1324 = vmax.f32 %v1269, 0.0
        %v1325 = vmax.f32 %v1272, 0.0
        %v1326 = vmax.f32 %v1274, 0.0
        %v1327 = vmax.f32 %v1277, 0.0
        %v1328 = vmax.f32 %v1279, 0.0
        %v1329 = vmax.f32 %v1282, 0.0
        %v1330 = vmax.f32 %v1284, 0.0
        %v1331 = vmax.f32 %v1287, 0.0
        %v1332 = vmax.f32 %v1289, 0.0
        %v1333 = vmax.f32 %v1292, 0.0
        %v1334 = vmax.f32 %v1294, 0.0
        %v1335 = vmax.f32 %v1297, 0.0
        %v1336 = vmax.f32 %v1299, 0.0
        %v1337 = vmax.f32 %v1302, 0.0
        %v1338 = vmax.f32 %v1304, 0.0
        %v1339 = vmax.f32 %v1307, 0.0
        %v1340 = vmax.f32 %v1309, 0.0
        %v1341 = vmax.f32 %v1312, 0.0
        %v1342 = vmax.f32 %v1314, 0.0
        %v1343 = vmax.f32 %v1317, 0.0
        %v1344 = vmax.f32 %v1319, 0.0
        %v1345 = vmax.f32 %v1321, %v1324
        %v1346 = vmax.f32 %v1322, %v1325
        %v1347 = vmax.f32 %v1323, %v1326
        %v1348 = vmax.f32 %v1327, %v1330
        %v1349 = vmax.f32 %v1328, %v1331
        %v1350 = vmax.f32 %v1329, %v1332
        %v1351 = vmax.f32 %v1333, %v1336
        %v1352 = vmax.f32 %v1334, %v1337
        %v1353 = vmax.f32 %v1335, %v1338
        %v1354 = vmax.f32 %v1339, %v1342
        %v1355 = vmax.f32 %v1340, %v1343
        %v1356 = vmax.f32 %v1341, %v1344
        %v1369 = vrot.slane %v1345, 2
        %v1370 = vrot.slane %v1345, 4
        %v1371 = vrot.slane %v1345, 6
        %v1372 = vrot.slane %v1346, 2
        %v1373 = vrot.slane %v1346, 4
        %v1374 = vrot.slane %v1346, 6
        %v1375 = vrot.slane %v1347, 2
        %v1376 = vrot.slane %v1347, 4
        %v1377 = vrot.slane %v1347, 6
        %v1378 = vrot.slane %v1348, 2
        %v1379 = vrot.slane %v1348, 4
        %v1380 = vrot.slane %v1348, 6
        %v1381 = vrot.slane %v1349, 2
        %v1382 = vrot.slane %v1349, 4
        %v1383 = vrot.slane %v1349, 6
        %v1384 = vrot.slane %v1350, 2
        %v1385 = vrot.slane %v1350, 4
        %v1386 = vrot.slane %v1350, 6
        %v1387 = vrot.slane %v1351, 2
        %v1388 = vrot.slane %v1351, 4
        %v1389 = vrot.slane %v1351, 6
        %v1390 = vrot.slane %v1352, 2
        %v1391 = vrot.slane %v1352, 4
        %v1392 = vrot.slane %v1352, 6
        %v1393 = vrot.slane %v1353, 2
        %v1394 = vrot.slane %v1353, 4
        %v1395 = vrot.slane %v1353, 6
        %v1396 = vrot.slane %v1354, 2
        %v1397 = vrot.slane %v1354, 4
        %v1398 = vrot.slane %v1354, 6
        %v1399 = vrot.slane %v1355, 2
        %v1400 = vrot.slane %v1355, 4
        %v1401 = vrot.slane %v1355, 6
        %v1402 = vrot.slane %v1356, 2
        %v1403 = vrot.slane %v1356, 4
        %v1404 = vrot.slane %v1356, 6
        %v1441 = vrot.slane %v1345, 7
        %v1442 = vrot.slane %v1441, 2
        %v1443 = vrot.slane %v1369, 7
        %v1444 = vrot.slane %v1443, 2
        %v1445 = vrot.slane %v1370, 7
        %v1446 = vrot.slane %v1445, 2
        %v1447 = vrot.slane %v1371, 7
        %v1448 = vrot.slane %v1447, 2
        %v1449 = vrot.slane %v1346, 7
        %v1450 = vrot.slane %v1449, 2
        %v1451 = vrot.slane %v1372, 7
        %v1452 = vrot.slane %v1451, 2
        %v1453 = vrot.slane %v1373, 7
        %v1454 = vrot.slane %v1453, 2
        %v1455 = vrot.slane %v1374, 7
        %v1456 = vrot.slane %v1455, 2
        %v1457 = vrot.slane %v1347, 7
        %v1458 = vrot.slane %v1457, 2
        %v1459 = vrot.slane %v1375, 7
        %v1460 = vrot.slane %v1459, 2
        %v1461 = vrot.slane %v1376, 7
        %v1462 = vrot.slane %v1461, 2
        %v1463 = vrot.slane %v1377, 7
        %v1464 = vrot.slane %v1463, 2
        %v1465 = vrot.slane %v1348, 7
        %v1466 = vrot.slane %v1465, 2
        %v1467 = vrot.slane %v1378, 7
        %v1468 = vrot.slane %v1467, 2
        %v1469 = vrot.slane %v1379, 7
        %v1470 = vrot.slane %v1469, 2
        %v1471 = vrot.slane %v1380, 7
        %v1472 = vrot.slane %v1471, 2
        %v1473 = vrot.slane %v1349, 7
        %v1474 = vrot.slane %v1473, 2
        %v1475 = vrot.slane %v1381, 7
        %v1476 = vrot.slane %v1475, 2
        %v1477 = vrot.slane %v1382, 7
        %v1478 = vrot.slane %v1477, 2
        %v1479 = vrot.slane %v1383, 7
        %v1480 = vrot.slane %v1479, 2
        %v1481 = vrot.slane %v1350, 7
        %v1482 = vrot.slane %v1481, 2
        %v1483 = vrot.slane %v1384, 7
        %v1484 = vrot.slane %v1483, 2
        %v1485 = vrot.slane %v1385, 7
        %v1486 = vrot.slane %v1485, 2
        %v1487 = vrot.slane %v1386, 7
        %v1488 = vrot.slane %v1487, 2
        %v1489 = vrot.slane %v1351, 7
        %v1490 = vrot.slane %v1489, 2
        %v1491 = vrot.slane %v1387, 7
        %v1492 = vrot.slane %v1491, 2
        %v1493 = vrot.slane %v1388, 7
        %v1494 = vrot.slane %v1493, 2
        %v1495 = vrot.slane %v1389, 7
        %v1496 = vrot.slane %v1495, 2
        %v1497 = vrot.slane %v1352, 7
        %v1498 = vrot.slane %v1497, 2
        %v1499 = vrot.slane %v1390, 7
        %v1500 = vrot.slane %v1499, 2
        %v1501 = vrot.slane %v1391, 7
        %v1502 = vrot.slane %v1501, 2
        %v1503 = vrot.slane %v1392, 7
        %v1504 = vrot.slane %v1503, 2
        %v1505 = vrot.slane %v1353, 7
        %v1506 = vrot.slane %v1505, 2
        %v1507 = vrot.slane %v1393, 7
        %v1508 = vrot.slane %v1507, 2
        %v1509 = vrot.slane %v1394, 7
        %v1510 = vrot.slane %v1509, 2
        %v1511 = vrot.slane %v1395, 7
        %v1512 = vrot.slane %v1511, 2
        %v1513 = vrot.slane %v1354, 7
        %v1514 = vrot.slane %v1513, 2
        %v1515 = vrot.slane %v1396, 7
        %v1516 = vrot.slane %v1515, 2
        %v1517 = vrot.slane %v1397, 7
        %v1518 = vrot.slane %v1517, 2
        %v1519 = vrot.slane %v1398, 7
        %v1520 = vrot.slane %v1519, 2
        %v1521 = vrot.slane %v1355, 7
        %v1522 = vrot.slane %v1521, 2
        %v1523 = vrot.slane %v1399, 7
        %v1524 = vrot.slane %v1523, 2
        %v1525 = vrot.slane %v1400, 7
        %v1526 = vrot.slane %v1525, 2
        %v1527 = vrot.slane %v1401, 7
        %v1528 = vrot.slane %v1527, 2
        %v1529 = vrot.slane %v1356, 7
        %v1530 = vrot.slane %v1529, 2
        %v1531 = vrot.slane %v1402, 7
        %v1532 = vrot.slane %v1531, 2
        %v1533 = vrot.slane %v1403, 7
        %v1534 = vrot.slane %v1533, 2
        %v1535 = vrot.slane %v1404, 7
        %v1536 = vrot.slane %v1535, 2
        %v1585 = vmax.f32 %v1345, %v1442
        %v1586 = vmax.f32 %v1369, %v1444
        %v1587 = vmax.f32 %v1370, %v1446
        %v1588 = vmax.f32 %v1371, %v1448
        %v1589 = vmax.f32 %v1346, %v1450
        %v1590 = vmax.f32 %v1372, %v1452
        %v1591 = vmax.f32 %v1373, %v1454
        %v1592 = vmax.f32 %v1374, %v1456
        %v1593 = vmax.f32 %v1347, %v1458
        %v1594 = vmax.f32 %v1375, %v1460
        %v1595 = vmax.f32 %v1376, %v1462
        %v1596 = vmax.f32 %v1377, %v1464
        %v1597 = vmax.f32 %v1348, %v1466
        %v1598 = vmax.f32 %v1378, %v1468
        %v1599 = vmax.f32 %v1379, %v1470
        %v1600 = vmax.f32 %v1380, %v1472
        %v1601 = vmax.f32 %v1349, %v1474
        %v1602 = vmax.f32 %v1381, %v1476
        %v1603 = vmax.f32 %v1382, %v1478
        %v1604 = vmax.f32 %v1383, %v1480
        %v1605 = vmax.f32 %v1350, %v1482
        %v1606 = vmax.f32 %v1384, %v1484
        %v1607 = vmax.f32 %v1385, %v1486
        %v1608 = vmax.f32 %v1386, %v1488
        %v1609 = vmax.f32 %v1351, %v1490
        %v1610 = vmax.f32 %v1387, %v1492
        %v1611 = vmax.f32 %v1388, %v1494
        %v1612 = vmax.f32 %v1389, %v1496
        %v1613 = vmax.f32 %v1352, %v1498
        %v1614 = vmax.f32 %v1390, %v1500
        %v1615 = vmax.f32 %v1391, %v1502
        %v1616 = vmax.f32 %v1392, %v1504
        %v1617 = vmax.f32 %v1353, %v1506
        %v1618 = vmax.f32 %v1393, %v1508
        %v1619 = vmax.f32 %v1394, %v1510
        %v1620 = vmax.f32 %v1395, %v1512
        %v1621 = vmax.f32 %v1354, %v1514
        %v1622 = vmax.f32 %v1396, %v1516
        %v1623 = vmax.f32 %v1397, %v1518
        %v1624 = vmax.f32 %v1398, %v1520
        %v1625 = vmax.f32 %v1355, %v1522
        %v1626 = vmax.f32 %v1399, %v1524
        %v1627 = vmax.f32 %v1400, %v1526
        %v1628 = vmax.f32 %v1401, %v1528
        %v1629 = vmax.f32 %v1356, %v1530
        %v1630 = vmax.f32 %v1402, %v1532
        %v1631 = vmax.f32 %v1403, %v1534
        %v1632 = vmax.f32 %v1404, %v1536
        %v1681 = vperm.slane %v1585, 0
        %v1682 = vperm.slane %v1586, 0
        %v1683 = vperm.slane %v1587, 0
        %v1684 = vperm.slane %v1588, 0
        %v1685 = vperm.slane %v1589, 0
        %v1686 = vperm.slane %v1590, 0
        %v1687 = vperm.slane %v1591, 0
        %v1688 = vperm.slane %v1592, 0
        %v1689 = vperm.slane %v1593, 0
        %v1690 = vperm.slane %v1594, 0
        %v1691 = vperm.slane %v1595, 0
        %v1692 = vperm.slane %v1596, 0
        %v1693 = vperm.slane %v1597, 0
        %v1694 = vperm.slane %v1598, 0
        %v1695 = vperm.slane %v1599, 0
        %v1696 = vperm.slane %v1600, 0
        %v1697 = vperm.slane %v1601, 0
        %v1698 = vperm.slane %v1602, 0
        %v1699 = vperm.slane %v1603, 0
        %v1700 = vperm.slane %v1604, 0
        %v1701 = vperm.slane %v1605, 0
        %v1702 = vperm.slane %v1606, 0
        %v1703 = vperm.slane %v1607, 0
        %v1704 = vperm.slane %v1608, 0
        %v1705 = vperm.slane %v1609, 0
        %v1706 = vperm.slane %v1610, 0
        %v1707 = vperm.slane %v1611, 0
        %v1708 = vperm.slane %v1612, 0
        %v1709 = vperm.slane %v1613, 0
        %v1710 = vperm.slane %v1614, 0
        %v1711 = vperm.slane %v1615, 0
        %v1712 = vperm.slane %v1616, 0
        %v1713 = vperm.slane %v1617, 0
        %v1714 = vperm.slane %v1618, 0
        %v1715 = vperm.slane %v1619, 0
        %v1716 = vperm.slane %v1620, 0
        %v1717 = vperm.slane %v1621, 0
        %v1718 = vperm.slane %v1622, 0
        %v1719 = vperm.slane %v1623, 0
        %v1720 = vperm.slane %v1624, 0
        %v1721 = vperm.slane %v1625, 0
        %v1722 = vperm.slane %v1626, 0
        %v1723 = vperm.slane %v1627, 0
        %v1724 = vperm.slane %v1628, 0
        %v1725 = vperm.slane %v1629, 0
        %v1726 = vperm.slane %v1630, 0
        %v1727 = vperm.slane %v1631, 0
        %v1728 = vperm.slane %v1632, 0
        %v1729 = vsel %vm1025, %v1682, %v1681
        %v1730 = vsel %vm1027, %v1683, %v1729
        %v1731 = vsel %vm1029, %v1684, %v1730
        %v1732 = vsel %vm1031, %v1685, %v1731
        %v1733 = vsel %vm1033, %v1686, %v1732
        %v1734 = vsel %vm1035, %v1687, %v1733
        %v1735 = vsel %vm1037, %v1688, %v1734
        %v1736 = vsel %vm1025, %v1690, %v1689
        %v1737 = vsel %vm1027, %v1691, %v1736
        %v1738 = vsel %vm1029, %v1692, %v1737
        %v1739 = vsel %vm1025, %v1694, %v1693
        %v1740 = vsel %vm1027, %v1695, %v1739
        %v1741 = vsel %vm1029, %v1696, %v1740
        %v1742 = vsel %vm1031, %v1697, %v1741
        %v1743 = vsel %vm1033, %v1698, %v1742
        %v1744 = vsel %vm1035, %v1699, %v1743
        %v1745 = vsel %vm1037, %v1700, %v1744
        %v1746 = vsel %vm1025, %v1702, %v1701
        %v1747 = vsel %vm1027, %v1703, %v1746
        %v1748 = vsel %vm1029, %v1704, %v1747
        %v1749 = vsel %vm1025, %v1706, %v1705
        %v1750 = vsel %vm1027, %v1707, %v1749
        %v1751 = vsel %vm1029, %v1708, %v1750
        %v1752 = vsel %vm1031, %v1709, %v1751
        %v1753 = vsel %vm1033, %v1710, %v1752
        %v1754 = vsel %vm1035, %v1711, %v1753
        %v1755 = vsel %vm1037, %v1712, %v1754
        %v1756 = vsel %vm1025, %v1714, %v1713
        %v1757 = vsel %vm1027, %v1715, %v1756
        %v1758 = vsel %vm1029, %v1716, %v1757
        %v1759 = vsel %vm1025, %v1718, %v1717
        %v1760 = vsel %vm1027, %v1719, %v1759
        %v1761 = vsel %vm1029, %v1720, %v1760
        %v1762 = vsel %vm1031, %v1721, %v1761
        %v1763 = vsel %vm1033, %v1722, %v1762
        %v1764 = vsel %vm1035, %v1723, %v1763
        %v1765 = vsel %vm1037, %v1724, %v1764
        %v1766 = vsel %vm1025, %v1726, %v1725
        %v1767 = vsel %vm1027, %v1727, %v1766
        %v1768 = vsel %vm1029, %v1728, %v1767
        %s1777 = scalar_lea.vmem [#allocation2], 64
        %1778 = vst [vmem:[%s1777] sm:$0xff] %v1735
        %1779 = vst [vmem:[%s1777 + $0x8] sm:$0xf] %v1738
        %1780 = vst [vmem:[%s1777 + $0x10] sm:$0xff] %v1745
        %1781 = vst [vmem:[%s1777 + $0x18] sm:$0xf] %v1748
        %1782 = vst [vmem:[%s1777 + $0x20] sm:$0xff] %v1755
        %1783 = vst [vmem:[%s1777 + $0x28] sm:$0xf] %v1758
        %1784 = vst [vmem:[%s1777 + $0x30] sm:$0xff] %v1765
        %1785 = vst [vmem:[%s1777 + $0x38] sm:$0xf] %v1768
        %v1786 = vld [vmem:[%s383 + $0xc0] sm:$0xf]
        %v1787 = vld [vmem:[%s383 + $0xc4] sm:$0xf]
        %v1788 = vld [vmem:[%s383 + $0xc8] sm:$0xf]
        %v1789 = vld [vmem:[%s383 + $0xcc] sm:$0xf]
        %v1790 = vld [vmem:[%s383 + $0xd0] sm:$0xf]
        %v1791 = vld [vmem:[%s383 + $0xd4] sm:$0xf]
        %v1792 = vld [vmem:[%s383 + $0xd8] sm:$0xf]
        %v1793 = vld [vmem:[%s383 + $0xdc] sm:$0xf]
        %v1794 = vld [vmem:[%s383 + $0xe0] sm:$0xf]
        %v1795 = vld [vmem:[%s383 + $0xe4] sm:$0xf]
        %v1796 = vld [vmem:[%s383 + $0xe8] sm:$0xf]
        %v1797 = vld [vmem:[%s383 + $0xec] sm:$0xf]
        %v1798 = vld [vmem:[%s383 + $0xf0] sm:$0xf]
        %v1799 = vld [vmem:[%s383 + $0xf4] sm:$0xf]
        %v1800 = vld [vmem:[%s383 + $0xf8] sm:$0xf]
        %v1801 = vld [vmem:[%s383 + $0xfc] sm:$0xf]
        %v1802 = vld [vmem:[%s383 + $0x100] sm:$0xf]
        %v1803 = vld [vmem:[%s383 + $0x104] sm:$0xf]
        %v1804 = vld [vmem:[%s383 + $0x108] sm:$0xf]
        %v1805 = vld [vmem:[%s383 + $0x10c] sm:$0xf]
        %v1806 = vld [vmem:[%s383 + $0x110] sm:$0xf]
        %v1807 = vld [vmem:[%s383 + $0x114] sm:$0xf]
        %v1808 = vld [vmem:[%s383 + $0x118] sm:$0xf]
        %v1809 = vld [vmem:[%s383 + $0x11c] sm:$0xf]
        %v1810 = vld [vmem:[%s1] sm:$0xf]
        %v1811 = vld [vmem:[%s1 + $0x4] sm:$0xf]
        %v1812 = vld [vmem:[%s1 + $0x8] sm:$0xf]
        %v1813 = vld [vmem:[%s1 + $0xc] sm:$0xf]
        %v1814 = vld [vmem:[%s1 + $0x10] sm:$0xf]
        %v1815 = vld [vmem:[%s1 + $0x14] sm:$0xf]
        %v1816 = vld [vmem:[%s1 + $0x18] sm:$0xf]
        %v1817 = vld [vmem:[%s1 + $0x1c] sm:$0xf]
        %v1818 = vld [vmem:[%s1 + $0x20] sm:$0xf]
        %v1819 = vld [vmem:[%s1 + $0x24] sm:$0xf]
        %v1820 = vld [vmem:[%s1 + $0x28] sm:$0xf]
        %v1821 = vld [vmem:[%s1 + $0x2c] sm:$0xf]
        %v1822 = vld [vmem:[%s1 + $0x30] sm:$0xf]
        %v1823 = vld [vmem:[%s1 + $0x34] sm:$0xf]
        %v1824 = vld [vmem:[%s1 + $0x38] sm:$0xf]
        %v1825 = vld [vmem:[%s1 + $0x3c] sm:$0xf]
        %v1826 = vld [vmem:[%s2] sm:$0x1]
        %v1828 = vperm.slane %v1826, 0
        %v1854 = vunpack.c.l.b16 %v1786
        %v1855 = vunpack.c.l.b16 %v1787
        %v1856 = vunpack.c.l.b16 %v1788
        %v1857 = vunpack.c.l.b16 %v1789
        %v1858 = vunpack.c.l.b16 %v1790
        %v1859 = vunpack.c.l.b16 %v1791
        %v1860 = vunpack.c.l.b16 %v1792
        %v1861 = vunpack.c.l.b16 %v1793
        %v1862 = vunpack.c.l.b16 %v1794
        %v1863 = vunpack.c.l.b16 %v1795
        %v1864 = vunpack.c.l.b16 %v1796
        %v1865 = vunpack.c.l.b16 %v1797
        %v1866 = vunpack.c.l.b16 %v1798
        %v1867 = vunpack.c.l.b16 %v1799
        %v1868 = vunpack.c.l.b16 %v1800
        %v1869 = vunpack.c.l.b16 %v1801
        %v1870 = vunpack.c.l.b16 %v1802
        %v1871 = vunpack.c.l.b16 %v1803
        %v1872 = vunpack.c.l.b16 %v1804
        %v1873 = vunpack.c.l.b16 %v1805
        %v1874 = vunpack.c.l.b16 %v1806
        %v1875 = vunpack.c.l.b16 %v1807
        %v1876 = vunpack.c.l.b16 %v1808
        %v1877 = vunpack.c.l.b16 %v1809
        %v1878 = vpack.c.b16 %v1855, %v1854
        %v1879 = vpack.c.b16 %v1857, %v1856
        %v1880 = vpack.c.b16 %v1859, %v1858
        %v1881 = vpack.c.b16 %v1861, %v1860
        %v1882 = vpack.c.b16 %v1863, %v1862
        %v1883 = vpack.c.b16 %v1865, %v1864
        %v1884 = vpack.c.b16 %v1867, %v1866
        %v1885 = vpack.c.b16 %v1869, %v1868
        %v1886 = vpack.c.b16 %v1871, %v1870
        %v1887 = vpack.c.b16 %v1873, %v1872
        %v1888 = vpack.c.b16 %v1875, %v1874
        %v1889 = vpack.c.b16 %v1877, %v1876
        %v1918 = vunpack.c.l.b16 %v1810
        %v1919 = vunpack.c.l.b16 %v1811
        %v1920 = vunpack.c.l.b16 %v1812
        %v1921 = vunpack.c.l.b16 %v1813
        %v1922 = vunpack.c.l.b16 %v1814
        %v1923 = vunpack.c.l.b16 %v1815
        %v1924 = vunpack.c.l.b16 %v1816
        %v1925 = vunpack.c.l.b16 %v1817
        %v1926 = vunpack.c.l.b16 %v1818
        %v1927 = vunpack.c.l.b16 %v1819
        %v1928 = vunpack.c.l.b16 %v1820
        %v1929 = vunpack.c.l.b16 %v1821
        %v1930 = vunpack.c.l.b16 %v1822
        %v1931 = vunpack.c.l.b16 %v1823
        %v1932 = vunpack.c.l.b16 %v1824
        %v1933 = vunpack.c.l.b16 %v1825
        %v1934 = vpack.c.b16 %v1919, %v1918
        %v1935 = vpack.c.b16 %v1921, %v1920
        %v1936 = vpack.c.b16 %v1923, %v1922
        %v1937 = vpack.c.b16 %v1925, %v1924
        %v1938 = vpack.c.b16 %v1927, %v1926
        %v1939 = vpack.c.b16 %v1929, %v1928
        %v1940 = vpack.c.b16 %v1931, %v1930
        %v1941 = vpack.c.b16 %v1933, %v1932
        %1950 = vmatpush.bf16.msra.mxu0 %v1941
        %1951 = vmatpush.bf16.msra.mxu0 %v1940
        %1952 = vmatpush.bf16.msra.mxu0 %v1939
        %1953 = vmatpush.bf16.msra.mxu0 %v1938
        %1954 = vmatpush.bf16.msra.mxu0 %v1937
        %1955 = vmatpush.bf16.msra.mxu0 %v1936
        %1956 = vmatpush.bf16.msra.mxu0 %v1935
        %1957 = vmatpush.bf16.msra.mxu0 %v1934
        %1958 = vmatmul.bf16.gmra.mxu0 %v1878
        %v1959 = vpop.f32.mrf.mxu0
        %v1960 = vadd.f32 %v1828, %v1959
        %v1961 = vpop.f32.mrf.mxu0
        %v1962 = vadd.f32 %v1828, %v1961
        %1963 = vmatmul.bf16.gmra.mxu0 %v1879
        %v1964 = vpop.f32.mrf.mxu0
        %v1965 = vadd.f32 %v1828, %v1964
        %v1966 = vpop.f32.mrf.mxu0
        %v1967 = vadd.f32 %v1828, %v1966
        %1968 = vmatmul.bf16.gmra.mxu0 %v1880
        %v1969 = vpop.f32.mrf.mxu0
        %v1970 = vadd.f32 %v1828, %v1969
        %v1971 = vpop.f32.mrf.mxu0
        %v1972 = vadd.f32 %v1828, %v1971
        %1973 = vmatmul.bf16.gmra.mxu0 %v1881
        %v1974 = vpop.f32.mrf.mxu0
        %v1975 = vadd.f32 %v1828, %v1974
        %v1976 = vpop.f32.mrf.mxu0
        %v1977 = vadd.f32 %v1828, %v1976
        %1978 = vmatmul.bf16.gmra.mxu0 %v1882
        %v1979 = vpop.f32.mrf.mxu0
        %v1980 = vadd.f32 %v1828, %v1979
        %v1981 = vpop.f32.mrf.mxu0
        %v1982 = vadd.f32 %v1828, %v1981
        %1983 = vmatmul.bf16.gmra.mxu0 %v1883
        %v1984 = vpop.f32.mrf.mxu0
        %v1985 = vadd.f32 %v1828, %v1984
        %v1986 = vpop.f32.mrf.mxu0
        %v1987 = vadd.f32 %v1828, %v1986
        %1988 = vmatmul.bf16.gmra.mxu0 %v1884
        %v1989 = vpop.f32.mrf.mxu0
        %v1990 = vadd.f32 %v1828, %v1989
        %v1991 = vpop.f32.mrf.mxu0
        %v1992 = vadd.f32 %v1828, %v1991
        %1993 = vmatmul.bf16.gmra.mxu0 %v1885
        %v1994 = vpop.f32.mrf.mxu0
        %v1995 = vadd.f32 %v1828, %v1994
        %v1996 = vpop.f32.mrf.mxu0
        %v1997 = vadd.f32 %v1828, %v1996
        %1998 = vmatmul.bf16.gmra.mxu0 %v1886
        %v1999 = vpop.f32.mrf.mxu0
        %v2000 = vadd.f32 %v1828, %v1999
        %v2001 = vpop.f32.mrf.mxu0
        %v2002 = vadd.f32 %v1828, %v2001
        %2003 = vmatmul.bf16.gmra.mxu0 %v1887
        %v2004 = vpop.f32.mrf.mxu0
        %v2005 = vadd.f32 %v1828, %v2004
        %v2006 = vpop.f32.mrf.mxu0
        %v2007 = vadd.f32 %v1828, %v2006
        %2008 = vmatmul.bf16.gmra.mxu0 %v1888
        %v2009 = vpop.f32.mrf.mxu0
        %v2010 = vadd.f32 %v1828, %v2009
        %v2011 = vpop.f32.mrf.mxu0
        %v2012 = vadd.f32 %v1828, %v2011
        %2013 = vmatmul.bf16.gmra.mxu0 %v1889
        %v2014 = vpop.f32.mrf.mxu0
        %v2015 = vadd.f32 %v1828, %v2014
        %v2016 = vpop.f32.mrf.mxu0
        %v2017 = vadd.f32 %v1828, %v2016
        %2018 = vdwg.mxu0
        %v2019 = vmax.f32 %v1960, 0.0
        %v2020 = vmax.f32 %v1962, 0.0
        %v2021 = vmax.f32 %v1965, 0.0
        %v2022 = vmax.f32 %v1967, 0.0
        %v2023 = vmax.f32 %v1970, 0.0
        %v2024 = vmax.f32 %v1972, 0.0
        %v2025 = vmax.f32 %v1975, 0.0
        %v2026 = vmax.f32 %v1977, 0.0
        %v2027 = vmax.f32 %v1980, 0.0
        %v2028 = vmax.f32 %v1982, 0.0
        %v2029 = vmax.f32 %v1985, 0.0
        %v2030 = vmax.f32 %v1987, 0.0
        %v2031 = vmax.f32 %v1990, 0.0
        %v2032 = vmax.f32 %v1992, 0.0
        %v2033 = vmax.f32 %v1995, 0.0
        %v2034 = vmax.f32 %v1997, 0.0
        %v2035 = vmax.f32 %v2000, 0.0
        %v2036 = vmax.f32 %v2002, 0.0
        %v2037 = vmax.f32 %v2005, 0.0
        %v2038 = vmax.f32 %v2007, 0.0
        %v2039 = vmax.f32 %v2010, 0.0
        %v2040 = vmax.f32 %v2012, 0.0
        %v2041 = vmax.f32 %v2015, 0.0
        %v2042 = vmax.f32 %v2017, 0.0
        %v2043 = vmax.f32 %v2019, %v2022
        %v2044 = vmax.f32 %v2020, %v2023
        %v2045 = vmax.f32 %v2021, %v2024
        %v2046 = vmax.f32 %v2025, %v2028
        %v2047 = vmax.f32 %v2026, %v2029
        %v2048 = vmax.f32 %v2027, %v2030
        %v2049 = vmax.f32 %v2031, %v2034
        %v2050 = vmax.f32 %v2032, %v2035
        %v2051 = vmax.f32 %v2033, %v2036
        %v2052 = vmax.f32 %v2037, %v2040
        %v2053 = vmax.f32 %v2038, %v2041
        %v2054 = vmax.f32 %v2039, %v2042
        %v2067 = vrot.slane %v2043, 2
        %v2068 = vrot.slane %v2043, 4
        %v2069 = vrot.slane %v2043, 6
        %v2070 = vrot.slane %v2044, 2
        %v2071 = vrot.slane %v2044, 4
        %v2072 = vrot.slane %v2044, 6
        %v2073 = vrot.slane %v2045, 2
        %v2074 = vrot.slane %v2045, 4
        %v2075 = vrot.slane %v2045, 6
        %v2076 = vrot.slane %v2046, 2
        %v2077 = vrot.slane %v2046, 4
        %v2078 = vrot.slane %v2046, 6
        %v2079 = vrot.slane %v2047, 2
        %v2080 = vrot.slane %v2047, 4
        %v2081 = vrot.slane %v2047, 6
        %v2082 = vrot.slane %v2048, 2
        %v2083 = vrot.slane %v2048, 4
        %v2084 = vrot.slane %v2048, 6
        %v2085 = vrot.slane %v2049, 2
        %v2086 = vrot.slane %v2049, 4
        %v2087 = vrot.slane %v2049, 6
        %v2088 = vrot.slane %v2050, 2
        %v2089 = vrot.slane %v2050, 4
        %v2090 = vrot.slane %v2050, 6
        %v2091 = vrot.slane %v2051, 2
        %v2092 = vrot.slane %v2051, 4
        %v2093 = vrot.slane %v2051, 6
        %v2094 = vrot.slane %v2052, 2
        %v2095 = vrot.slane %v2052, 4
        %v2096 = vrot.slane %v2052, 6
        %v2097 = vrot.slane %v2053, 2
        %v2098 = vrot.slane %v2053, 4
        %v2099 = vrot.slane %v2053, 6
        %v2100 = vrot.slane %v2054, 2
        %v2101 = vrot.slane %v2054, 4
        %v2102 = vrot.slane %v2054, 6
        %v2139 = vrot.slane %v2043, 7
        %v2140 = vrot.slane %v2139, 2
        %v2141 = vrot.slane %v2067, 7
        %v2142 = vrot.slane %v2141, 2
        %v2143 = vrot.slane %v2068, 7
        %v2144 = vrot.slane %v2143, 2
        %v2145 = vrot.slane %v2069, 7
        %v2146 = vrot.slane %v2145, 2
        %v2147 = vrot.slane %v2044, 7
        %v2148 = vrot.slane %v2147, 2
        %v2149 = vrot.slane %v2070, 7
        %v2150 = vrot.slane %v2149, 2
        %v2151 = vrot.slane %v2071, 7
        %v2152 = vrot.slane %v2151, 2
        %v2153 = vrot.slane %v2072, 7
        %v2154 = vrot.slane %v2153, 2
        %v2155 = vrot.slane %v2045, 7
        %v2156 = vrot.slane %v2155, 2
        %v2157 = vrot.slane %v2073, 7
        %v2158 = vrot.slane %v2157, 2
        %v2159 = vrot.slane %v2074, 7
        %v2160 = vrot.slane %v2159, 2
        %v2161 = vrot.slane %v2075, 7
        %v2162 = vrot.slane %v2161, 2
        %v2163 = vrot.slane %v2046, 7
        %v2164 = vrot.slane %v2163, 2
        %v2165 = vrot.slane %v2076, 7
        %v2166 = vrot.slane %v2165, 2
        %v2167 = vrot.slane %v2077, 7
        %v2168 = vrot.slane %v2167, 2
        %v2169 = vrot.slane %v2078, 7
        %v2170 = vrot.slane %v2169, 2
        %v2171 = vrot.slane %v2047, 7
        %v2172 = vrot.slane %v2171, 2
        %v2173 = vrot.slane %v2079, 7
        %v2174 = vrot.slane %v2173, 2
        %v2175 = vrot.slane %v2080, 7
        %v2176 = vrot.slane %v2175, 2
        %v2177 = vrot.slane %v2081, 7
        %v2178 = vrot.slane %v2177, 2
        %v2179 = vrot.slane %v2048, 7
        %v2180 = vrot.slane %v2179, 2
        %v2181 = vrot.slane %v2082, 7
        %v2182 = vrot.slane %v2181, 2
        %v2183 = vrot.slane %v2083, 7
        %v2184 = vrot.slane %v2183, 2
        %v2185 = vrot.slane %v2084, 7
        %v2186 = vrot.slane %v2185, 2
        %v2187 = vrot.slane %v2049, 7
        %v2188 = vrot.slane %v2187, 2
        %v2189 = vrot.slane %v2085, 7
        %v2190 = vrot.slane %v2189, 2
        %v2191 = vrot.slane %v2086, 7
        %v2192 = vrot.slane %v2191, 2
        %v2193 = vrot.slane %v2087, 7
        %v2194 = vrot.slane %v2193, 2
        %v2195 = vrot.slane %v2050, 7
        %v2196 = vrot.slane %v2195, 2
        %v2197 = vrot.slane %v2088, 7
        %v2198 = vrot.slane %v2197, 2
        %v2199 = vrot.slane %v2089, 7
        %v2200 = vrot.slane %v2199, 2
        %v2201 = vrot.slane %v2090, 7
        %v2202 = vrot.slane %v2201, 2
        %v2203 = vrot.slane %v2051, 7
        %v2204 = vrot.slane %v2203, 2
        %v2205 = vrot.slane %v2091, 7
        %v2206 = vrot.slane %v2205, 2
        %v2207 = vrot.slane %v2092, 7
        %v2208 = vrot.slane %v2207, 2
        %v2209 = vrot.slane %v2093, 7
        %v2210 = vrot.slane %v2209, 2
        %v2211 = vrot.slane %v2052, 7
        %v2212 = vrot.slane %v2211, 2
        %v2213 = vrot.slane %v2094, 7
        %v2214 = vrot.slane %v2213, 2
        %v2215 = vrot.slane %v2095, 7
        %v2216 = vrot.slane %v2215, 2
        %v2217 = vrot.slane %v2096, 7
        %v2218 = vrot.slane %v2217, 2
        %v2219 = vrot.slane %v2053, 7
        %v2220 = vrot.slane %v2219, 2
        %v2221 = vrot.slane %v2097, 7
        %v2222 = vrot.slane %v2221, 2
        %v2223 = vrot.slane %v2098, 7
        %v2224 = vrot.slane %v2223, 2
        %v2225 = vrot.slane %v2099, 7
        %v2226 = vrot.slane %v2225, 2
        %v2227 = vrot.slane %v2054, 7
        %v2228 = vrot.slane %v2227, 2
        %v2229 = vrot.slane %v2100, 7
        %v2230 = vrot.slane %v2229, 2
        %v2231 = vrot.slane %v2101, 7
        %v2232 = vrot.slane %v2231, 2
        %v2233 = vrot.slane %v2102, 7
        %v2234 = vrot.slane %v2233, 2
        %v2283 = vmax.f32 %v2043, %v2140
        %v2284 = vmax.f32 %v2067, %v2142
        %v2285 = vmax.f32 %v2068, %v2144
        %v2286 = vmax.f32 %v2069, %v2146
        %v2287 = vmax.f32 %v2044, %v2148
        %v2288 = vmax.f32 %v2070, %v2150
        %v2289 = vmax.f32 %v2071, %v2152
        %v2290 = vmax.f32 %v2072, %v2154
        %v2291 = vmax.f32 %v2045, %v2156
        %v2292 = vmax.f32 %v2073, %v2158
        %v2293 = vmax.f32 %v2074, %v2160
        %v2294 = vmax.f32 %v2075, %v2162
        %v2295 = vmax.f32 %v2046, %v2164
        %v2296 = vmax.f32 %v2076, %v2166
        %v2297 = vmax.f32 %v2077, %v2168
        %v2298 = vmax.f32 %v2078, %v2170
        %v2299 = vmax.f32 %v2047, %v2172
        %v2300 = vmax.f32 %v2079, %v2174
        %v2301 = vmax.f32 %v2080, %v2176
        %v2302 = vmax.f32 %v2081, %v2178
        %v2303 = vmax.f32 %v2048, %v2180
        %v2304 = vmax.f32 %v2082, %v2182
        %v2305 = vmax.f32 %v2083, %v2184
        %v2306 = vmax.f32 %v2084, %v2186
        %v2307 = vmax.f32 %v2049, %v2188
        %v2308 = vmax.f32 %v2085, %v2190
        %v2309 = vmax.f32 %v2086, %v2192
        %v2310 = vmax.f32 %v2087, %v2194
        %v2311 = vmax.f32 %v2050, %v2196
        %v2312 = vmax.f32 %v2088, %v2198
        %v2313 = vmax.f32 %v2089, %v2200
        %v2314 = vmax.f32 %v2090, %v2202
        %v2315 = vmax.f32 %v2051, %v2204
        %v2316 = vmax.f32 %v2091, %v2206
        %v2317 = vmax.f32 %v2092, %v2208
        %v2318 = vmax.f32 %v2093, %v2210
        %v2319 = vmax.f32 %v2052, %v2212
        %v2320 = vmax.f32 %v2094, %v2214
        %v2321 = vmax.f32 %v2095, %v2216
        %v2322 = vmax.f32 %v2096, %v2218
        %v2323 = vmax.f32 %v2053, %v2220
        %v2324 = vmax.f32 %v2097, %v2222
        %v2325 = vmax.f32 %v2098, %v2224
        %v2326 = vmax.f32 %v2099, %v2226
        %v2327 = vmax.f32 %v2054, %v2228
        %v2328 = vmax.f32 %v2100, %v2230
        %v2329 = vmax.f32 %v2101, %v2232
        %v2330 = vmax.f32 %v2102, %v2234
        %v2379 = vperm.slane %v2283, 0
        %v2380 = vperm.slane %v2284, 0
        %v2381 = vperm.slane %v2285, 0
        %v2382 = vperm.slane %v2286, 0
        %v2383 = vperm.slane %v2287, 0
        %v2384 = vperm.slane %v2288, 0
        %v2385 = vperm.slane %v2289, 0
        %v2386 = vperm.slane %v2290, 0
        %v2387 = vperm.slane %v2291, 0
        %v2388 = vperm.slane %v2292, 0
        %v2389 = vperm.slane %v2293, 0
        %v2390 = vperm.slane %v2294, 0
        %v2391 = vperm.slane %v2295, 0
        %v2392 = vperm.slane %v2296, 0
        %v2393 = vperm.slane %v2297, 0
        %v2394 = vperm.slane %v2298, 0
        %v2395 = vperm.slane %v2299, 0
        %v2396 = vperm.slane %v2300, 0
        %v2397 = vperm.slane %v2301, 0
        %v2398 = vperm.slane %v2302, 0
        %v2399 = vperm.slane %v2303, 0
        %v2400 = vperm.slane %v2304, 0
        %v2401 = vperm.slane %v2305, 0
        %v2402 = vperm.slane %v2306, 0
        %v2403 = vperm.slane %v2307, 0
        %v2404 = vperm.slane %v2308, 0
        %v2405 = vperm.slane %v2309, 0
        %v2406 = vperm.slane %v2310, 0
        %v2407 = vperm.slane %v2311, 0
        %v2408 = vperm.slane %v2312, 0
        %v2409 = vperm.slane %v2313, 0
        %v2410 = vperm.slane %v2314, 0
        %v2411 = vperm.slane %v2315, 0
        %v2412 = vperm.slane %v2316, 0
        %v2413 = vperm.slane %v2317, 0
        %v2414 = vperm.slane %v2318, 0
        %v2415 = vperm.slane %v2319, 0
        %v2416 = vperm.slane %v2320, 0
        %v2417 = vperm.slane %v2321, 0
        %v2418 = vperm.slane %v2322, 0
        %v2419 = vperm.slane %v2323, 0
        %v2420 = vperm.slane %v2324, 0
        %v2421 = vperm.slane %v2325, 0
        %v2422 = vperm.slane %v2326, 0
        %v2423 = vperm.slane %v2327, 0
        %v2424 = vperm.slane %v2328, 0
        %v2425 = vperm.slane %v2329, 0
        %v2426 = vperm.slane %v2330, 0
        %v2427 = vsel %vm1025, %v2380, %v2379
        %v2428 = vsel %vm1027, %v2381, %v2427
        %v2429 = vsel %vm1029, %v2382, %v2428
        %v2430 = vsel %vm1031, %v2383, %v2429
        %v2431 = vsel %vm1033, %v2384, %v2430
        %v2432 = vsel %vm1035, %v2385, %v2431
        %v2433 = vsel %vm1037, %v2386, %v2432
        %v2434 = vsel %vm1025, %v2388, %v2387
        %v2435 = vsel %vm1027, %v2389, %v2434
        %v2436 = vsel %vm1029, %v2390, %v2435
        %v2437 = vsel %vm1025, %v2392, %v2391
        %v2438 = vsel %vm1027, %v2393, %v2437
        %v2439 = vsel %vm1029, %v2394, %v2438
        %v2440 = vsel %vm1031, %v2395, %v2439
        %v2441 = vsel %vm1033, %v2396, %v2440
        %v2442 = vsel %vm1035, %v2397, %v2441
        %v2443 = vsel %vm1037, %v2398, %v2442
        %v2444 = vsel %vm1025, %v2400, %v2399
        %v2445 = vsel %vm1027, %v2401, %v2444
        %v2446 = vsel %vm1029, %v2402, %v2445
        %v2447 = vsel %vm1025, %v2404, %v2403
        %v2448 = vsel %vm1027, %v2405, %v2447
        %v2449 = vsel %vm1029, %v2406, %v2448
        %v2450 = vsel %vm1031, %v2407, %v2449
        %v2451 = vsel %vm1033, %v2408, %v2450
        %v2452 = vsel %vm1035, %v2409, %v2451
        %v2453 = vsel %vm1037, %v2410, %v2452
        %v2454 = vsel %vm1025, %v2412, %v2411
        %v2455 = vsel %vm1027, %v2413, %v2454
        %v2456 = vsel %vm1029, %v2414, %v2455
        %v2457 = vsel %vm1025, %v2416, %v2415
        %v2458 = vsel %vm1027, %v2417, %v2457
        %v2459 = vsel %vm1029, %v2418, %v2458
        %v2460 = vsel %vm1031, %v2419, %v2459
        %v2461 = vsel %vm1033, %v2420, %v2460
        %v2462 = vsel %vm1035, %v2421, %v2461
        %v2463 = vsel %vm1037, %v2422, %v2462
        %v2464 = vsel %vm1025, %v2424, %v2423
        %v2465 = vsel %vm1027, %v2425, %v2464
        %v2466 = vsel %vm1029, %v2426, %v2465
        %s2475 = scalar_lea.vmem [#allocation2], 128
        %2476 = vst [vmem:[%s2475] sm:$0xff] %v2433
        %2477 = vst [vmem:[%s2475 + $0x8] sm:$0xf] %v2436
        %2478 = vst [vmem:[%s2475 + $0x10] sm:$0xff] %v2443
        %2479 = vst [vmem:[%s2475 + $0x18] sm:$0xf] %v2446
        %2480 = vst [vmem:[%s2475 + $0x20] sm:$0xff] %v2453
        %2481 = vst [vmem:[%s2475 + $0x28] sm:$0xf] %v2456
        %2482 = vst [vmem:[%s2475 + $0x30] sm:$0xff] %v2463
        %2483 = vst [vmem:[%s2475 + $0x38] sm:$0xf] %v2466
        %v2484 = vld [vmem:[#allocation2] sm:$0xff]
        %v2485 = vld [vmem:[#allocation2 + $0x10] sm:$0xff]
        %v2486 = vld [vmem:[#allocation2 + $0x20] sm:$0xff]
        %v2487 = vld [vmem:[#allocation2 + $0x30] sm:$0xff]
        %v2488 = vld [vmem:[#allocation2 + $0x40] sm:$0xff]
        %v2489 = vld [vmem:[#allocation2 + $0x50] sm:$0xff]
        %v2490 = vld [vmem:[#allocation2 + $0x60] sm:$0xff]
        %v2491 = vld [vmem:[#allocation2 + $0x70] sm:$0xff]
        %v2492 = vld [vmem:[#allocation2 + $0x1] sm:$0xff]
        %v2493 = vld [vmem:[#allocation2 + $0x11] sm:$0xff]
        %v2494 = vld [vmem:[#allocation2 + $0x21] sm:$0xff]
        %v2495 = vld [vmem:[#allocation2 + $0x31] sm:$0xff]
        %v2496 = vld [vmem:[#allocation2 + $0x41] sm:$0xff]
        %v2497 = vld [vmem:[#allocation2 + $0x51] sm:$0xff]
        %v2498 = vld [vmem:[#allocation2 + $0x61] sm:$0xff]
        %v2499 = vld [vmem:[#allocation2 + $0x71] sm:$0xff]
        %2500 = vrot.lane.b32.xlu0 %v2492, 16
        %v2501 = vpop.permute.xlu0 %2500
        %2502 = vrot.lane.b32.xlu0 %v2493, 16
        %v2503 = vpop.permute.xlu0 %2502
        %2504 = vrot.lane.b32.xlu0 %v2494, 16
        %v2505 = vpop.permute.xlu0 %2504
        %2506 = vrot.lane.b32.xlu0 %v2495, 16
        %v2507 = vpop.permute.xlu0 %2506
        %2508 = vrot.lane.b32.xlu0 %v2496, 16
        %v2509 = vpop.permute.xlu0 %2508
        %2510 = vrot.lane.b32.xlu0 %v2497, 16
        %v2511 = vpop.permute.xlu0 %2510
        %2512 = vrot.lane.b32.xlu0 %v2498, 16
        %v2513 = vpop.permute.xlu0 %2512
        %2514 = vrot.lane.b32.xlu0 %v2499, 16
        %v2515 = vpop.permute.xlu0 %2514
        %v2516 = vadd.f32 %v2484, %v2501
        %v2517 = vadd.f32 %v2485, %v2503
        %v2518 = vadd.f32 %v2486, %v2505
        %v2519 = vadd.f32 %v2487, %v2507
        %v2520 = vadd.f32 %v2488, %v2509
        %v2521 = vadd.f32 %v2489, %v2511
        %v2522 = vadd.f32 %v2490, %v2513
        %v2523 = vadd.f32 %v2491, %v2515
        %v2524 = vld [vmem:[#allocation2 + $0x2] sm:$0xff]
        %v2525 = vld [vmem:[#allocation2 + $0x12] sm:$0xff]
        %v2526 = vld [vmem:[#allocation2 + $0x22] sm:$0xff]
        %v2527 = vld [vmem:[#allocation2 + $0x32] sm:$0xff]
        %v2528 = vld [vmem:[#allocation2 + $0x42] sm:$0xff]
        %v2529 = vld [vmem:[#allocation2 + $0x52] sm:$0xff]
        %v2530 = vld [vmem:[#allocation2 + $0x62] sm:$0xff]
        %v2531 = vld [vmem:[#allocation2 + $0x72] sm:$0xff]
        %2532 = vrot.lane.b32.xlu0 %v2524, 32
        %v2533 = vpop.permute.xlu0 %2532
        %2534 = vrot.lane.b32.xlu0 %v2525, 32
        %v2535 = vpop.permute.xlu0 %2534
        %2536 = vrot.lane.b32.xlu0 %v2526, 32
        %v2537 = vpop.permute.xlu0 %2536
        %2538 = vrot.lane.b32.xlu0 %v2527, 32
        %v2539 = vpop.permute.xlu0 %2538
        %2540 = vrot.lane.b32.xlu0 %v2528, 32
        %v2541 = vpop.permute.xlu0 %2540
        %2542 = vrot.lane.b32.xlu0 %v2529, 32
        %v2543 = vpop.permute.xlu0 %2542
        %2544 = vrot.lane.b32.xlu0 %v2530, 32
        %v2545 = vpop.permute.xlu0 %2544
        %2546 = vrot.lane.b32.xlu0 %v2531, 32
        %v2547 = vpop.permute.xlu0 %2546
        %v2548 = vadd.f32 %v2516, %v2533
        %v2549 = vadd.f32 %v2517, %v2535
        %v2550 = vadd.f32 %v2518, %v2537
        %v2551 = vadd.f32 %v2519, %v2539
        %v2552 = vadd.f32 %v2520, %v2541
        %v2553 = vadd.f32 %v2521, %v2543
        %v2554 = vadd.f32 %v2522, %v2545
        %v2555 = vadd.f32 %v2523, %v2547
        %v2556 = vld [vmem:[#allocation2 + $0x3] sm:$0xff]
        %v2557 = vld [vmem:[#allocation2 + $0x13] sm:$0xff]
        %v2558 = vld [vmem:[#allocation2 + $0x23] sm:$0xff]
        %v2559 = vld [vmem:[#allocation2 + $0x33] sm:$0xff]
        %v2560 = vld [vmem:[#allocation2 + $0x43] sm:$0xff]
        %v2561 = vld [vmem:[#allocation2 + $0x53] sm:$0xff]
        %v2562 = vld [vmem:[#allocation2 + $0x63] sm:$0xff]
        %v2563 = vld [vmem:[#allocation2 + $0x73] sm:$0xff]
        %2564 = vrot.lane.b32.xlu0 %v2556, 48
        %v2565 = vpop.permute.xlu0 %2564
        %2566 = vrot.lane.b32.xlu0 %v2557, 48
        %v2567 = vpop.permute.xlu0 %2566
        %2568 = vrot.lane.b32.xlu0 %v2558, 48
        %v2569 = vpop.permute.xlu0 %2568
        %2570 = vrot.lane.b32.xlu0 %v2559, 48
        %v2571 = vpop.permute.xlu0 %2570
        %2572 = vrot.lane.b32.xlu0 %v2560, 48
        %v2573 = vpop.permute.xlu0 %2572
        %2574 = vrot.lane.b32.xlu0 %v2561, 48
        %v2575 = vpop.permute.xlu0 %2574
        %2576 = vrot.lane.b32.xlu0 %v2562, 48
        %v2577 = vpop.permute.xlu0 %2576
        %2578 = vrot.lane.b32.xlu0 %v2563, 48
        %v2579 = vpop.permute.xlu0 %2578
        %v2580 = vadd.f32 %v2548, %v2565
        %v2581 = vadd.f32 %v2549, %v2567
        %v2582 = vadd.f32 %v2550, %v2569
        %v2583 = vadd.f32 %v2551, %v2571
        %v2584 = vadd.f32 %v2552, %v2573
        %v2585 = vadd.f32 %v2553, %v2575
        %v2586 = vadd.f32 %v2554, %v2577
        %v2587 = vadd.f32 %v2555, %v2579
        %v2588 = vld [vmem:[#allocation2 + $0x4] sm:$0xff]
        %v2589 = vld [vmem:[#allocation2 + $0x14] sm:$0xff]
        %v2590 = vld [vmem:[#allocation2 + $0x24] sm:$0xff]
        %v2591 = vld [vmem:[#allocation2 + $0x34] sm:$0xff]
        %v2592 = vld [vmem:[#allocation2 + $0x44] sm:$0xff]
        %v2593 = vld [vmem:[#allocation2 + $0x54] sm:$0xff]
        %v2594 = vld [vmem:[#allocation2 + $0x64] sm:$0xff]
        %v2595 = vld [vmem:[#allocation2 + $0x74] sm:$0xff]
        %2596 = vrot.lane.b32.xlu0 %v2588, 64
        %v2597 = vpop.permute.xlu0 %2596
        %2598 = vrot.lane.b32.xlu0 %v2589, 64
        %v2599 = vpop.permute.xlu0 %2598
        %2600 = vrot.lane.b32.xlu0 %v2590, 64
        %v2601 = vpop.permute.xlu0 %2600
        %2602 = vrot.lane.b32.xlu0 %v2591, 64
        %v2603 = vpop.permute.xlu0 %2602
        %2604 = vrot.lane.b32.xlu0 %v2592, 64
        %v2605 = vpop.permute.xlu0 %2604
        %2606 = vrot.lane.b32.xlu0 %v2593, 64
        %v2607 = vpop.permute.xlu0 %2606
        %2608 = vrot.lane.b32.xlu0 %v2594, 64
        %v2609 = vpop.permute.xlu0 %2608
        %2610 = vrot.lane.b32.xlu0 %v2595, 64
        %v2611 = vpop.permute.xlu0 %2610
        %v2612 = vadd.f32 %v2580, %v2597
        %v2613 = vadd.f32 %v2581, %v2599
        %v2614 = vadd.f32 %v2582, %v2601
        %v2615 = vadd.f32 %v2583, %v2603
        %v2616 = vadd.f32 %v2584, %v2605
        %v2617 = vadd.f32 %v2585, %v2607
        %v2618 = vadd.f32 %v2586, %v2609
        %v2619 = vadd.f32 %v2587, %v2611
        %v2620 = vpack.c.bf16 %v2613, %v2612
        %v2621 = vpack.c.bf16 %v2615, %v2614
        %v2622 = vpack.c.bf16 %v2617, %v2616
        %v2623 = vpack.c.bf16 %v2619, %v2618
        %v2624 = vld [vmem:[%s3] sm:$0xf]
        %v2625 = vld [vmem:[%s3 + $0x4] sm:$0xf]
        %v2626 = vld [vmem:[%s3 + $0x8] sm:$0xf]
        %v2627 = vld [vmem:[%s3 + $0xc] sm:$0xf]
        %v2628 = vld [vmem:[%s3 + $0x10] sm:$0xf]
        %v2629 = vld [vmem:[%s3 + $0x14] sm:$0xf]
        %v2630 = vld [vmem:[%s3 + $0x18] sm:$0xf]
        %v2631 = vld [vmem:[%s3 + $0x1c] sm:$0xf]
        %v2632 = vld [vmem:[%s3 + $0x20] sm:$0xf]
        %v2633 = vld [vmem:[%s3 + $0x24] sm:$0xf]
        %v2634 = vld [vmem:[%s3 + $0x28] sm:$0xf]
        %v2635 = vld [vmem:[%s3 + $0x2c] sm:$0xf]
        %v2636 = vld [vmem:[%s3 + $0x30] sm:$0xf]
        %v2637 = vld [vmem:[%s3 + $0x34] sm:$0xf]
        %v2638 = vld [vmem:[%s3 + $0x38] sm:$0xf]
        %v2639 = vld [vmem:[%s3 + $0x3c] sm:$0xf]
        %s2640 = scalar_lea.vmem [#allocation2], 16
        %v2641 = vld [vmem:[%s2640] sm:$0xff]
        %v2642 = vld [vmem:[%s2640 + $0x10] sm:$0xff]
        %v2643 = vld [vmem:[%s2640 + $0x20] sm:$0xff]
        %v2644 = vld [vmem:[%s2640 + $0x30] sm:$0xff]
        %v2645 = vld [vmem:[%s2640 + $0x40] sm:$0xff]
        %v2646 = vld [vmem:[%s2640 + $0x50] sm:$0xff]
        %v2647 = vld [vmem:[%s2640 + $0x60] sm:$0xff]
        %v2648 = vld [vmem:[%s2640 + $0x70] sm:$0xff]
        %v2649 = vld [vmem:[%s2640 + $0x1] sm:$0xff]
        %v2650 = vld [vmem:[%s2640 + $0x11] sm:$0xff]
        %v2651 = vld [vmem:[%s2640 + $0x21] sm:$0xff]
        %v2652 = vld [vmem:[%s2640 + $0x31] sm:$0xff]
        %v2653 = vld [vmem:[%s2640 + $0x41] sm:$0xff]
        %v2654 = vld [vmem:[%s2640 + $0x51] sm:$0xff]
        %v2655 = vld [vmem:[%s2640 + $0x61] sm:$0xff]
        %v2656 = vld [vmem:[%s2640 + $0x71] sm:$0xff]
        %2657 = vrot.lane.b32.xlu0 %v2649, 16
        %v2658 = vpop.permute.xlu0 %2657
        %2659 = vrot.lane.b32.xlu0 %v2650, 16
        %v2660 = vpop.permute.xlu0 %2659
        %2661 = vrot.lane.b32.xlu0 %v2651, 16
        %v2662 = vpop.permute.xlu0 %2661
        %2663 = vrot.lane.b32.xlu0 %v2652, 16
        %v2664 = vpop.permute.xlu0 %2663
        %2665 = vrot.lane.b32.xlu0 %v2653, 16
        %v2666 = vpop.permute.xlu0 %2665
        %2667 = vrot.lane.b32.xlu0 %v2654, 16
        %v2668 = vpop.permute.xlu0 %2667
        %2669 = vrot.lane.b32.xlu0 %v2655, 16
        %v2670 = vpop.permute.xlu0 %2669
        %2671 = vrot.lane.b32.xlu0 %v2656, 16
        %v2672 = vpop.permute.xlu0 %2671
        %v2673 = vadd.f32 %v2641, %v2658
        %v2674 = vadd.f32 %v2642, %v2660
        %v2675 = vadd.f32 %v2643, %v2662
        %v2676 = vadd.f32 %v2644, %v2664
        %v2677 = vadd.f32 %v2645, %v2666
        %v2678 = vadd.f32 %v2646, %v2668
        %v2679 = vadd.f32 %v2647, %v2670
        %v2680 = vadd.f32 %v2648, %v2672
        %v2681 = vld [vmem:[%s2640 + $0x2] sm:$0xff]
        %v2682 = vld [vmem:[%s2640 + $0x12] sm:$0xff]
        %v2683 = vld [vmem:[%s2640 + $0x22] sm:$0xff]
        %v2684 = vld [vmem:[%s2640 + $0x32] sm:$0xff]
        %v2685 = vld [vmem:[%s2640 + $0x42] sm:$0xff]
        %v2686 = vld [vmem:[%s2640 + $0x52] sm:$0xff]
        %v2687 = vld [vmem:[%s2640 + $0x62] sm:$0xff]
        %v2688 = vld [vmem:[%s2640 + $0x72] sm:$0xff]
        %2689 = vrot.lane.b32.xlu0 %v2681, 32
        %v2690 = vpop.permute.xlu0 %2689
        %2691 = vrot.lane.b32.xlu0 %v2682, 32
        %v2692 = vpop.permute.xlu0 %2691
        %2693 = vrot.lane.b32.xlu0 %v2683, 32
        %v2694 = vpop.permute.xlu0 %2693
        %2695 = vrot.lane.b32.xlu0 %v2684, 32
        %v2696 = vpop.permute.xlu0 %2695
        %2697 = vrot.lane.b32.xlu0 %v2685, 32
        %v2698 = vpop.permute.xlu0 %2697
        %2699 = vrot.lane.b32.xlu0 %v2686, 32
        %v2700 = vpop.permute.xlu0 %2699
        %2701 = vrot.lane.b32.xlu0 %v2687, 32
        %v2702 = vpop.permute.xlu0 %2701
        %2703 = vrot.lane.b32.xlu0 %v2688, 32
        %v2704 = vpop.permute.xlu0 %2703
        %v2705 = vadd.f32 %v2673, %v2690
        %v2706 = vadd.f32 %v2674, %v2692
        %v2707 = vadd.f32 %v2675, %v2694
        %v2708 = vadd.f32 %v2676, %v2696
        %v2709 = vadd.f32 %v2677, %v2698
        %v2710 = vadd.f32 %v2678, %v2700
        %v2711 = vadd.f32 %v2679, %v2702
        %v2712 = vadd.f32 %v2680, %v2704
        %v2713 = vld [vmem:[%s2640 + $0x3] sm:$0xff]
        %v2714 = vld [vmem:[%s2640 + $0x13] sm:$0xff]
        %v2715 = vld [vmem:[%s2640 + $0x23] sm:$0xff]
        %v2716 = vld [vmem:[%s2640 + $0x33] sm:$0xff]
        %v2717 = vld [vmem:[%s2640 + $0x43] sm:$0xff]
        %v2718 = vld [vmem:[%s2640 + $0x53] sm:$0xff]
        %v2719 = vld [vmem:[%s2640 + $0x63] sm:$0xff]
        %v2720 = vld [vmem:[%s2640 + $0x73] sm:$0xff]
        %2721 = vrot.lane.b32.xlu0 %v2713, 48
        %v2722 = vpop.permute.xlu0 %2721
        %2723 = vrot.lane.b32.xlu0 %v2714, 48
        %v2724 = vpop.permute.xlu0 %2723
        %2725 = vrot.lane.b32.xlu0 %v2715, 48
        %v2726 = vpop.permute.xlu0 %2725
        %2727 = vrot.lane.b32.xlu0 %v2716, 48
        %v2728 = vpop.permute.xlu0 %2727
        %2729 = vrot.lane.b32.xlu0 %v2717, 48
        %v2730 = vpop.permute.xlu0 %2729
        %2731 = vrot.lane.b32.xlu0 %v2718, 48
        %v2732 = vpop.permute.xlu0 %2731
        %2733 = vrot.lane.b32.xlu0 %v2719, 48
        %v2734 = vpop.permute.xlu0 %2733
        %2735 = vrot.lane.b32.xlu0 %v2720, 48
        %v2736 = vpop.permute.xlu0 %2735
        %v2737 = vadd.f32 %v2705, %v2722
        %v2738 = vadd.f32 %v2706, %v2724
        %v2739 = vadd.f32 %v2707, %v2726
        %v2740 = vadd.f32 %v2708, %v2728
        %v2741 = vadd.f32 %v2709, %v2730
        %v2742 = vadd.f32 %v2710, %v2732
        %v2743 = vadd.f32 %v2711, %v2734
        %v2744 = vadd.f32 %v2712, %v2736
        %v2745 = vld [vmem:[%s2640 + $0x4] sm:$0xff]
        %v2746 = vld [vmem:[%s2640 + $0x14] sm:$0xff]
        %v2747 = vld [vmem:[%s2640 + $0x24] sm:$0xff]
        %v2748 = vld [vmem:[%s2640 + $0x34] sm:$0xff]
        %v2749 = vld [vmem:[%s2640 + $0x44] sm:$0xff]
        %v2750 = vld [vmem:[%s2640 + $0x54] sm:$0xff]
        %v2751 = vld [vmem:[%s2640 + $0x64] sm:$0xff]
        %v2752 = vld [vmem:[%s2640 + $0x74] sm:$0xff]
        %2753 = vrot.lane.b32.xlu0 %v2745, 64
        %v2754 = vpop.permute.xlu0 %2753
        %2755 = vrot.lane.b32.xlu0 %v2746, 64
        %v2756 = vpop.permute.xlu0 %2755
        %2757 = vrot.lane.b32.xlu0 %v2747, 64
        %v2758 = vpop.permute.xlu0 %2757
        %2759 = vrot.lane.b32.xlu0 %v2748, 64
        %v2760 = vpop.permute.xlu0 %2759
        %2761 = vrot.lane.b32.xlu0 %v2749, 64
        %v2762 = vpop.permute.xlu0 %2761
        %2763 = vrot.lane.b32.xlu0 %v2750, 64
        %v2764 = vpop.permute.xlu0 %2763
        %2765 = vrot.lane.b32.xlu0 %v2751, 64
        %v2766 = vpop.permute.xlu0 %2765
        %2767 = vrot.lane.b32.xlu0 %v2752, 64
        %v2768 = vpop.permute.xlu0 %2767
        %v2769 = vadd.f32 %v2737, %v2754
        %v2770 = vadd.f32 %v2738, %v2756
        %v2771 = vadd.f32 %v2739, %v2758
        %v2772 = vadd.f32 %v2740, %v2760
        %v2773 = vadd.f32 %v2741, %v2762
        %v2774 = vadd.f32 %v2742, %v2764
        %v2775 = vadd.f32 %v2743, %v2766
        %v2776 = vadd.f32 %v2744, %v2768
        %v2777 = vpack.c.bf16 %v2770, %v2769
        %v2778 = vpack.c.bf16 %v2772, %v2771
        %v2779 = vpack.c.bf16 %v2774, %v2773
        %v2780 = vpack.c.bf16 %v2776, %v2775
        %s2781 = scalar_lea.vmem %s3, 64
        %v2782 = vld [vmem:[%s2781] sm:$0xf]
        %v2783 = vld [vmem:[%s2781 + $0x4] sm:$0xf]
        %v2784 = vld [vmem:[%s2781 + $0x8] sm:$0xf]
        %v2785 = vld [vmem:[%s2781 + $0xc] sm:$0xf]
        %v2786 = vld [vmem:[%s2781 + $0x10] sm:$0xf]
        %v2787 = vld [vmem:[%s2781 + $0x14] sm:$0xf]
        %v2788 = vld [vmem:[%s2781 + $0x18] sm:$0xf]
        %v2789 = vld [vmem:[%s2781 + $0x1c] sm:$0xf]
        %v2790 = vld [vmem:[%s2781 + $0x20] sm:$0xf]
        %v2791 = vld [vmem:[%s2781 + $0x24] sm:$0xf]
        %v2792 = vld [vmem:[%s2781 + $0x28] sm:$0xf]
        %v2793 = vld [vmem:[%s2781 + $0x2c] sm:$0xf]
        %v2794 = vld [vmem:[%s2781 + $0x30] sm:$0xf]
        %v2795 = vld [vmem:[%s2781 + $0x34] sm:$0xf]
        %v2796 = vld [vmem:[%s2781 + $0x38] sm:$0xf]
        %v2797 = vld [vmem:[%s2781 + $0x3c] sm:$0xf]
        %v2814 = vunpack.c.l.b16 %v2782
        %v2815 = vunpack.c.l.b16 %v2783
        %v2816 = vunpack.c.l.b16 %v2784
        %v2817 = vunpack.c.l.b16 %v2785
        %v2818 = vunpack.c.l.b16 %v2786
        %v2819 = vunpack.c.l.b16 %v2787
        %v2820 = vunpack.c.l.b16 %v2788
        %v2821 = vunpack.c.l.b16 %v2789
        %v2822 = vunpack.c.l.b16 %v2790
        %v2823 = vunpack.c.l.b16 %v2791
        %v2824 = vunpack.c.l.b16 %v2792
        %v2825 = vunpack.c.l.b16 %v2793
        %v2826 = vunpack.c.l.b16 %v2794
        %v2827 = vunpack.c.l.b16 %v2795
        %v2828 = vunpack.c.l.b16 %v2796
        %v2829 = vunpack.c.l.b16 %v2797
        %v2830 = vpack.c.b16 %v2815, %v2814
        %v2831 = vpack.c.b16 %v2817, %v2816
        %v2832 = vpack.c.b16 %v2819, %v2818
        %v2833 = vpack.c.b16 %v2821, %v2820
        %v2834 = vpack.c.b16 %v2823, %v2822
        %v2835 = vpack.c.b16 %v2825, %v2824
        %v2836 = vpack.c.b16 %v2827, %v2826
        %v2837 = vpack.c.b16 %v2829, %v2828
        %2846 = vmatpush.bf16.msra.mxu0 %v2837
        %2847 = vmatpush.bf16.msra.mxu0 %v2836
        %2848 = vmatpush.bf16.msra.mxu0 %v2835
        %2849 = vmatpush.bf16.msra.mxu0 %v2834
        %2850 = vmatpush.bf16.msra.mxu0 %v2833
        %2851 = vmatpush.bf16.msra.mxu0 %v2832
        %2852 = vmatpush.bf16.msra.mxu0 %v2831
        %2853 = vmatpush.bf16.msra.mxu0 %v2830
        %2854 = vmatmul.bf16.gmra.mxu0 %v2777
        %v2855 = vpop.f32.mrf.mxu0
        %v2856 = vadd.f32 0.0, %v2855
        %v2857 = vpop.f32.mrf.mxu0
        %v2858 = vadd.f32 0.0, %v2857
        %2859 = vmatmul.bf16.gmra.mxu0 %v2778
        %v2860 = vpop.f32.mrf.mxu0
        %v2861 = vadd.f32 0.0, %v2860
        %v2862 = vpop.f32.mrf.mxu0
        %v2863 = vadd.f32 0.0, %v2862
        %2864 = vmatmul.bf16.gmra.mxu0 %v2779
        %v2865 = vpop.f32.mrf.mxu0
        %v2866 = vadd.f32 0.0, %v2865
        %v2867 = vpop.f32.mrf.mxu0
        %v2868 = vadd.f32 0.0, %v2867
        %2869 = vmatmul.bf16.gmra.mxu0 %v2780
        %v2870 = vpop.f32.mrf.mxu0
        %v2871 = vadd.f32 0.0, %v2870
        %v2872 = vpop.f32.mrf.mxu0
        %v2873 = vadd.f32 0.0, %v2872
        %2874 = vdwg.mxu0
        %v2891 = vunpack.c.l.b16 %v2624
        %v2892 = vunpack.c.l.b16 %v2625
        %v2893 = vunpack.c.l.b16 %v2626
        %v2894 = vunpack.c.l.b16 %v2627
        %v2895 = vunpack.c.l.b16 %v2628
        %v2896 = vunpack.c.l.b16 %v2629
        %v2897 = vunpack.c.l.b16 %v2630
        %v2898 = vunpack.c.l.b16 %v2631
        %v2899 = vunpack.c.l.b16 %v2632
        %v2900 = vunpack.c.l.b16 %v2633
        %v2901 = vunpack.c.l.b16 %v2634
        %v2902 = vunpack.c.l.b16 %v2635
        %v2903 = vunpack.c.l.b16 %v2636
        %v2904 = vunpack.c.l.b16 %v2637
        %v2905 = vunpack.c.l.b16 %v2638
        %v2906 = vunpack.c.l.b16 %v2639
        %v2907 = vpack.c.b16 %v2892, %v2891
        %v2908 = vpack.c.b16 %v2894, %v2893
        %v2909 = vpack.c.b16 %v2896, %v2895
        %v2910 = vpack.c.b16 %v2898, %v2897
        %v2911 = vpack.c.b16 %v2900, %v2899
        %v2912 = vpack.c.b16 %v2902, %v2901
        %v2913 = vpack.c.b16 %v2904, %v2903
        %v2914 = vpack.c.b16 %v2906, %v2905
        %2923 = vmatpush.bf16.msra.mxu0 %v2914
        %2924 = vmatpush.bf16.msra.mxu0 %v2913
        %2925 = vmatpush.bf16.msra.mxu0 %v2912
        %2926 = vmatpush.bf16.msra.mxu0 %v2911
        %2927 = vmatpush.bf16.msra.mxu0 %v2910
        %2928 = vmatpush.bf16.msra.mxu0 %v2909
        %2929 = vmatpush.bf16.msra.mxu0 %v2908
        %2930 = vmatpush.bf16.msra.mxu0 %v2907
        %2931 = vmatmul.bf16.gmra.mxu0 %v2620
        %v2932 = vpop.f32.mrf.mxu0
        %v2933 = vadd.f32 %v2856, %v2932
        %v2934 = vpop.f32.mrf.mxu0
        %v2935 = vadd.f32 %v2858, %v2934
        %2936 = vmatmul.bf16.gmra.mxu0 %v2621
        %v2937 = vpop.f32.mrf.mxu0
        %v2938 = vadd.f32 %v2861, %v2937
        %v2939 = vpop.f32.mrf.mxu0
        %v2940 = vadd.f32 %v2863, %v2939
        %2941 = vmatmul.bf16.gmra.mxu0 %v2622
        %v2942 = vpop.f32.mrf.mxu0
        %v2943 = vadd.f32 %v2866, %v2942
        %v2944 = vpop.f32.mrf.mxu0
        %v2945 = vadd.f32 %v2868, %v2944
        %2946 = vmatmul.bf16.gmra.mxu0 %v2623
        %v2947 = vpop.f32.mrf.mxu0
        %v2948 = vadd.f32 %v2871, %v2947
        %v2949 = vpop.f32.mrf.mxu0
        %v2950 = vadd.f32 %v2873, %v2949
        %2951 = vdwg.mxu0
        %s2952 = scalar_lea.vmem [#allocation2], 32
        %v2953 = vld [vmem:[%s2952] sm:$0xff]
        %v2954 = vld [vmem:[%s2952 + $0x10] sm:$0xff]
        %v2955 = vld [vmem:[%s2952 + $0x20] sm:$0xff]
        %v2956 = vld [vmem:[%s2952 + $0x30] sm:$0xff]
        %v2957 = vld [vmem:[%s2952 + $0x40] sm:$0xff]
        %v2958 = vld [vmem:[%s2952 + $0x50] sm:$0xff]
        %v2959 = vld [vmem:[%s2952 + $0x60] sm:$0xff]
        %v2960 = vld [vmem:[%s2952 + $0x70] sm:$0xff]
        %v2961 = vld [vmem:[%s2952 + $0x1] sm:$0xff]
        %v2962 = vld [vmem:[%s2952 + $0x11] sm:$0xff]
        %v2963 = vld [vmem:[%s2952 + $0x21] sm:$0xff]
        %v2964 = vld [vmem:[%s2952 + $0x31] sm:$0xff]
        %v2965 = vld [vmem:[%s2952 + $0x41] sm:$0xff]
        %v2966 = vld [vmem:[%s2952 + $0x51] sm:$0xff]
        %v2967 = vld [vmem:[%s2952 + $0x61] sm:$0xff]
        %v2968 = vld [vmem:[%s2952 + $0x71] sm:$0xff]
        %2969 = vrot.lane.b32.xlu0 %v2961, 16
        %v2970 = vpop.permute.xlu0 %2969
        %2971 = vrot.lane.b32.xlu0 %v2962, 16
        %v2972 = vpop.permute.xlu0 %2971
        %2973 = vrot.lane.b32.xlu0 %v2963, 16
        %v2974 = vpop.permute.xlu0 %2973
        %2975 = vrot.lane.b32.xlu0 %v2964, 16
        %v2976 = vpop.permute.xlu0 %2975
        %2977 = vrot.lane.b32.xlu0 %v2965, 16
        %v2978 = vpop.permute.xlu0 %2977
        %2979 = vrot.lane.b32.xlu0 %v2966, 16
        %v2980 = vpop.permute.xlu0 %2979
        %2981 = vrot.lane.b32.xlu0 %v2967, 16
        %v2982 = vpop.permute.xlu0 %2981
        %2983 = vrot.lane.b32.xlu0 %v2968, 16
        %v2984 = vpop.permute.xlu0 %2983
        %v2985 = vadd.f32 %v2953, %v2970
        %v2986 = vadd.f32 %v2954, %v2972
        %v2987 = vadd.f32 %v2955, %v2974
        %v2988 = vadd.f32 %v2956, %v2976
        %v2989 = vadd.f32 %v2957, %v2978
        %v2990 = vadd.f32 %v2958, %v2980
        %v2991 = vadd.f32 %v2959, %v2982
        %v2992 = vadd.f32 %v2960, %v2984
        %v2993 = vld [vmem:[%s2952 + $0x2] sm:$0xff]
        %v2994 = vld [vmem:[%s2952 + $0x12] sm:$0xff]
        %v2995 = vld [vmem:[%s2952 + $0x22] sm:$0xff]
        %v2996 = vld [vmem:[%s2952 + $0x32] sm:$0xff]
        %v2997 = vld [vmem:[%s2952 + $0x42] sm:$0xff]
        %v2998 = vld [vmem:[%s2952 + $0x52] sm:$0xff]
        %v2999 = vld [vmem:[%s2952 + $0x62] sm:$0xff]
        %v3000 = vld [vmem:[%s2952 + $0x72] sm:$0xff]
        %3001 = vrot.lane.b32.xlu0 %v2993, 32
        %v3002 = vpop.permute.xlu0 %3001
        %3003 = vrot.lane.b32.xlu0 %v2994, 32
        %v3004 = vpop.permute.xlu0 %3003
        %3005 = vrot.lane.b32.xlu0 %v2995, 32
        %v3006 = vpop.permute.xlu0 %3005
        %3007 = vrot.lane.b32.xlu0 %v2996, 32
        %v3008 = vpop.permute.xlu0 %3007
        %3009 = vrot.lane.b32.xlu0 %v2997, 32
        %v3010 = vpop.permute.xlu0 %3009
        %3011 = vrot.lane.b32.xlu0 %v2998, 32
        %v3012 = vpop.permute.xlu0 %3011
        %3013 = vrot.lane.b32.xlu0 %v2999, 32
        %v3014 = vpop.permute.xlu0 %3013
        %3015 = vrot.lane.b32.xlu0 %v3000, 32
        %v3016 = vpop.permute.xlu0 %3015
        %v3017 = vadd.f32 %v2985, %v3002
        %v3018 = vadd.f32 %v2986, %v3004
        %v3019 = vadd.f32 %v2987, %v3006
        %v3020 = vadd.f32 %v2988, %v3008
        %v3021 = vadd.f32 %v2989, %v3010
        %v3022 = vadd.f32 %v2990, %v3012
        %v3023 = vadd.f32 %v2991, %v3014
        %v3024 = vadd.f32 %v2992, %v3016
        %v3025 = vld [vmem:[%s2952 + $0x3] sm:$0xff]
        %v3026 = vld [vmem:[%s2952 + $0x13] sm:$0xff]
        %v3027 = vld [vmem:[%s2952 + $0x23] sm:$0xff]
        %v3028 = vld [vmem:[%s2952 + $0x33] sm:$0xff]
        %v3029 = vld [vmem:[%s2952 + $0x43] sm:$0xff]
        %v3030 = vld [vmem:[%s2952 + $0x53] sm:$0xff]
        %v3031 = vld [vmem:[%s2952 + $0x63] sm:$0xff]
        %v3032 = vld [vmem:[%s2952 + $0x73] sm:$0xff]
        %3033 = vrot.lane.b32.xlu0 %v3025, 48
        %v3034 = vpop.permute.xlu0 %3033
        %3035 = vrot.lane.b32.xlu0 %v3026, 48
        %v3036 = vpop.permute.xlu0 %3035
        %3037 = vrot.lane.b32.xlu0 %v3027, 48
        %v3038 = vpop.permute.xlu0 %3037
        %3039 = vrot.lane.b32.xlu0 %v3028, 48
        %v3040 = vpop.permute.xlu0 %3039
        %3041 = vrot.lane.b32.xlu0 %v3029, 48
        %v3042 = vpop.permute.xlu0 %3041
        %3043 = vrot.lane.b32.xlu0 %v3030, 48
        %v3044 = vpop.permute.xlu0 %3043
        %3045 = vrot.lane.b32.xlu0 %v3031, 48
        %v3046 = vpop.permute.xlu0 %3045
        %3047 = vrot.lane.b32.xlu0 %v3032, 48
        %v3048 = vpop.permute.xlu0 %3047
        %v3049 = vadd.f32 %v3017, %v3034
        %v3050 = vadd.f32 %v3018, %v3036
        %v3051 = vadd.f32 %v3019, %v3038
        %v3052 = vadd.f32 %v3020, %v3040
        %v3053 = vadd.f32 %v3021, %v3042
        %v3054 = vadd.f32 %v3022, %v3044
        %v3055 = vadd.f32 %v3023, %v3046
        %v3056 = vadd.f32 %v3024, %v3048
        %v3057 = vld [vmem:[%s2952 + $0x4] sm:$0xff]
        %v3058 = vld [vmem:[%s2952 + $0x14] sm:$0xff]
        %v3059 = vld [vmem:[%s2952 + $0x24] sm:$0xff]
        %v3060 = vld [vmem:[%s2952 + $0x34] sm:$0xff]
        %v3061 = vld [vmem:[%s2952 + $0x44] sm:$0xff]
        %v3062 = vld [vmem:[%s2952 + $0x54] sm:$0xff]
        %v3063 = vld [vmem:[%s2952 + $0x64] sm:$0xff]
        %v3064 = vld [vmem:[%s2952 + $0x74] sm:$0xff]
        %3065 = vrot.lane.b32.xlu0 %v3057, 64
        %v3066 = vpop.permute.xlu0 %3065
        %3067 = vrot.lane.b32.xlu0 %v3058, 64
        %v3068 = vpop.permute.xlu0 %3067
        %3069 = vrot.lane.b32.xlu0 %v3059, 64
        %v3070 = vpop.permute.xlu0 %3069
        %3071 = vrot.lane.b32.xlu0 %v3060, 64
        %v3072 = vpop.permute.xlu0 %3071
        %3073 = vrot.lane.b32.xlu0 %v3061, 64
        %v3074 = vpop.permute.xlu0 %3073
        %3075 = vrot.lane.b32.xlu0 %v3062, 64
        %v3076 = vpop.permute.xlu0 %3075
        %3077 = vrot.lane.b32.xlu0 %v3063, 64
        %v3078 = vpop.permute.xlu0 %3077
        %3079 = vrot.lane.b32.xlu0 %v3064, 64
        %v3080 = vpop.permute.xlu0 %3079
        %v3081 = vadd.f32 %v3049, %v3066
        %v3082 = vadd.f32 %v3050, %v3068
        %v3083 = vadd.f32 %v3051, %v3070
        %v3084 = vadd.f32 %v3052, %v3072
        %v3085 = vadd.f32 %v3053, %v3074
        %v3086 = vadd.f32 %v3054, %v3076
        %v3087 = vadd.f32 %v3055, %v3078
        %v3088 = vadd.f32 %v3056, %v3080
        %v3089 = vpack.c.bf16 %v3082, %v3081
        %v3090 = vpack.c.bf16 %v3084, %v3083
        %v3091 = vpack.c.bf16 %v3086, %v3085
        %v3092 = vpack.c.bf16 %v3088, %v3087
        %s3093 = scalar_lea.vmem %s3, 128
        %v3094 = vld [vmem:[%s3093] sm:$0xf]
        %v3095 = vld [vmem:[%s3093 + $0x4] sm:$0xf]
        %v3096 = vld [vmem:[%s3093 + $0x8] sm:$0xf]
        %v3097 = vld [vmem:[%s3093 + $0xc] sm:$0xf]
        %v3098 = vld [vmem:[%s3093 + $0x10] sm:$0xf]
        %v3099 = vld [vmem:[%s3093 + $0x14] sm:$0xf]
        %v3100 = vld [vmem:[%s3093 + $0x18] sm:$0xf]
        %v3101 = vld [vmem:[%s3093 + $0x1c] sm:$0xf]
        %v3102 = vld [vmem:[%s3093 + $0x20] sm:$0xf]
        %v3103 = vld [vmem:[%s3093 + $0x24] sm:$0xf]
        %v3104 = vld [vmem:[%s3093 + $0x28] sm:$0xf]
        %v3105 = vld [vmem:[%s3093 + $0x2c] sm:$0xf]
        %v3106 = vld [vmem:[%s3093 + $0x30] sm:$0xf]
        %v3107 = vld [vmem:[%s3093 + $0x34] sm:$0xf]
        %v3108 = vld [vmem:[%s3093 + $0x38] sm:$0xf]
        %v3109 = vld [vmem:[%s3093 + $0x3c] sm:$0xf]
        %v3126 = vunpack.c.l.b16 %v3094
        %v3127 = vunpack.c.l.b16 %v3095
        %v3128 = vunpack.c.l.b16 %v3096
        %v3129 = vunpack.c.l.b16 %v3097
        %v3130 = vunpack.c.l.b16 %v3098
        %v3131 = vunpack.c.l.b16 %v3099
        %v3132 = vunpack.c.l.b16 %v3100
        %v3133 = vunpack.c.l.b16 %v3101
        %v3134 = vunpack.c.l.b16 %v3102
        %v3135 = vunpack.c.l.b16 %v3103
        %v3136 = vunpack.c.l.b16 %v3104
        %v3137 = vunpack.c.l.b16 %v3105
        %v3138 = vunpack.c.l.b16 %v3106
        %v3139 = vunpack.c.l.b16 %v3107
        %v3140 = vunpack.c.l.b16 %v3108
        %v3141 = vunpack.c.l.b16 %v3109
        %v3142 = vpack.c.b16 %v3127, %v3126
        %v3143 = vpack.c.b16 %v3129, %v3128
        %v3144 = vpack.c.b16 %v3131, %v3130
        %v3145 = vpack.c.b16 %v3133, %v3132
        %v3146 = vpack.c.b16 %v3135, %v3134
        %v3147 = vpack.c.b16 %v3137, %v3136
        %v3148 = vpack.c.b16 %v3139, %v3138
        %v3149 = vpack.c.b16 %v3141, %v3140
        %3158 = vmatpush.bf16.msra.mxu0 %v3149
        %3159 = vmatpush.bf16.msra.mxu0 %v3148
        %3160 = vmatpush.bf16.msra.mxu0 %v3147
        %3161 = vmatpush.bf16.msra.mxu0 %v3146
        %3162 = vmatpush.bf16.msra.mxu0 %v3145
        %3163 = vmatpush.bf16.msra.mxu0 %v3144
        %3164 = vmatpush.bf16.msra.mxu0 %v3143
        %3165 = vmatpush.bf16.msra.mxu0 %v3142
        %3166 = vmatmul.bf16.gmra.mxu0 %v3089
        %v3167 = vpop.f32.mrf.mxu0
        %v3168 = vadd.f32 0.0, %v3167
        %v3169 = vpop.f32.mrf.mxu0
        %v3170 = vadd.f32 0.0, %v3169
        %3171 = vmatmul.bf16.gmra.mxu0 %v3090
        %v3172 = vpop.f32.mrf.mxu0
        %v3173 = vadd.f32 0.0, %v3172
        %v3174 = vpop.f32.mrf.mxu0
        %v3175 = vadd.f32 0.0, %v3174
        %3176 = vmatmul.bf16.gmra.mxu0 %v3091
        %v3177 = vpop.f32.mrf.mxu0
        %v3178 = vadd.f32 0.0, %v3177
        %v3179 = vpop.f32.mrf.mxu0
        %v3180 = vadd.f32 0.0, %v3179
        %3181 = vmatmul.bf16.gmra.mxu0 %v3092
        %v3182 = vpop.f32.mrf.mxu0
        %v3183 = vadd.f32 0.0, %v3182
        %v3184 = vpop.f32.mrf.mxu0
        %v3185 = vadd.f32 0.0, %v3184
        %3186 = vdwg.mxu0
        %v3187 = vadd.f32 %v2933, %v3168
        %v3188 = vadd.f32 %v2935, %v3170
        %v3189 = vadd.f32 %v2938, %v3173
        %v3190 = vadd.f32 %v2940, %v3175
        %v3191 = vadd.f32 %v2943, %v3178
        %v3192 = vadd.f32 %v2945, %v3180
        %v3193 = vadd.f32 %v2948, %v3183
        %v3194 = vadd.f32 %v2950, %v3185
        %s3195 = scalar_lea.vmem [#allocation2], 48
        %v3196 = vld [vmem:[%s3195] sm:$0xff]
        %v3197 = vld [vmem:[%s3195 + $0x10] sm:$0xff]
        %v3198 = vld [vmem:[%s3195 + $0x20] sm:$0xff]
        %v3199 = vld [vmem:[%s3195 + $0x30] sm:$0xff]
        %v3200 = vld [vmem:[%s3195 + $0x40] sm:$0xff]
        %v3201 = vld [vmem:[%s3195 + $0x50] sm:$0xff]
        %v3202 = vld [vmem:[%s3195 + $0x60] sm:$0xff]
        %v3203 = vld [vmem:[%s3195 + $0x70] sm:$0xff]
        %v3204 = vld [vmem:[%s3195 + $0x1] sm:$0xff]
        %v3205 = vld [vmem:[%s3195 + $0x11] sm:$0xff]
        %v3206 = vld [vmem:[%s3195 + $0x21] sm:$0xff]
        %v3207 = vld [vmem:[%s3195 + $0x31] sm:$0xff]
        %v3208 = vld [vmem:[%s3195 + $0x41] sm:$0xff]
        %v3209 = vld [vmem:[%s3195 + $0x51] sm:$0xff]
        %v3210 = vld [vmem:[%s3195 + $0x61] sm:$0xff]
        %v3211 = vld [vmem:[%s3195 + $0x71] sm:$0xff]
        %3212 = vrot.lane.b32.xlu0 %v3204, 16
        %v3213 = vpop.permute.xlu0 %3212
        %3214 = vrot.lane.b32.xlu0 %v3205, 16
        %v3215 = vpop.permute.xlu0 %3214
        %3216 = vrot.lane.b32.xlu0 %v3206, 16
        %v3217 = vpop.permute.xlu0 %3216
        %3218 = vrot.lane.b32.xlu0 %v3207, 16
        %v3219 = vpop.permute.xlu0 %3218
        %3220 = vrot.lane.b32.xlu0 %v3208, 16
        %v3221 = vpop.permute.xlu0 %3220
        %3222 = vrot.lane.b32.xlu0 %v3209, 16
        %v3223 = vpop.permute.xlu0 %3222
        %3224 = vrot.lane.b32.xlu0 %v3210, 16
        %v3225 = vpop.permute.xlu0 %3224
        %3226 = vrot.lane.b32.xlu0 %v3211, 16
        %v3227 = vpop.permute.xlu0 %3226
        %v3228 = vadd.f32 %v3196, %v3213
        %v3229 = vadd.f32 %v3197, %v3215
        %v3230 = vadd.f32 %v3198, %v3217
        %v3231 = vadd.f32 %v3199, %v3219
        %v3232 = vadd.f32 %v3200, %v3221
        %v3233 = vadd.f32 %v3201, %v3223
        %v3234 = vadd.f32 %v3202, %v3225
        %v3235 = vadd.f32 %v3203, %v3227
        %v3236 = vld [vmem:[%s3195 + $0x2] sm:$0xff]
        %v3237 = vld [vmem:[%s3195 + $0x12] sm:$0xff]
        %v3238 = vld [vmem:[%s3195 + $0x22] sm:$0xff]
        %v3239 = vld [vmem:[%s3195 + $0x32] sm:$0xff]
        %v3240 = vld [vmem:[%s3195 + $0x42] sm:$0xff]
        %v3241 = vld [vmem:[%s3195 + $0x52] sm:$0xff]
        %v3242 = vld [vmem:[%s3195 + $0x62] sm:$0xff]
        %v3243 = vld [vmem:[%s3195 + $0x72] sm:$0xff]
        %3244 = vrot.lane.b32.xlu0 %v3236, 32
        %v3245 = vpop.permute.xlu0 %3244
        %3246 = vrot.lane.b32.xlu0 %v3237, 32
        %v3247 = vpop.permute.xlu0 %3246
        %3248 = vrot.lane.b32.xlu0 %v3238, 32
        %v3249 = vpop.permute.xlu0 %3248
        %3250 = vrot.lane.b32.xlu0 %v3239, 32
        %v3251 = vpop.permute.xlu0 %3250
        %3252 = vrot.lane.b32.xlu0 %v3240, 32
        %v3253 = vpop.permute.xlu0 %3252
        %3254 = vrot.lane.b32.xlu0 %v3241, 32
        %v3255 = vpop.permute.xlu0 %3254
        %3256 = vrot.lane.b32.xlu0 %v3242, 32
        %v3257 = vpop.permute.xlu0 %3256
        %3258 = vrot.lane.b32.xlu0 %v3243, 32
        %v3259 = vpop.permute.xlu0 %3258
        %v3260 = vadd.f32 %v3228, %v3245
        %v3261 = vadd.f32 %v3229, %v3247
        %v3262 = vadd.f32 %v3230, %v3249
        %v3263 = vadd.f32 %v3231, %v3251
        %v3264 = vadd.f32 %v3232, %v3253
        %v3265 = vadd.f32 %v3233, %v3255
        %v3266 = vadd.f32 %v3234, %v3257
        %v3267 = vadd.f32 %v3235, %v3259
        %v3268 = vld [vmem:[%s3195 + $0x3] sm:$0xff]
        %v3269 = vld [vmem:[%s3195 + $0x13] sm:$0xff]
        %v3270 = vld [vmem:[%s3195 + $0x23] sm:$0xff]
        %v3271 = vld [vmem:[%s3195 + $0x33] sm:$0xff]
        %v3272 = vld [vmem:[%s3195 + $0x43] sm:$0xff]
        %v3273 = vld [vmem:[%s3195 + $0x53] sm:$0xff]
        %v3274 = vld [vmem:[%s3195 + $0x63] sm:$0xff]
        %v3275 = vld [vmem:[%s3195 + $0x73] sm:$0xff]
        %3276 = vrot.lane.b32.xlu0 %v3268, 48
        %v3277 = vpop.permute.xlu0 %3276
        %3278 = vrot.lane.b32.xlu0 %v3269, 48
        %v3279 = vpop.permute.xlu0 %3278
        %3280 = vrot.lane.b32.xlu0 %v3270, 48
        %v3281 = vpop.permute.xlu0 %3280
        %3282 = vrot.lane.b32.xlu0 %v3271, 48
        %v3283 = vpop.permute.xlu0 %3282
        %3284 = vrot.lane.b32.xlu0 %v3272, 48
        %v3285 = vpop.permute.xlu0 %3284
        %3286 = vrot.lane.b32.xlu0 %v3273, 48
        %v3287 = vpop.permute.xlu0 %3286
        %3288 = vrot.lane.b32.xlu0 %v3274, 48
        %v3289 = vpop.permute.xlu0 %3288
        %3290 = vrot.lane.b32.xlu0 %v3275, 48
        %v3291 = vpop.permute.xlu0 %3290
        %v3292 = vadd.f32 %v3260, %v3277
        %v3293 = vadd.f32 %v3261, %v3279
        %v3294 = vadd.f32 %v3262, %v3281
        %v3295 = vadd.f32 %v3263, %v3283
        %v3296 = vadd.f32 %v3264, %v3285
        %v3297 = vadd.f32 %v3265, %v3287
        %v3298 = vadd.f32 %v3266, %v3289
        %v3299 = vadd.f32 %v3267, %v3291
        %v3300 = vld [vmem:[%s3195 + $0x4] sm:$0xff]
        %v3301 = vld [vmem:[%s3195 + $0x14] sm:$0xff]
        %v3302 = vld [vmem:[%s3195 + $0x24] sm:$0xff]
        %v3303 = vld [vmem:[%s3195 + $0x34] sm:$0xff]
        %v3304 = vld [vmem:[%s3195 + $0x44] sm:$0xff]
        %v3305 = vld [vmem:[%s3195 + $0x54] sm:$0xff]
        %v3306 = vld [vmem:[%s3195 + $0x64] sm:$0xff]
        %v3307 = vld [vmem:[%s3195 + $0x74] sm:$0xff]
        %3308 = vrot.lane.b32.xlu0 %v3300, 64
        %v3309 = vpop.permute.xlu0 %3308
        %3310 = vrot.lane.b32.xlu0 %v3301, 64
        %v3311 = vpop.permute.xlu0 %3310
        %3312 = vrot.lane.b32.xlu0 %v3302, 64
        %v3313 = vpop.permute.xlu0 %3312
        %3314 = vrot.lane.b32.xlu0 %v3303, 64
        %v3315 = vpop.permute.xlu0 %3314
        %3316 = vrot.lane.b32.xlu0 %v3304, 64
        %v3317 = vpop.permute.xlu0 %3316
        %3318 = vrot.lane.b32.xlu0 %v3305, 64
        %v3319 = vpop.permute.xlu0 %3318
        %3320 = vrot.lane.b32.xlu0 %v3306, 64
        %v3321 = vpop.permute.xlu0 %3320
        %3322 = vrot.lane.b32.xlu0 %v3307, 64
        %v3323 = vpop.permute.xlu0 %3322
        %v3324 = vadd.f32 %v3292, %v3309
        %v3325 = vadd.f32 %v3293, %v3311
        %v3326 = vadd.f32 %v3294, %v3313
        %v3327 = vadd.f32 %v3295, %v3315
        %v3328 = vadd.f32 %v3296, %v3317
        %v3329 = vadd.f32 %v3297, %v3319
        %v3330 = vadd.f32 %v3298, %v3321
        %v3331 = vadd.f32 %v3299, %v3323
        %v3332 = vpack.c.bf16 %v3325, %v3324
        %v3333 = vpack.c.bf16 %v3327, %v3326
        %v3334 = vpack.c.bf16 %v3329, %v3328
        %v3335 = vpack.c.bf16 %v3331, %v3330
        %s3336 = scalar_lea.vmem %s3, 192
        %v3337 = vld [vmem:[%s3336] sm:$0xf]
        %v3338 = vld [vmem:[%s3336 + $0x4] sm:$0xf]
        %v3339 = vld [vmem:[%s3336 + $0x8] sm:$0xf]
        %v3340 = vld [vmem:[%s3336 + $0xc] sm:$0xf]
        %v3341 = vld [vmem:[%s3336 + $0x10] sm:$0xf]
        %v3342 = vld [vmem:[%s3336 + $0x14] sm:$0xf]
        %v3343 = vld [vmem:[%s3336 + $0x18] sm:$0xf]
        %v3344 = vld [vmem:[%s3336 + $0x1c] sm:$0xf]
        %v3345 = vld [vmem:[%s3336 + $0x20] sm:$0xf]
        %v3346 = vld [vmem:[%s3336 + $0x24] sm:$0xf]
        %v3347 = vld [vmem:[%s3336 + $0x28] sm:$0xf]
        %v3348 = vld [vmem:[%s3336 + $0x2c] sm:$0xf]
        %v3349 = vld [vmem:[%s3336 + $0x30] sm:$0xf]
        %v3350 = vld [vmem:[%s3336 + $0x34] sm:$0xf]
        %v3351 = vld [vmem:[%s3336 + $0x38] sm:$0xf]
        %v3352 = vld [vmem:[%s3336 + $0x3c] sm:$0xf]
        %v3369 = vunpack.c.l.b16 %v3337
        %v3370 = vunpack.c.l.b16 %v3338
        %v3371 = vunpack.c.l.b16 %v3339
        %v3372 = vunpack.c.l.b16 %v3340
        %v3373 = vunpack.c.l.b16 %v3341
        %v3374 = vunpack.c.l.b16 %v3342
        %v3375 = vunpack.c.l.b16 %v3343
        %v3376 = vunpack.c.l.b16 %v3344
        %v3377 = vunpack.c.l.b16 %v3345
        %v3378 = vunpack.c.l.b16 %v3346
        %v3379 = vunpack.c.l.b16 %v3347
        %v3380 = vunpack.c.l.b16 %v3348
        %v3381 = vunpack.c.l.b16 %v3349
        %v3382 = vunpack.c.l.b16 %v3350
        %v3383 = vunpack.c.l.b16 %v3351
        %v3384 = vunpack.c.l.b16 %v3352
        %v3385 = vpack.c.b16 %v3370, %v3369
        %v3386 = vpack.c.b16 %v3372, %v3371
        %v3387 = vpack.c.b16 %v3374, %v3373
        %v3388 = vpack.c.b16 %v3376, %v3375
        %v3389 = vpack.c.b16 %v3378, %v3377
        %v3390 = vpack.c.b16 %v3380, %v3379
        %v3391 = vpack.c.b16 %v3382, %v3381
        %v3392 = vpack.c.b16 %v3384, %v3383
        %3401 = vmatpush.bf16.msra.mxu0 %v3392
        %3402 = vmatpush.bf16.msra.mxu0 %v3391
        %3403 = vmatpush.bf16.msra.mxu0 %v3390
        %3404 = vmatpush.bf16.msra.mxu0 %v3389
        %3405 = vmatpush.bf16.msra.mxu0 %v3388
        %3406 = vmatpush.bf16.msra.mxu0 %v3387
        %3407 = vmatpush.bf16.msra.mxu0 %v3386
        %3408 = vmatpush.bf16.msra.mxu0 %v3385
        %3409 = vmatmul.bf16.gmra.mxu0 %v3332
        %v3410 = vpop.f32.mrf.mxu0
        %v3411 = vadd.f32 0.0, %v3410
        %v3412 = vpop.f32.mrf.mxu0
        %v3413 = vadd.f32 0.0, %v3412
        %3414 = vmatmul.bf16.gmra.mxu0 %v3333
        %v3415 = vpop.f32.mrf.mxu0
        %v3416 = vadd.f32 0.0, %v3415
        %v3417 = vpop.f32.mrf.mxu0
        %v3418 = vadd.f32 0.0, %v3417
        %3419 = vmatmul.bf16.gmra.mxu0 %v3334
        %v3420 = vpop.f32.mrf.mxu0
        %v3421 = vadd.f32 0.0, %v3420
        %v3422 = vpop.f32.mrf.mxu0
        %v3423 = vadd.f32 0.0, %v3422
        %3424 = vmatmul.bf16.gmra.mxu0 %v3335
        %v3425 = vpop.f32.mrf.mxu0
        %v3426 = vadd.f32 0.0, %v3425
        %v3427 = vpop.f32.mrf.mxu0
        %v3428 = vadd.f32 0.0, %v3427
        %3429 = vdwg.mxu0
        %v3430 = vadd.f32 %v3187, %v3411
        %v3431 = vadd.f32 %v3188, %v3413
        %v3432 = vadd.f32 %v3189, %v3416
        %v3433 = vadd.f32 %v3190, %v3418
        %v3434 = vadd.f32 %v3191, %v3421
        %v3435 = vadd.f32 %v3192, %v3423
        %v3436 = vadd.f32 %v3193, %v3426
        %v3437 = vadd.f32 %v3194, %v3428
        %v3438 = vld [vmem:[%s1777] sm:$0xff]
        %v3439 = vld [vmem:[%s1777 + $0x10] sm:$0xff]
        %v3440 = vld [vmem:[%s1777 + $0x20] sm:$0xff]
        %v3441 = vld [vmem:[%s1777 + $0x30] sm:$0xff]
        %v3442 = vld [vmem:[%s1777 + $0x40] sm:$0xff]
        %v3443 = vld [vmem:[%s1777 + $0x50] sm:$0xff]
        %v3444 = vld [vmem:[%s1777 + $0x60] sm:$0xff]
        %v3445 = vld [vmem:[%s1777 + $0x70] sm:$0xff]
        %v3446 = vld [vmem:[%s1777 + $0x1] sm:$0xff]
        %v3447 = vld [vmem:[%s1777 + $0x11] sm:$0xff]
        %v3448 = vld [vmem:[%s1777 + $0x21] sm:$0xff]
        %v3449 = vld [vmem:[%s1777 + $0x31] sm:$0xff]
        %v3450 = vld [vmem:[%s1777 + $0x41] sm:$0xff]
        %v3451 = vld [vmem:[%s1777 + $0x51] sm:$0xff]
        %v3452 = vld [vmem:[%s1777 + $0x61] sm:$0xff]
        %v3453 = vld [vmem:[%s1777 + $0x71] sm:$0xff]
        %3454 = vrot.lane.b32.xlu0 %v3446, 16
        %v3455 = vpop.permute.xlu0 %3454
        %3456 = vrot.lane.b32.xlu0 %v3447, 16
        %v3457 = vpop.permute.xlu0 %3456
        %3458 = vrot.lane.b32.xlu0 %v3448, 16
        %v3459 = vpop.permute.xlu0 %3458
        %3460 = vrot.lane.b32.xlu0 %v3449, 16
        %v3461 = vpop.permute.xlu0 %3460
        %3462 = vrot.lane.b32.xlu0 %v3450, 16
        %v3463 = vpop.permute.xlu0 %3462
        %3464 = vrot.lane.b32.xlu0 %v3451, 16
        %v3465 = vpop.permute.xlu0 %3464
        %3466 = vrot.lane.b32.xlu0 %v3452, 16
        %v3467 = vpop.permute.xlu0 %3466
        %3468 = vrot.lane.b32.xlu0 %v3453, 16
        %v3469 = vpop.permute.xlu0 %3468
        %v3470 = vadd.f32 %v3438, %v3455
        %v3471 = vadd.f32 %v3439, %v3457
        %v3472 = vadd.f32 %v3440, %v3459
        %v3473 = vadd.f32 %v3441, %v3461
        %v3474 = vadd.f32 %v3442, %v3463
        %v3475 = vadd.f32 %v3443, %v3465
        %v3476 = vadd.f32 %v3444, %v3467
        %v3477 = vadd.f32 %v3445, %v3469
        %v3478 = vld [vmem:[%s1777 + $0x2] sm:$0xff]
        %v3479 = vld [vmem:[%s1777 + $0x12] sm:$0xff]
        %v3480 = vld [vmem:[%s1777 + $0x22] sm:$0xff]
        %v3481 = vld [vmem:[%s1777 + $0x32] sm:$0xff]
        %v3482 = vld [vmem:[%s1777 + $0x42] sm:$0xff]
        %v3483 = vld [vmem:[%s1777 + $0x52] sm:$0xff]
        %v3484 = vld [vmem:[%s1777 + $0x62] sm:$0xff]
        %v3485 = vld [vmem:[%s1777 + $0x72] sm:$0xff]
        %3486 = vrot.lane.b32.xlu0 %v3478, 32
        %v3487 = vpop.permute.xlu0 %3486
        %3488 = vrot.lane.b32.xlu0 %v3479, 32
        %v3489 = vpop.permute.xlu0 %3488
        %3490 = vrot.lane.b32.xlu0 %v3480, 32
        %v3491 = vpop.permute.xlu0 %3490
        %3492 = vrot.lane.b32.xlu0 %v3481, 32
        %v3493 = vpop.permute.xlu0 %3492
        %3494 = vrot.lane.b32.xlu0 %v3482, 32
        %v3495 = vpop.permute.xlu0 %3494
        %3496 = vrot.lane.b32.xlu0 %v3483, 32
        %v3497 = vpop.permute.xlu0 %3496
        %3498 = vrot.lane.b32.xlu0 %v3484, 32
        %v3499 = vpop.permute.xlu0 %3498
        %3500 = vrot.lane.b32.xlu0 %v3485, 32
        %v3501 = vpop.permute.xlu0 %3500
        %v3502 = vadd.f32 %v3470, %v3487
        %v3503 = vadd.f32 %v3471, %v3489
        %v3504 = vadd.f32 %v3472, %v3491
        %v3505 = vadd.f32 %v3473, %v3493
        %v3506 = vadd.f32 %v3474, %v3495
        %v3507 = vadd.f32 %v3475, %v3497
        %v3508 = vadd.f32 %v3476, %v3499
        %v3509 = vadd.f32 %v3477, %v3501
        %v3510 = vld [vmem:[%s1777 + $0x3] sm:$0xff]
        %v3511 = vld [vmem:[%s1777 + $0x13] sm:$0xff]
        %v3512 = vld [vmem:[%s1777 + $0x23] sm:$0xff]
        %v3513 = vld [vmem:[%s1777 + $0x33] sm:$0xff]
        %v3514 = vld [vmem:[%s1777 + $0x43] sm:$0xff]
        %v3515 = vld [vmem:[%s1777 + $0x53] sm:$0xff]
        %v3516 = vld [vmem:[%s1777 + $0x63] sm:$0xff]
        %v3517 = vld [vmem:[%s1777 + $0x73] sm:$0xff]
        %3518 = vrot.lane.b32.xlu0 %v3510, 48
        %v3519 = vpop.permute.xlu0 %3518
        %3520 = vrot.lane.b32.xlu0 %v3511, 48
        %v3521 = vpop.permute.xlu0 %3520
        %3522 = vrot.lane.b32.xlu0 %v3512, 48
        %v3523 = vpop.permute.xlu0 %3522
        %3524 = vrot.lane.b32.xlu0 %v3513, 48
        %v3525 = vpop.permute.xlu0 %3524
        %3526 = vrot.lane.b32.xlu0 %v3514, 48
        %v3527 = vpop.permute.xlu0 %3526
        %3528 = vrot.lane.b32.xlu0 %v3515, 48
        %v3529 = vpop.permute.xlu0 %3528
        %3530 = vrot.lane.b32.xlu0 %v3516, 48
        %v3531 = vpop.permute.xlu0 %3530
        %3532 = vrot.lane.b32.xlu0 %v3517, 48
        %v3533 = vpop.permute.xlu0 %3532
        %v3534 = vadd.f32 %v3502, %v3519
        %v3535 = vadd.f32 %v3503, %v3521
        %v3536 = vadd.f32 %v3504, %v3523
        %v3537 = vadd.f32 %v3505, %v3525
        %v3538 = vadd.f32 %v3506, %v3527
        %v3539 = vadd.f32 %v3507, %v3529
        %v3540 = vadd.f32 %v3508, %v3531
        %v3541 = vadd.f32 %v3509, %v3533
        %v3542 = vld [vmem:[%s1777 + $0x4] sm:$0xff]
        %v3543 = vld [vmem:[%s1777 + $0x14] sm:$0xff]
        %v3544 = vld [vmem:[%s1777 + $0x24] sm:$0xff]
        %v3545 = vld [vmem:[%s1777 + $0x34] sm:$0xff]
        %v3546 = vld [vmem:[%s1777 + $0x44] sm:$0xff]
        %v3547 = vld [vmem:[%s1777 + $0x54] sm:$0xff]
        %v3548 = vld [vmem:[%s1777 + $0x64] sm:$0xff]
        %v3549 = vld [vmem:[%s1777 + $0x74] sm:$0xff]
        %3550 = vrot.lane.b32.xlu0 %v3542, 64
        %v3551 = vpop.permute.xlu0 %3550
        %3552 = vrot.lane.b32.xlu0 %v3543, 64
        %v3553 = vpop.permute.xlu0 %3552
        %3554 = vrot.lane.b32.xlu0 %v3544, 64
        %v3555 = vpop.permute.xlu0 %3554
        %3556 = vrot.lane.b32.xlu0 %v3545, 64
        %v3557 = vpop.permute.xlu0 %3556
        %3558 = vrot.lane.b32.xlu0 %v3546, 64
        %v3559 = vpop.permute.xlu0 %3558
        %3560 = vrot.lane.b32.xlu0 %v3547, 64
        %v3561 = vpop.permute.xlu0 %3560
        %3562 = vrot.lane.b32.xlu0 %v3548, 64
        %v3563 = vpop.permute.xlu0 %3562
        %3564 = vrot.lane.b32.xlu0 %v3549, 64
        %v3565 = vpop.permute.xlu0 %3564
        %v3566 = vadd.f32 %v3534, %v3551
        %v3567 = vadd.f32 %v3535, %v3553
        %v3568 = vadd.f32 %v3536, %v3555
        %v3569 = vadd.f32 %v3537, %v3557
        %v3570 = vadd.f32 %v3538, %v3559
        %v3571 = vadd.f32 %v3539, %v3561
        %v3572 = vadd.f32 %v3540, %v3563
        %v3573 = vadd.f32 %v3541, %v3565
        %v3574 = vpack.c.bf16 %v3567, %v3566
        %v3575 = vpack.c.bf16 %v3569, %v3568
        %v3576 = vpack.c.bf16 %v3571, %v3570
        %v3577 = vpack.c.bf16 %v3573, %v3572
        %s3578 = scalar_lea.vmem %s3, 256
        %v3579 = vld [vmem:[%s3578] sm:$0xf]
        %v3580 = vld [vmem:[%s3578 + $0x4] sm:$0xf]
        %v3581 = vld [vmem:[%s3578 + $0x8] sm:$0xf]
        %v3582 = vld [vmem:[%s3578 + $0xc] sm:$0xf]
        %v3583 = vld [vmem:[%s3578 + $0x10] sm:$0xf]
        %v3584 = vld [vmem:[%s3578 + $0x14] sm:$0xf]
        %v3585 = vld [vmem:[%s3578 + $0x18] sm:$0xf]
        %v3586 = vld [vmem:[%s3578 + $0x1c] sm:$0xf]
        %v3587 = vld [vmem:[%s3578 + $0x20] sm:$0xf]
        %v3588 = vld [vmem:[%s3578 + $0x24] sm:$0xf]
        %v3589 = vld [vmem:[%s3578 + $0x28] sm:$0xf]
        %v3590 = vld [vmem:[%s3578 + $0x2c] sm:$0xf]
        %v3591 = vld [vmem:[%s3578 + $0x30] sm:$0xf]
        %v3592 = vld [vmem:[%s3578 + $0x34] sm:$0xf]
        %v3593 = vld [vmem:[%s3578 + $0x38] sm:$0xf]
        %v3594 = vld [vmem:[%s3578 + $0x3c] sm:$0xf]
        %v3611 = vunpack.c.l.b16 %v3579
        %v3612 = vunpack.c.l.b16 %v3580
        %v3613 = vunpack.c.l.b16 %v3581
        %v3614 = vunpack.c.l.b16 %v3582
        %v3615 = vunpack.c.l.b16 %v3583
        %v3616 = vunpack.c.l.b16 %v3584
        %v3617 = vunpack.c.l.b16 %v3585
        %v3618 = vunpack.c.l.b16 %v3586
        %v3619 = vunpack.c.l.b16 %v3587
        %v3620 = vunpack.c.l.b16 %v3588
        %v3621 = vunpack.c.l.b16 %v3589
        %v3622 = vunpack.c.l.b16 %v3590
        %v3623 = vunpack.c.l.b16 %v3591
        %v3624 = vunpack.c.l.b16 %v3592
        %v3625 = vunpack.c.l.b16 %v3593
        %v3626 = vunpack.c.l.b16 %v3594
        %v3627 = vpack.c.b16 %v3612, %v3611
        %v3628 = vpack.c.b16 %v3614, %v3613
        %v3629 = vpack.c.b16 %v3616, %v3615
        %v3630 = vpack.c.b16 %v3618, %v3617
        %v3631 = vpack.c.b16 %v3620, %v3619
        %v3632 = vpack.c.b16 %v3622, %v3621
        %v3633 = vpack.c.b16 %v3624, %v3623
        %v3634 = vpack.c.b16 %v3626, %v3625
        %3643 = vmatpush.bf16.msra.mxu0 %v3634
        %3644 = vmatpush.bf16.msra.mxu0 %v3633
        %3645 = vmatpush.bf16.msra.mxu0 %v3632
        %3646 = vmatpush.bf16.msra.mxu0 %v3631
        %3647 = vmatpush.bf16.msra.mxu0 %v3630
        %3648 = vmatpush.bf16.msra.mxu0 %v3629
        %3649 = vmatpush.bf16.msra.mxu0 %v3628
        %3650 = vmatpush.bf16.msra.mxu0 %v3627
        %3651 = vmatmul.bf16.gmra.mxu0 %v3574
        %v3652 = vpop.f32.mrf.mxu0
        %v3653 = vadd.f32 0.0, %v3652
        %v3654 = vpop.f32.mrf.mxu0
        %v3655 = vadd.f32 0.0, %v3654
        %3656 = vmatmul.bf16.gmra.mxu0 %v3575
        %v3657 = vpop.f32.mrf.mxu0
        %v3658 = vadd.f32 0.0, %v3657
        %v3659 = vpop.f32.mrf.mxu0
        %v3660 = vadd.f32 0.0, %v3659
        %3661 = vmatmul.bf16.gmra.mxu0 %v3576
        %v3662 = vpop.f32.mrf.mxu0
        %v3663 = vadd.f32 0.0, %v3662
        %v3664 = vpop.f32.mrf.mxu0
        %v3665 = vadd.f32 0.0, %v3664
        %3666 = vmatmul.bf16.gmra.mxu0 %v3577
        %v3667 = vpop.f32.mrf.mxu0
        %v3668 = vadd.f32 0.0, %v3667
        %v3669 = vpop.f32.mrf.mxu0
        %v3670 = vadd.f32 0.0, %v3669
        %3671 = vdwg.mxu0
        %v3672 = vadd.f32 %v3430, %v3653
        %v3673 = vadd.f32 %v3431, %v3655
        %v3674 = vadd.f32 %v3432, %v3658
        %v3675 = vadd.f32 %v3433, %v3660
        %v3676 = vadd.f32 %v3434, %v3663
        %v3677 = vadd.f32 %v3435, %v3665
        %v3678 = vadd.f32 %v3436, %v3668
        %v3679 = vadd.f32 %v3437, %v3670
        %v3680 = vld [vmem:[%s4] sm:$0x1]
        %v3682 = vperm.slane %v3680, 0
        %v3684 = vadd.f32 %v3672, %v3682
        %v3685 = vadd.f32 %v3673, %v3682
        %v3686 = vadd.f32 %v3674, %v3682
        %v3687 = vadd.f32 %v3675, %v3682
        %v3688 = vadd.f32 %v3676, %v3682
        %v3689 = vadd.f32 %v3677, %v3682
        %v3690 = vadd.f32 %v3678, %v3682
        %v3691 = vadd.f32 %v3679, %v3682
        %v3692 = vmax.f32 %v3684, 0.0
        %v3693 = vmax.f32 %v3685, 0.0
        %v3694 = vmax.f32 %v3686, 0.0
        %v3695 = vmax.f32 %v3687, 0.0
        %v3696 = vmax.f32 %v3688, 0.0
        %v3697 = vmax.f32 %v3689, 0.0
        %v3698 = vmax.f32 %v3690, 0.0
        %v3699 = vmax.f32 %v3691, 0.0
        %v3700 = vmax.f32 %v3692, %v3693
        %v3701 = vmax.f32 %v3694, %v3695
        %v3702 = vmax.f32 %v3696, %v3697
        %v3703 = vmax.f32 %v3698, %v3699
        %v3708 = vrot.slane %v3700, 2
        %v3709 = vrot.slane %v3700, 4
        %v3710 = vrot.slane %v3700, 6
        %v3711 = vrot.slane %v3701, 2
        %v3712 = vrot.slane %v3701, 4
        %v3713 = vrot.slane %v3701, 6
        %v3714 = vrot.slane %v3702, 2
        %v3715 = vrot.slane %v3702, 4
        %v3716 = vrot.slane %v3702, 6
        %v3717 = vrot.slane %v3703, 2
        %v3718 = vrot.slane %v3703, 4
        %v3719 = vrot.slane %v3703, 6
        %v3732 = vrot.slane %v3700, 7
        %v3733 = vrot.slane %v3732, 2
        %v3734 = vrot.slane %v3708, 7
        %v3735 = vrot.slane %v3734, 2
        %v3736 = vrot.slane %v3709, 7
        %v3737 = vrot.slane %v3736, 2
        %v3738 = vrot.slane %v3710, 7
        %v3739 = vrot.slane %v3738, 2
        %v3740 = vrot.slane %v3701, 7
        %v3741 = vrot.slane %v3740, 2
        %v3742 = vrot.slane %v3711, 7
        %v3743 = vrot.slane %v3742, 2
        %v3744 = vrot.slane %v3712, 7
        %v3745 = vrot.slane %v3744, 2
        %v3746 = vrot.slane %v3713, 7
        %v3747 = vrot.slane %v3746, 2
        %v3748 = vrot.slane %v3702, 7
        %v3749 = vrot.slane %v3748, 2
        %v3750 = vrot.slane %v3714, 7
        %v3751 = vrot.slane %v3750, 2
        %v3752 = vrot.slane %v3715, 7
        %v3753 = vrot.slane %v3752, 2
        %v3754 = vrot.slane %v3716, 7
        %v3755 = vrot.slane %v3754, 2
        %v3756 = vrot.slane %v3703, 7
        %v3757 = vrot.slane %v3756, 2
        %v3758 = vrot.slane %v3717, 7
        %v3759 = vrot.slane %v3758, 2
        %v3760 = vrot.slane %v3718, 7
        %v3761 = vrot.slane %v3760, 2
        %v3762 = vrot.slane %v3719, 7
        %v3763 = vrot.slane %v3762, 2
        %v3780 = vmax.f32 %v3700, %v3733
        %v3781 = vmax.f32 %v3708, %v3735
        %v3782 = vmax.f32 %v3709, %v3737
        %v3783 = vmax.f32 %v3710, %v3739
        %v3784 = vmax.f32 %v3701, %v3741
        %v3785 = vmax.f32 %v3711, %v3743
        %v3786 = vmax.f32 %v3712, %v3745
        %v3787 = vmax.f32 %v3713, %v3747
        %v3788 = vmax.f32 %v3702, %v3749
        %v3789 = vmax.f32 %v3714, %v3751
        %v3790 = vmax.f32 %v3715, %v3753
        %v3791 = vmax.f32 %v3716, %v3755
        %v3792 = vmax.f32 %v3703, %v3757
        %v3793 = vmax.f32 %v3717, %v3759
        %v3794 = vmax.f32 %v3718, %v3761
        %v3795 = vmax.f32 %v3719, %v3763
        %v3796 = vpack.c.bf16 %v3780, %v3780
        %v3797 = vld [vmem:[%s5] sm:$0xf]
        %v3798 = vld [vmem:[%s5 + $0x4] sm:$0xf]
        %v3799 = vld [vmem:[%s5 + $0x8] sm:$0xf]
        %v3800 = vld [vmem:[%s5 + $0xc] sm:$0xf]
        %v3801 = vld [vmem:[%s5 + $0x10] sm:$0xf]
        %v3802 = vld [vmem:[%s5 + $0x14] sm:$0xf]
        %v3803 = vld [vmem:[%s5 + $0x18] sm:$0xf]
        %v3804 = vld [vmem:[%s5 + $0x1c] sm:$0xf]
        %v3805 = vld [vmem:[%s5 + $0x20] sm:$0xf]
        %v3806 = vld [vmem:[%s5 + $0x24] sm:$0xf]
        %v3807 = vld [vmem:[%s5 + $0x28] sm:$0xf]
        %v3808 = vld [vmem:[%s5 + $0x2c] sm:$0xf]
        %v3809 = vld [vmem:[%s5 + $0x30] sm:$0xf]
        %v3810 = vld [vmem:[%s5 + $0x34] sm:$0xf]
        %v3811 = vld [vmem:[%s5 + $0x38] sm:$0xf]
        %v3812 = vld [vmem:[%s5 + $0x3c] sm:$0xf]
        %v3813 = vpack.c.bf16 %v3781, %v3781
        %s3814 = scalar_lea.vmem %s5, 64
        %v3815 = vld [vmem:[%s3814] sm:$0xf]
        %v3816 = vld [vmem:[%s3814 + $0x4] sm:$0xf]
        %v3817 = vld [vmem:[%s3814 + $0x8] sm:$0xf]
        %v3818 = vld [vmem:[%s3814 + $0xc] sm:$0xf]
        %v3819 = vld [vmem:[%s3814 + $0x10] sm:$0xf]
        %v3820 = vld [vmem:[%s3814 + $0x14] sm:$0xf]
        %v3821 = vld [vmem:[%s3814 + $0x18] sm:$0xf]
        %v3822 = vld [vmem:[%s3814 + $0x1c] sm:$0xf]
        %v3823 = vld [vmem:[%s3814 + $0x20] sm:$0xf]
        %v3824 = vld [vmem:[%s3814 + $0x24] sm:$0xf]
        %v3825 = vld [vmem:[%s3814 + $0x28] sm:$0xf]
        %v3826 = vld [vmem:[%s3814 + $0x2c] sm:$0xf]
        %v3827 = vld [vmem:[%s3814 + $0x30] sm:$0xf]
        %v3828 = vld [vmem:[%s3814 + $0x34] sm:$0xf]
        %v3829 = vld [vmem:[%s3814 + $0x38] sm:$0xf]
        %v3830 = vld [vmem:[%s3814 + $0x3c] sm:$0xf]
        %v3847 = vunpack.c.l.b16 %v3815
        %v3848 = vunpack.c.l.b16 %v3816
        %v3849 = vunpack.c.l.b16 %v3817
        %v3850 = vunpack.c.l.b16 %v3818
        %v3851 = vunpack.c.l.b16 %v3819
        %v3852 = vunpack.c.l.b16 %v3820
        %v3853 = vunpack.c.l.b16 %v3821
        %v3854 = vunpack.c.l.b16 %v3822
        %v3855 = vunpack.c.l.b16 %v3823
        %v3856 = vunpack.c.l.b16 %v3824
        %v3857 = vunpack.c.l.b16 %v3825
        %v3858 = vunpack.c.l.b16 %v3826
        %v3859 = vunpack.c.l.b16 %v3827
        %v3860 = vunpack.c.l.b16 %v3828
        %v3861 = vunpack.c.l.b16 %v3829
        %v3862 = vunpack.c.l.b16 %v3830
        %v3863 = vpack.c.b16 %v3848, %v3847
        %v3864 = vpack.c.b16 %v3850, %v3849
        %v3865 = vpack.c.b16 %v3852, %v3851
        %v3866 = vpack.c.b16 %v3854, %v3853
        %v3867 = vpack.c.b16 %v3856, %v3855
        %v3868 = vpack.c.b16 %v3858, %v3857
        %v3869 = vpack.c.b16 %v3860, %v3859
        %v3870 = vpack.c.b16 %v3862, %v3861
        %3879 = vmatpush.bf16.msra.mxu0 %v3870
        %3880 = vmatpush.bf16.msra.mxu0 %v3869
        %3881 = vmatpush.bf16.msra.mxu0 %v3868
        %3882 = vmatpush.bf16.msra.mxu0 %v3867
        %3883 = vmatpush.bf16.msra.mxu0 %v3866
        %3884 = vmatpush.bf16.msra.mxu0 %v3865
        %3885 = vmatpush.bf16.msra.mxu0 %v3864
        %3886 = vmatpush.bf16.msra.mxu0 %v3863
        %3887 = vmatmul.bf16.gmra.mxu0 %v3813
        %v3888 = vpop.f32.mrf.mxu0
        %v3889 = vadd.f32 0.0, %v3888
        %v3890 = vpop.f32.mrf.mxu0
        %3891 = vdwg.mxu0
        %v3908 = vunpack.c.l.b16 %v3797
        %v3909 = vunpack.c.l.b16 %v3798
        %v3910 = vunpack.c.l.b16 %v3799
        %v3911 = vunpack.c.l.b16 %v3800
        %v3912 = vunpack.c.l.b16 %v3801
        %v3913 = vunpack.c.l.b16 %v3802
        %v3914 = vunpack.c.l.b16 %v3803
        %v3915 = vunpack.c.l.b16 %v3804
        %v3916 = vunpack.c.l.b16 %v3805
        %v3917 = vunpack.c.l.b16 %v3806
        %v3918 = vunpack.c.l.b16 %v3807
        %v3919 = vunpack.c.l.b16 %v3808
        %v3920 = vunpack.c.l.b16 %v3809
        %v3921 = vunpack.c.l.b16 %v3810
        %v3922 = vunpack.c.l.b16 %v3811
        %v3923 = vunpack.c.l.b16 %v3812
        %v3924 = vpack.c.b16 %v3909, %v3908
        %v3925 = vpack.c.b16 %v3911, %v3910
        %v3926 = vpack.c.b16 %v3913, %v3912
        %v3927 = vpack.c.b16 %v3915, %v3914
        %v3928 = vpack.c.b16 %v3917, %v3916
        %v3929 = vpack.c.b16 %v3919, %v3918
        %v3930 = vpack.c.b16 %v3921, %v3920
        %v3931 = vpack.c.b16 %v3923, %v3922
        %3940 = vmatpush.bf16.msra.mxu0 %v3931
        %3941 = vmatpush.bf16.msra.mxu0 %v3930
        %3942 = vmatpush.bf16.msra.mxu0 %v3929
        %3943 = vmatpush.bf16.msra.mxu0 %v3928
        %3944 = vmatpush.bf16.msra.mxu0 %v3927
        %3945 = vmatpush.bf16.msra.mxu0 %v3926
        %3946 = vmatpush.bf16.msra.mxu0 %v3925
        %3947 = vmatpush.bf16.msra.mxu0 %v3924
        %3948 = vmatmul.bf16.gmra.mxu0 %v3796
        %v3949 = vpop.f32.mrf.mxu0
        %v3950 = vadd.f32 %v3889, %v3949
        %v3951 = vpop.f32.mrf.mxu0
        %3952 = vdwg.mxu0
        %v3953 = vpack.c.bf16 %v3782, %v3782
        %s3954 = scalar_lea.vmem %s5, 128
        %v3955 = vld [vmem:[%s3954] sm:$0xf]
        %v3956 = vld [vmem:[%s3954 + $0x4] sm:$0xf]
        %v3957 = vld [vmem:[%s3954 + $0x8] sm:$0xf]
        %v3958 = vld [vmem:[%s3954 + $0xc] sm:$0xf]
        %v3959 = vld [vmem:[%s3954 + $0x10] sm:$0xf]
        %v3960 = vld [vmem:[%s3954 + $0x14] sm:$0xf]
        %v3961 = vld [vmem:[%s3954 + $0x18] sm:$0xf]
        %v3962 = vld [vmem:[%s3954 + $0x1c] sm:$0xf]
        %v3963 = vld [vmem:[%s3954 + $0x20] sm:$0xf]
        %v3964 = vld [vmem:[%s3954 + $0x24] sm:$0xf]
        %v3965 = vld [vmem:[%s3954 + $0x28] sm:$0xf]
        %v3966 = vld [vmem:[%s3954 + $0x2c] sm:$0xf]
        %v3967 = vld [vmem:[%s3954 + $0x30] sm:$0xf]
        %v3968 = vld [vmem:[%s3954 + $0x34] sm:$0xf]
        %v3969 = vld [vmem:[%s3954 + $0x38] sm:$0xf]
        %v3970 = vld [vmem:[%s3954 + $0x3c] sm:$0xf]
        %v3987 = vunpack.c.l.b16 %v3955
        %v3988 = vunpack.c.l.b16 %v3956
        %v3989 = vunpack.c.l.b16 %v3957
        %v3990 = vunpack.c.l.b16 %v3958
        %v3991 = vunpack.c.l.b16 %v3959
        %v3992 = vunpack.c.l.b16 %v3960
        %v3993 = vunpack.c.l.b16 %v3961
        %v3994 = vunpack.c.l.b16 %v3962
        %v3995 = vunpack.c.l.b16 %v3963
        %v3996 = vunpack.c.l.b16 %v3964
        %v3997 = vunpack.c.l.b16 %v3965
        %v3998 = vunpack.c.l.b16 %v3966
        %v3999 = vunpack.c.l.b16 %v3967
        %v4000 = vunpack.c.l.b16 %v3968
        %v4001 = vunpack.c.l.b16 %v3969
        %v4002 = vunpack.c.l.b16 %v3970
        %v4003 = vpack.c.b16 %v3988, %v3987
        %v4004 = vpack.c.b16 %v3990, %v3989
        %v4005 = vpack.c.b16 %v3992, %v3991
        %v4006 = vpack.c.b16 %v3994, %v3993
        %v4007 = vpack.c.b16 %v3996, %v3995
        %v4008 = vpack.c.b16 %v3998, %v3997
        %v4009 = vpack.c.b16 %v4000, %v3999
        %v4010 = vpack.c.b16 %v4002, %v4001
        %4019 = vmatpush.bf16.msra.mxu0 %v4010
        %4020 = vmatpush.bf16.msra.mxu0 %v4009
        %4021 = vmatpush.bf16.msra.mxu0 %v4008
        %4022 = vmatpush.bf16.msra.mxu0 %v4007
        %4023 = vmatpush.bf16.msra.mxu0 %v4006
        %4024 = vmatpush.bf16.msra.mxu0 %v4005
        %4025 = vmatpush.bf16.msra.mxu0 %v4004
        %4026 = vmatpush.bf16.msra.mxu0 %v4003
        %4027 = vmatmul.bf16.gmra.mxu0 %v3953
        %v4028 = vpop.f32.mrf.mxu0
        %v4029 = vadd.f32 0.0, %v4028
        %v4030 = vpop.f32.mrf.mxu0
        %4031 = vdwg.mxu0
        %v4032 = vadd.f32 %v3950, %v4029
        %v4033 = vpack.c.bf16 %v3783, %v3783
        %s4034 = scalar_lea.vmem %s5, 192
        %v4035 = vld [vmem:[%s4034] sm:$0xf]
        %v4036 = vld [vmem:[%s4034 + $0x4] sm:$0xf]
        %v4037 = vld [vmem:[%s4034 + $0x8] sm:$0xf]
        %v4038 = vld [vmem:[%s4034 + $0xc] sm:$0xf]
        %v4039 = vld [vmem:[%s4034 + $0x10] sm:$0xf]
        %v4040 = vld [vmem:[%s4034 + $0x14] sm:$0xf]
        %v4041 = vld [vmem:[%s4034 + $0x18] sm:$0xf]
        %v4042 = vld [vmem:[%s4034 + $0x1c] sm:$0xf]
        %v4043 = vld [vmem:[%s4034 + $0x20] sm:$0xf]
        %v4044 = vld [vmem:[%s4034 + $0x24] sm:$0xf]
        %v4045 = vld [vmem:[%s4034 + $0x28] sm:$0xf]
        %v4046 = vld [vmem:[%s4034 + $0x2c] sm:$0xf]
        %v4047 = vld [vmem:[%s4034 + $0x30] sm:$0xf]
        %v4048 = vld [vmem:[%s4034 + $0x34] sm:$0xf]
        %v4049 = vld [vmem:[%s4034 + $0x38] sm:$0xf]
        %v4050 = vld [vmem:[%s4034 + $0x3c] sm:$0xf]
        %v4067 = vunpack.c.l.b16 %v4035
        %v4068 = vunpack.c.l.b16 %v4036
        %v4069 = vunpack.c.l.b16 %v4037
        %v4070 = vunpack.c.l.b16 %v4038
        %v4071 = vunpack.c.l.b16 %v4039
        %v4072 = vunpack.c.l.b16 %v4040
        %v4073 = vunpack.c.l.b16 %v4041
        %v4074 = vunpack.c.l.b16 %v4042
        %v4075 = vunpack.c.l.b16 %v4043
        %v4076 = vunpack.c.l.b16 %v4044
        %v4077 = vunpack.c.l.b16 %v4045
        %v4078 = vunpack.c.l.b16 %v4046
        %v4079 = vunpack.c.l.b16 %v4047
        %v4080 = vunpack.c.l.b16 %v4048
        %v4081 = vunpack.c.l.b16 %v4049
        %v4082 = vunpack.c.l.b16 %v4050
        %v4083 = vpack.c.b16 %v4068, %v4067
        %v4084 = vpack.c.b16 %v4070, %v4069
        %v4085 = vpack.c.b16 %v4072, %v4071
        %v4086 = vpack.c.b16 %v4074, %v4073
        %v4087 = vpack.c.b16 %v4076, %v4075
        %v4088 = vpack.c.b16 %v4078, %v4077
        %v4089 = vpack.c.b16 %v4080, %v4079
        %v4090 = vpack.c.b16 %v4082, %v4081
        %4099 = vmatpush.bf16.msra.mxu0 %v4090
        %4100 = vmatpush.bf16.msra.mxu0 %v4089
        %4101 = vmatpush.bf16.msra.mxu0 %v4088
        %4102 = vmatpush.bf16.msra.mxu0 %v4087
        %4103 = vmatpush.bf16.msra.mxu0 %v4086
        %4104 = vmatpush.bf16.msra.mxu0 %v4085
        %4105 = vmatpush.bf16.msra.mxu0 %v4084
        %4106 = vmatpush.bf16.msra.mxu0 %v4083
        %4107 = vmatmul.bf16.gmra.mxu0 %v4033
        %v4108 = vpop.f32.mrf.mxu0
        %v4109 = vadd.f32 0.0, %v4108
        %v4110 = vpop.f32.mrf.mxu0
        %4111 = vdwg.mxu0
        %v4112 = vadd.f32 %v4032, %v4109
        %v4113 = vpack.c.bf16 %v3784, %v3784
        %s4114 = scalar_lea.vmem %s5, 256
        %v4115 = vld [vmem:[%s4114] sm:$0xf]
        %v4116 = vld [vmem:[%s4114 + $0x4] sm:$0xf]
        %v4117 = vld [vmem:[%s4114 + $0x8] sm:$0xf]
        %v4118 = vld [vmem:[%s4114 + $0xc] sm:$0xf]
        %v4119 = vld [vmem:[%s4114 + $0x10] sm:$0xf]
        %v4120 = vld [vmem:[%s4114 + $0x14] sm:$0xf]
        %v4121 = vld [vmem:[%s4114 + $0x18] sm:$0xf]
        %v4122 = vld [vmem:[%s4114 + $0x1c] sm:$0xf]
        %v4123 = vld [vmem:[%s4114 + $0x20] sm:$0xf]
        %v4124 = vld [vmem:[%s4114 + $0x24] sm:$0xf]
        %v4125 = vld [vmem:[%s4114 + $0x28] sm:$0xf]
        %v4126 = vld [vmem:[%s4114 + $0x2c] sm:$0xf]
        %v4127 = vld [vmem:[%s4114 + $0x30] sm:$0xf]
        %v4128 = vld [vmem:[%s4114 + $0x34] sm:$0xf]
        %v4129 = vld [vmem:[%s4114 + $0x38] sm:$0xf]
        %v4130 = vld [vmem:[%s4114 + $0x3c] sm:$0xf]
        %v4147 = vunpack.c.l.b16 %v4115
        %v4148 = vunpack.c.l.b16 %v4116
        %v4149 = vunpack.c.l.b16 %v4117
        %v4150 = vunpack.c.l.b16 %v4118
        %v4151 = vunpack.c.l.b16 %v4119
        %v4152 = vunpack.c.l.b16 %v4120
        %v4153 = vunpack.c.l.b16 %v4121
        %v4154 = vunpack.c.l.b16 %v4122
        %v4155 = vunpack.c.l.b16 %v4123
        %v4156 = vunpack.c.l.b16 %v4124
        %v4157 = vunpack.c.l.b16 %v4125
        %v4158 = vunpack.c.l.b16 %v4126
        %v4159 = vunpack.c.l.b16 %v4127
        %v4160 = vunpack.c.l.b16 %v4128
        %v4161 = vunpack.c.l.b16 %v4129
        %v4162 = vunpack.c.l.b16 %v4130
        %v4163 = vpack.c.b16 %v4148, %v4147
        %v4164 = vpack.c.b16 %v4150, %v4149
        %v4165 = vpack.c.b16 %v4152, %v4151
        %v4166 = vpack.c.b16 %v4154, %v4153
        %v4167 = vpack.c.b16 %v4156, %v4155
        %v4168 = vpack.c.b16 %v4158, %v4157
        %v4169 = vpack.c.b16 %v4160, %v4159
        %v4170 = vpack.c.b16 %v4162, %v4161
        %4179 = vmatpush.bf16.msra.mxu0 %v4170
        %4180 = vmatpush.bf16.msra.mxu0 %v4169
        %4181 = vmatpush.bf16.msra.mxu0 %v4168
        %4182 = vmatpush.bf16.msra.mxu0 %v4167
        %4183 = vmatpush.bf16.msra.mxu0 %v4166
        %4184 = vmatpush.bf16.msra.mxu0 %v4165
        %4185 = vmatpush.bf16.msra.mxu0 %v4164
        %4186 = vmatpush.bf16.msra.mxu0 %v4163
        %4187 = vmatmul.bf16.gmra.mxu0 %v4113
        %v4188 = vpop.f32.mrf.mxu0
        %v4189 = vadd.f32 0.0, %v4188
        %v4190 = vpop.f32.mrf.mxu0
        %4191 = vdwg.mxu0
        %v4192 = vadd.f32 %v4112, %v4189
        %v4193 = vpack.c.bf16 %v3785, %v3785
        %s4194 = scalar_lea.vmem %s5, 320
        %v4195 = vld [vmem:[%s4194] sm:$0xf]
        %v4196 = vld [vmem:[%s4194 + $0x4] sm:$0xf]
        %v4197 = vld [vmem:[%s4194 + $0x8] sm:$0xf]
        %v4198 = vld [vmem:[%s4194 + $0xc] sm:$0xf]
        %v4199 = vld [vmem:[%s4194 + $0x10] sm:$0xf]
        %v4200 = vld [vmem:[%s4194 + $0x14] sm:$0xf]
        %v4201 = vld [vmem:[%s4194 + $0x18] sm:$0xf]
        %v4202 = vld [vmem:[%s4194 + $0x1c] sm:$0xf]
        %v4203 = vld [vmem:[%s4194 + $0x20] sm:$0xf]
        %v4204 = vld [vmem:[%s4194 + $0x24] sm:$0xf]
        %v4205 = vld [vmem:[%s4194 + $0x28] sm:$0xf]
        %v4206 = vld [vmem:[%s4194 + $0x2c] sm:$0xf]
        %v4207 = vld [vmem:[%s4194 + $0x30] sm:$0xf]
        %v4208 = vld [vmem:[%s4194 + $0x34] sm:$0xf]
        %v4209 = vld [vmem:[%s4194 + $0x38] sm:$0xf]
        %v4210 = vld [vmem:[%s4194 + $0x3c] sm:$0xf]
        %v4227 = vunpack.c.l.b16 %v4195
        %v4228 = vunpack.c.l.b16 %v4196
        %v4229 = vunpack.c.l.b16 %v4197
        %v4230 = vunpack.c.l.b16 %v4198
        %v4231 = vunpack.c.l.b16 %v4199
        %v4232 = vunpack.c.l.b16 %v4200
        %v4233 = vunpack.c.l.b16 %v4201
        %v4234 = vunpack.c.l.b16 %v4202
        %v4235 = vunpack.c.l.b16 %v4203
        %v4236 = vunpack.c.l.b16 %v4204
        %v4237 = vunpack.c.l.b16 %v4205
        %v4238 = vunpack.c.l.b16 %v4206
        %v4239 = vunpack.c.l.b16 %v4207
        %v4240 = vunpack.c.l.b16 %v4208
        %v4241 = vunpack.c.l.b16 %v4209
        %v4242 = vunpack.c.l.b16 %v4210
        %v4243 = vpack.c.b16 %v4228, %v4227
        %v4244 = vpack.c.b16 %v4230, %v4229
        %v4245 = vpack.c.b16 %v4232, %v4231
        %v4246 = vpack.c.b16 %v4234, %v4233
        %v4247 = vpack.c.b16 %v4236, %v4235
        %v4248 = vpack.c.b16 %v4238, %v4237
        %v4249 = vpack.c.b16 %v4240, %v4239
        %v4250 = vpack.c.b16 %v4242, %v4241
        %4259 = vmatpush.bf16.msra.mxu0 %v4250
        %4260 = vmatpush.bf16.msra.mxu0 %v4249
        %4261 = vmatpush.bf16.msra.mxu0 %v4248
        %4262 = vmatpush.bf16.msra.mxu0 %v4247
        %4263 = vmatpush.bf16.msra.mxu0 %v4246
        %4264 = vmatpush.bf16.msra.mxu0 %v4245
        %4265 = vmatpush.bf16.msra.mxu0 %v4244
        %4266 = vmatpush.bf16.msra.mxu0 %v4243
        %4267 = vmatmul.bf16.gmra.mxu0 %v4193
        %v4268 = vpop.f32.mrf.mxu0
        %v4269 = vadd.f32 0.0, %v4268
        %v4270 = vpop.f32.mrf.mxu0
        %4271 = vdwg.mxu0
        %v4272 = vadd.f32 %v4192, %v4269
        %v4273 = vpack.c.bf16 %v3786, %v3786
        %s4274 = scalar_lea.vmem %s5, 384
        %v4275 = vld [vmem:[%s4274] sm:$0xf]
        %v4276 = vld [vmem:[%s4274 + $0x4] sm:$0xf]
        %v4277 = vld [vmem:[%s4274 + $0x8] sm:$0xf]
        %v4278 = vld [vmem:[%s4274 + $0xc] sm:$0xf]
        %v4279 = vld [vmem:[%s4274 + $0x10] sm:$0xf]
        %v4280 = vld [vmem:[%s4274 + $0x14] sm:$0xf]
        %v4281 = vld [vmem:[%s4274 + $0x18] sm:$0xf]
        %v4282 = vld [vmem:[%s4274 + $0x1c] sm:$0xf]
        %v4283 = vld [vmem:[%s4274 + $0x20] sm:$0xf]
        %v4284 = vld [vmem:[%s4274 + $0x24] sm:$0xf]
        %v4285 = vld [vmem:[%s4274 + $0x28] sm:$0xf]
        %v4286 = vld [vmem:[%s4274 + $0x2c] sm:$0xf]
        %v4287 = vld [vmem:[%s4274 + $0x30] sm:$0xf]
        %v4288 = vld [vmem:[%s4274 + $0x34] sm:$0xf]
        %v4289 = vld [vmem:[%s4274 + $0x38] sm:$0xf]
        %v4290 = vld [vmem:[%s4274 + $0x3c] sm:$0xf]
        %v4307 = vunpack.c.l.b16 %v4275
        %v4308 = vunpack.c.l.b16 %v4276
        %v4309 = vunpack.c.l.b16 %v4277
        %v4310 = vunpack.c.l.b16 %v4278
        %v4311 = vunpack.c.l.b16 %v4279
        %v4312 = vunpack.c.l.b16 %v4280
        %v4313 = vunpack.c.l.b16 %v4281
        %v4314 = vunpack.c.l.b16 %v4282
        %v4315 = vunpack.c.l.b16 %v4283
        %v4316 = vunpack.c.l.b16 %v4284
        %v4317 = vunpack.c.l.b16 %v4285
        %v4318 = vunpack.c.l.b16 %v4286
        %v4319 = vunpack.c.l.b16 %v4287
        %v4320 = vunpack.c.l.b16 %v4288
        %v4321 = vunpack.c.l.b16 %v4289
        %v4322 = vunpack.c.l.b16 %v4290
        %v4323 = vpack.c.b16 %v4308, %v4307
        %v4324 = vpack.c.b16 %v4310, %v4309
        %v4325 = vpack.c.b16 %v4312, %v4311
        %v4326 = vpack.c.b16 %v4314, %v4313
        %v4327 = vpack.c.b16 %v4316, %v4315
        %v4328 = vpack.c.b16 %v4318, %v4317
        %v4329 = vpack.c.b16 %v4320, %v4319
        %v4330 = vpack.c.b16 %v4322, %v4321
        %4339 = vmatpush.bf16.msra.mxu0 %v4330
        %4340 = vmatpush.bf16.msra.mxu0 %v4329
        %4341 = vmatpush.bf16.msra.mxu0 %v4328
        %4342 = vmatpush.bf16.msra.mxu0 %v4327
        %4343 = vmatpush.bf16.msra.mxu0 %v4326
        %4344 = vmatpush.bf16.msra.mxu0 %v4325
        %4345 = vmatpush.bf16.msra.mxu0 %v4324
        %4346 = vmatpush.bf16.msra.mxu0 %v4323
        %4347 = vmatmul.bf16.gmra.mxu0 %v4273
        %v4348 = vpop.f32.mrf.mxu0
        %v4349 = vadd.f32 0.0, %v4348
        %v4350 = vpop.f32.mrf.mxu0
        %4351 = vdwg.mxu0
        %v4352 = vadd.f32 %v4272, %v4349
        %v4353 = vpack.c.bf16 %v3787, %v3787
        %s4354 = scalar_lea.vmem %s5, 448
        %v4355 = vld [vmem:[%s4354] sm:$0xf]
        %v4356 = vld [vmem:[%s4354 + $0x4] sm:$0xf]
        %v4357 = vld [vmem:[%s4354 + $0x8] sm:$0xf]
        %v4358 = vld [vmem:[%s4354 + $0xc] sm:$0xf]
        %v4359 = vld [vmem:[%s4354 + $0x10] sm:$0xf]
        %v4360 = vld [vmem:[%s4354 + $0x14] sm:$0xf]
        %v4361 = vld [vmem:[%s4354 + $0x18] sm:$0xf]
        %v4362 = vld [vmem:[%s4354 + $0x1c] sm:$0xf]
        %v4363 = vld [vmem:[%s4354 + $0x20] sm:$0xf]
        %v4364 = vld [vmem:[%s4354 + $0x24] sm:$0xf]
        %v4365 = vld [vmem:[%s4354 + $0x28] sm:$0xf]
        %v4366 = vld [vmem:[%s4354 + $0x2c] sm:$0xf]
        %v4367 = vld [vmem:[%s4354 + $0x30] sm:$0xf]
        %v4368 = vld [vmem:[%s4354 + $0x34] sm:$0xf]
        %v4369 = vld [vmem:[%s4354 + $0x38] sm:$0xf]
        %v4370 = vld [vmem:[%s4354 + $0x3c] sm:$0xf]
        %v4387 = vunpack.c.l.b16 %v4355
        %v4388 = vunpack.c.l.b16 %v4356
        %v4389 = vunpack.c.l.b16 %v4357
        %v4390 = vunpack.c.l.b16 %v4358
        %v4391 = vunpack.c.l.b16 %v4359
        %v4392 = vunpack.c.l.b16 %v4360
        %v4393 = vunpack.c.l.b16 %v4361
        %v4394 = vunpack.c.l.b16 %v4362
        %v4395 = vunpack.c.l.b16 %v4363
        %v4396 = vunpack.c.l.b16 %v4364
        %v4397 = vunpack.c.l.b16 %v4365
        %v4398 = vunpack.c.l.b16 %v4366
        %v4399 = vunpack.c.l.b16 %v4367
        %v4400 = vunpack.c.l.b16 %v4368
        %v4401 = vunpack.c.l.b16 %v4369
        %v4402 = vunpack.c.l.b16 %v4370
        %v4403 = vpack.c.b16 %v4388, %v4387
        %v4404 = vpack.c.b16 %v4390, %v4389
        %v4405 = vpack.c.b16 %v4392, %v4391
        %v4406 = vpack.c.b16 %v4394, %v4393
        %v4407 = vpack.c.b16 %v4396, %v4395
        %v4408 = vpack.c.b16 %v4398, %v4397
        %v4409 = vpack.c.b16 %v4400, %v4399
        %v4410 = vpack.c.b16 %v4402, %v4401
        %4419 = vmatpush.bf16.msra.mxu0 %v4410
        %4420 = vmatpush.bf16.msra.mxu0 %v4409
        %4421 = vmatpush.bf16.msra.mxu0 %v4408
        %4422 = vmatpush.bf16.msra.mxu0 %v4407
        %4423 = vmatpush.bf16.msra.mxu0 %v4406
        %4424 = vmatpush.bf16.msra.mxu0 %v4405
        %4425 = vmatpush.bf16.msra.mxu0 %v4404
        %4426 = vmatpush.bf16.msra.mxu0 %v4403
        %4427 = vmatmul.bf16.gmra.mxu0 %v4353
        %v4428 = vpop.f32.mrf.mxu0
        %v4429 = vadd.f32 0.0, %v4428
        %v4430 = vpop.f32.mrf.mxu0
        %4431 = vdwg.mxu0
        %v4432 = vadd.f32 %v4352, %v4429
        %v4433 = vpack.c.bf16 %v3788, %v3788
        %s4434 = scalar_lea.vmem %s5, 512
        %v4435 = vld [vmem:[%s4434] sm:$0xf]
        %v4436 = vld [vmem:[%s4434 + $0x4] sm:$0xf]
        %v4437 = vld [vmem:[%s4434 + $0x8] sm:$0xf]
        %v4438 = vld [vmem:[%s4434 + $0xc] sm:$0xf]
        %v4439 = vld [vmem:[%s4434 + $0x10] sm:$0xf]
        %v4440 = vld [vmem:[%s4434 + $0x14] sm:$0xf]
        %v4441 = vld [vmem:[%s4434 + $0x18] sm:$0xf]
        %v4442 = vld [vmem:[%s4434 + $0x1c] sm:$0xf]
        %v4443 = vld [vmem:[%s4434 + $0x20] sm:$0xf]
        %v4444 = vld [vmem:[%s4434 + $0x24] sm:$0xf]
        %v4445 = vld [vmem:[%s4434 + $0x28] sm:$0xf]
        %v4446 = vld [vmem:[%s4434 + $0x2c] sm:$0xf]
        %v4447 = vld [vmem:[%s4434 + $0x30] sm:$0xf]
        %v4448 = vld [vmem:[%s4434 + $0x34] sm:$0xf]
        %v4449 = vld [vmem:[%s4434 + $0x38] sm:$0xf]
        %v4450 = vld [vmem:[%s4434 + $0x3c] sm:$0xf]
        %v4467 = vunpack.c.l.b16 %v4435
        %v4468 = vunpack.c.l.b16 %v4436
        %v4469 = vunpack.c.l.b16 %v4437
        %v4470 = vunpack.c.l.b16 %v4438
        %v4471 = vunpack.c.l.b16 %v4439
        %v4472 = vunpack.c.l.b16 %v4440
        %v4473 = vunpack.c.l.b16 %v4441
        %v4474 = vunpack.c.l.b16 %v4442
        %v4475 = vunpack.c.l.b16 %v4443
        %v4476 = vunpack.c.l.b16 %v4444
        %v4477 = vunpack.c.l.b16 %v4445
        %v4478 = vunpack.c.l.b16 %v4446
        %v4479 = vunpack.c.l.b16 %v4447
        %v4480 = vunpack.c.l.b16 %v4448
        %v4481 = vunpack.c.l.b16 %v4449
        %v4482 = vunpack.c.l.b16 %v4450
        %v4483 = vpack.c.b16 %v4468, %v4467
        %v4484 = vpack.c.b16 %v4470, %v4469
        %v4485 = vpack.c.b16 %v4472, %v4471
        %v4486 = vpack.c.b16 %v4474, %v4473
        %v4487 = vpack.c.b16 %v4476, %v4475
        %v4488 = vpack.c.b16 %v4478, %v4477
        %v4489 = vpack.c.b16 %v4480, %v4479
        %v4490 = vpack.c.b16 %v4482, %v4481
        %4499 = vmatpush.bf16.msra.mxu0 %v4490
        %4500 = vmatpush.bf16.msra.mxu0 %v4489
        %4501 = vmatpush.bf16.msra.mxu0 %v4488
        %4502 = vmatpush.bf16.msra.mxu0 %v4487
        %4503 = vmatpush.bf16.msra.mxu0 %v4486
        %4504 = vmatpush.bf16.msra.mxu0 %v4485
        %4505 = vmatpush.bf16.msra.mxu0 %v4484
        %4506 = vmatpush.bf16.msra.mxu0 %v4483
        %4507 = vmatmul.bf16.gmra.mxu0 %v4433
        %v4508 = vpop.f32.mrf.mxu0
        %v4509 = vadd.f32 0.0, %v4508
        %v4510 = vpop.f32.mrf.mxu0
        %4511 = vdwg.mxu0
        %v4512 = vadd.f32 %v4432, %v4509
        %v4513 = vpack.c.bf16 %v3789, %v3789
        %s4514 = scalar_lea.vmem %s5, 576
        %v4515 = vld [vmem:[%s4514] sm:$0xf]
        %v4516 = vld [vmem:[%s4514 + $0x4] sm:$0xf]
        %v4517 = vld [vmem:[%s4514 + $0x8] sm:$0xf]
        %v4518 = vld [vmem:[%s4514 + $0xc] sm:$0xf]
        %v4519 = vld [vmem:[%s4514 + $0x10] sm:$0xf]
        %v4520 = vld [vmem:[%s4514 + $0x14] sm:$0xf]
        %v4521 = vld [vmem:[%s4514 + $0x18] sm:$0xf]
        %v4522 = vld [vmem:[%s4514 + $0x1c] sm:$0xf]
        %v4523 = vld [vmem:[%s4514 + $0x20] sm:$0xf]
        %v4524 = vld [vmem:[%s4514 + $0x24] sm:$0xf]
        %v4525 = vld [vmem:[%s4514 + $0x28] sm:$0xf]
        %v4526 = vld [vmem:[%s4514 + $0x2c] sm:$0xf]
        %v4527 = vld [vmem:[%s4514 + $0x30] sm:$0xf]
        %v4528 = vld [vmem:[%s4514 + $0x34] sm:$0xf]
        %v4529 = vld [vmem:[%s4514 + $0x38] sm:$0xf]
        %v4530 = vld [vmem:[%s4514 + $0x3c] sm:$0xf]
        %v4547 = vunpack.c.l.b16 %v4515
        %v4548 = vunpack.c.l.b16 %v4516
        %v4549 = vunpack.c.l.b16 %v4517
        %v4550 = vunpack.c.l.b16 %v4518
        %v4551 = vunpack.c.l.b16 %v4519
        %v4552 = vunpack.c.l.b16 %v4520
        %v4553 = vunpack.c.l.b16 %v4521
        %v4554 = vunpack.c.l.b16 %v4522
        %v4555 = vunpack.c.l.b16 %v4523
        %v4556 = vunpack.c.l.b16 %v4524
        %v4557 = vunpack.c.l.b16 %v4525
        %v4558 = vunpack.c.l.b16 %v4526
        %v4559 = vunpack.c.l.b16 %v4527
        %v4560 = vunpack.c.l.b16 %v4528
        %v4561 = vunpack.c.l.b16 %v4529
        %v4562 = vunpack.c.l.b16 %v4530
        %v4563 = vpack.c.b16 %v4548, %v4547
        %v4564 = vpack.c.b16 %v4550, %v4549
        %v4565 = vpack.c.b16 %v4552, %v4551
        %v4566 = vpack.c.b16 %v4554, %v4553
        %v4567 = vpack.c.b16 %v4556, %v4555
        %v4568 = vpack.c.b16 %v4558, %v4557
        %v4569 = vpack.c.b16 %v4560, %v4559
        %v4570 = vpack.c.b16 %v4562, %v4561
        %4579 = vmatpush.bf16.msra.mxu0 %v4570
        %4580 = vmatpush.bf16.msra.mxu0 %v4569
        %4581 = vmatpush.bf16.msra.mxu0 %v4568
        %4582 = vmatpush.bf16.msra.mxu0 %v4567
        %4583 = vmatpush.bf16.msra.mxu0 %v4566
        %4584 = vmatpush.bf16.msra.mxu0 %v4565
        %4585 = vmatpush.bf16.msra.mxu0 %v4564
        %4586 = vmatpush.bf16.msra.mxu0 %v4563
        %4587 = vmatmul.bf16.gmra.mxu0 %v4513
        %v4588 = vpop.f32.mrf.mxu0
        %v4589 = vadd.f32 0.0, %v4588
        %v4590 = vpop.f32.mrf.mxu0
        %4591 = vdwg.mxu0
        %v4592 = vadd.f32 %v4512, %v4589
        %v4593 = vpack.c.bf16 %v3790, %v3790
        %s4594 = scalar_lea.vmem %s5, 640
        %v4595 = vld [vmem:[%s4594] sm:$0xf]
        %v4596 = vld [vmem:[%s4594 + $0x4] sm:$0xf]
        %v4597 = vld [vmem:[%s4594 + $0x8] sm:$0xf]
        %v4598 = vld [vmem:[%s4594 + $0xc] sm:$0xf]
        %v4599 = vld [vmem:[%s4594 + $0x10] sm:$0xf]
        %v4600 = vld [vmem:[%s4594 + $0x14] sm:$0xf]
        %v4601 = vld [vmem:[%s4594 + $0x18] sm:$0xf]
        %v4602 = vld [vmem:[%s4594 + $0x1c] sm:$0xf]
        %v4603 = vld [vmem:[%s4594 + $0x20] sm:$0xf]
        %v4604 = vld [vmem:[%s4594 + $0x24] sm:$0xf]
        %v4605 = vld [vmem:[%s4594 + $0x28] sm:$0xf]
        %v4606 = vld [vmem:[%s4594 + $0x2c] sm:$0xf]
        %v4607 = vld [vmem:[%s4594 + $0x30] sm:$0xf]
        %v4608 = vld [vmem:[%s4594 + $0x34] sm:$0xf]
        %v4609 = vld [vmem:[%s4594 + $0x38] sm:$0xf]
        %v4610 = vld [vmem:[%s4594 + $0x3c] sm:$0xf]
        %v4627 = vunpack.c.l.b16 %v4595
        %v4628 = vunpack.c.l.b16 %v4596
        %v4629 = vunpack.c.l.b16 %v4597
        %v4630 = vunpack.c.l.b16 %v4598
        %v4631 = vunpack.c.l.b16 %v4599
        %v4632 = vunpack.c.l.b16 %v4600
        %v4633 = vunpack.c.l.b16 %v4601
        %v4634 = vunpack.c.l.b16 %v4602
        %v4635 = vunpack.c.l.b16 %v4603
        %v4636 = vunpack.c.l.b16 %v4604
        %v4637 = vunpack.c.l.b16 %v4605
        %v4638 = vunpack.c.l.b16 %v4606
        %v4639 = vunpack.c.l.b16 %v4607
        %v4640 = vunpack.c.l.b16 %v4608
        %v4641 = vunpack.c.l.b16 %v4609
        %v4642 = vunpack.c.l.b16 %v4610
        %v4643 = vpack.c.b16 %v4628, %v4627
        %v4644 = vpack.c.b16 %v4630, %v4629
        %v4645 = vpack.c.b16 %v4632, %v4631
        %v4646 = vpack.c.b16 %v4634, %v4633
        %v4647 = vpack.c.b16 %v4636, %v4635
        %v4648 = vpack.c.b16 %v4638, %v4637
        %v4649 = vpack.c.b16 %v4640, %v4639
        %v4650 = vpack.c.b16 %v4642, %v4641
        %4659 = vmatpush.bf16.msra.mxu0 %v4650
        %4660 = vmatpush.bf16.msra.mxu0 %v4649
        %4661 = vmatpush.bf16.msra.mxu0 %v4648
        %4662 = vmatpush.bf16.msra.mxu0 %v4647
        %4663 = vmatpush.bf16.msra.mxu0 %v4646
        %4664 = vmatpush.bf16.msra.mxu0 %v4645
        %4665 = vmatpush.bf16.msra.mxu0 %v4644
        %4666 = vmatpush.bf16.msra.mxu0 %v4643
        %4667 = vmatmul.bf16.gmra.mxu0 %v4593
        %v4668 = vpop.f32.mrf.mxu0
        %v4669 = vadd.f32 0.0, %v4668
        %v4670 = vpop.f32.mrf.mxu0
        %4671 = vdwg.mxu0
        %v4672 = vadd.f32 %v4592, %v4669
        %v4673 = vpack.c.bf16 %v3791, %v3791
        %s4674 = scalar_lea.vmem %s5, 704
        %v4675 = vld [vmem:[%s4674] sm:$0xf]
        %v4676 = vld [vmem:[%s4674 + $0x4] sm:$0xf]
        %v4677 = vld [vmem:[%s4674 + $0x8] sm:$0xf]
        %v4678 = vld [vmem:[%s4674 + $0xc] sm:$0xf]
        %v4679 = vld [vmem:[%s4674 + $0x10] sm:$0xf]
        %v4680 = vld [vmem:[%s4674 + $0x14] sm:$0xf]
        %v4681 = vld [vmem:[%s4674 + $0x18] sm:$0xf]
        %v4682 = vld [vmem:[%s4674 + $0x1c] sm:$0xf]
        %v4683 = vld [vmem:[%s4674 + $0x20] sm:$0xf]
        %v4684 = vld [vmem:[%s4674 + $0x24] sm:$0xf]
        %v4685 = vld [vmem:[%s4674 + $0x28] sm:$0xf]
        %v4686 = vld [vmem:[%s4674 + $0x2c] sm:$0xf]
        %v4687 = vld [vmem:[%s4674 + $0x30] sm:$0xf]
        %v4688 = vld [vmem:[%s4674 + $0x34] sm:$0xf]
        %v4689 = vld [vmem:[%s4674 + $0x38] sm:$0xf]
        %v4690 = vld [vmem:[%s4674 + $0x3c] sm:$0xf]
        %v4707 = vunpack.c.l.b16 %v4675
        %v4708 = vunpack.c.l.b16 %v4676
        %v4709 = vunpack.c.l.b16 %v4677
        %v4710 = vunpack.c.l.b16 %v4678
        %v4711 = vunpack.c.l.b16 %v4679
        %v4712 = vunpack.c.l.b16 %v4680
        %v4713 = vunpack.c.l.b16 %v4681
        %v4714 = vunpack.c.l.b16 %v4682
        %v4715 = vunpack.c.l.b16 %v4683
        %v4716 = vunpack.c.l.b16 %v4684
        %v4717 = vunpack.c.l.b16 %v4685
        %v4718 = vunpack.c.l.b16 %v4686
        %v4719 = vunpack.c.l.b16 %v4687
        %v4720 = vunpack.c.l.b16 %v4688
        %v4721 = vunpack.c.l.b16 %v4689
        %v4722 = vunpack.c.l.b16 %v4690
        %v4723 = vpack.c.b16 %v4708, %v4707
        %v4724 = vpack.c.b16 %v4710, %v4709
        %v4725 = vpack.c.b16 %v4712, %v4711
        %v4726 = vpack.c.b16 %v4714, %v4713
        %v4727 = vpack.c.b16 %v4716, %v4715
        %v4728 = vpack.c.b16 %v4718, %v4717
        %v4729 = vpack.c.b16 %v4720, %v4719
        %v4730 = vpack.c.b16 %v4722, %v4721
        %4739 = vmatpush.bf16.msra.mxu0 %v4730
        %4740 = vmatpush.bf16.msra.mxu0 %v4729
        %4741 = vmatpush.bf16.msra.mxu0 %v4728
        %4742 = vmatpush.bf16.msra.mxu0 %v4727
        %4743 = vmatpush.bf16.msra.mxu0 %v4726
        %4744 = vmatpush.bf16.msra.mxu0 %v4725
        %4745 = vmatpush.bf16.msra.mxu0 %v4724
        %4746 = vmatpush.bf16.msra.mxu0 %v4723
        %4747 = vmatmul.bf16.gmra.mxu0 %v4673
        %v4748 = vpop.f32.mrf.mxu0
        %v4749 = vadd.f32 0.0, %v4748
        %v4750 = vpop.f32.mrf.mxu0
        %4751 = vdwg.mxu0
        %v4752 = vadd.f32 %v4672, %v4749
        %v4753 = vpack.c.bf16 %v3792, %v3792
        %s4754 = scalar_lea.vmem %s5, 768
        %v4755 = vld [vmem:[%s4754] sm:$0xf]
        %v4756 = vld [vmem:[%s4754 + $0x4] sm:$0xf]
        %v4757 = vld [vmem:[%s4754 + $0x8] sm:$0xf]
        %v4758 = vld [vmem:[%s4754 + $0xc] sm:$0xf]
        %v4759 = vld [vmem:[%s4754 + $0x10] sm:$0xf]
        %v4760 = vld [vmem:[%s4754 + $0x14] sm:$0xf]
        %v4761 = vld [vmem:[%s4754 + $0x18] sm:$0xf]
        %v4762 = vld [vmem:[%s4754 + $0x1c] sm:$0xf]
        %v4763 = vld [vmem:[%s4754 + $0x20] sm:$0xf]
        %v4764 = vld [vmem:[%s4754 + $0x24] sm:$0xf]
        %v4765 = vld [vmem:[%s4754 + $0x28] sm:$0xf]
        %v4766 = vld [vmem:[%s4754 + $0x2c] sm:$0xf]
        %v4767 = vld [vmem:[%s4754 + $0x30] sm:$0xf]
        %v4768 = vld [vmem:[%s4754 + $0x34] sm:$0xf]
        %v4769 = vld [vmem:[%s4754 + $0x38] sm:$0xf]
        %v4770 = vld [vmem:[%s4754 + $0x3c] sm:$0xf]
        %v4787 = vunpack.c.l.b16 %v4755
        %v4788 = vunpack.c.l.b16 %v4756
        %v4789 = vunpack.c.l.b16 %v4757
        %v4790 = vunpack.c.l.b16 %v4758
        %v4791 = vunpack.c.l.b16 %v4759
        %v4792 = vunpack.c.l.b16 %v4760
        %v4793 = vunpack.c.l.b16 %v4761
        %v4794 = vunpack.c.l.b16 %v4762
        %v4795 = vunpack.c.l.b16 %v4763
        %v4796 = vunpack.c.l.b16 %v4764
        %v4797 = vunpack.c.l.b16 %v4765
        %v4798 = vunpack.c.l.b16 %v4766
        %v4799 = vunpack.c.l.b16 %v4767
        %v4800 = vunpack.c.l.b16 %v4768
        %v4801 = vunpack.c.l.b16 %v4769
        %v4802 = vunpack.c.l.b16 %v4770
        %v4803 = vpack.c.b16 %v4788, %v4787
        %v4804 = vpack.c.b16 %v4790, %v4789
        %v4805 = vpack.c.b16 %v4792, %v4791
        %v4806 = vpack.c.b16 %v4794, %v4793
        %v4807 = vpack.c.b16 %v4796, %v4795
        %v4808 = vpack.c.b16 %v4798, %v4797
        %v4809 = vpack.c.b16 %v4800, %v4799
        %v4810 = vpack.c.b16 %v4802, %v4801
        %4819 = vmatpush.bf16.msra.mxu0 %v4810
        %4820 = vmatpush.bf16.msra.mxu0 %v4809
        %4821 = vmatpush.bf16.msra.mxu0 %v4808
        %4822 = vmatpush.bf16.msra.mxu0 %v4807
        %4823 = vmatpush.bf16.msra.mxu0 %v4806
        %4824 = vmatpush.bf16.msra.mxu0 %v4805
        %4825 = vmatpush.bf16.msra.mxu0 %v4804
        %4826 = vmatpush.bf16.msra.mxu0 %v4803
        %4827 = vmatmul.bf16.gmra.mxu0 %v4753
        %v4828 = vpop.f32.mrf.mxu0
        %v4829 = vadd.f32 0.0, %v4828
        %v4830 = vpop.f32.mrf.mxu0
        %4831 = vdwg.mxu0
        %v4832 = vadd.f32 %v4752, %v4829
        %v4833 = vpack.c.bf16 %v3793, %v3793
        %s4834 = scalar_lea.vmem %s5, 832
        %v4835 = vld [vmem:[%s4834] sm:$0xf]
        %v4836 = vld [vmem:[%s4834 + $0x4] sm:$0xf]
        %v4837 = vld [vmem:[%s4834 + $0x8] sm:$0xf]
        %v4838 = vld [vmem:[%s4834 + $0xc] sm:$0xf]
        %v4839 = vld [vmem:[%s4834 + $0x10] sm:$0xf]
        %v4840 = vld [vmem:[%s4834 + $0x14] sm:$0xf]
        %v4841 = vld [vmem:[%s4834 + $0x18] sm:$0xf]
        %v4842 = vld [vmem:[%s4834 + $0x1c] sm:$0xf]
        %v4843 = vld [vmem:[%s4834 + $0x20] sm:$0xf]
        %v4844 = vld [vmem:[%s4834 + $0x24] sm:$0xf]
        %v4845 = vld [vmem:[%s4834 + $0x28] sm:$0xf]
        %v4846 = vld [vmem:[%s4834 + $0x2c] sm:$0xf]
        %v4847 = vld [vmem:[%s4834 + $0x30] sm:$0xf]
        %v4848 = vld [vmem:[%s4834 + $0x34] sm:$0xf]
        %v4849 = vld [vmem:[%s4834 + $0x38] sm:$0xf]
        %v4850 = vld [vmem:[%s4834 + $0x3c] sm:$0xf]
        %v4867 = vunpack.c.l.b16 %v4835
        %v4868 = vunpack.c.l.b16 %v4836
        %v4869 = vunpack.c.l.b16 %v4837
        %v4870 = vunpack.c.l.b16 %v4838
        %v4871 = vunpack.c.l.b16 %v4839
        %v4872 = vunpack.c.l.b16 %v4840
        %v4873 = vunpack.c.l.b16 %v4841
        %v4874 = vunpack.c.l.b16 %v4842
        %v4875 = vunpack.c.l.b16 %v4843
        %v4876 = vunpack.c.l.b16 %v4844
        %v4877 = vunpack.c.l.b16 %v4845
        %v4878 = vunpack.c.l.b16 %v4846
        %v4879 = vunpack.c.l.b16 %v4847
        %v4880 = vunpack.c.l.b16 %v4848
        %v4881 = vunpack.c.l.b16 %v4849
        %v4882 = vunpack.c.l.b16 %v4850
        %v4883 = vpack.c.b16 %v4868, %v4867
        %v4884 = vpack.c.b16 %v4870, %v4869
        %v4885 = vpack.c.b16 %v4872, %v4871
        %v4886 = vpack.c.b16 %v4874, %v4873
        %v4887 = vpack.c.b16 %v4876, %v4875
        %v4888 = vpack.c.b16 %v4878, %v4877
        %v4889 = vpack.c.b16 %v4880, %v4879
        %v4890 = vpack.c.b16 %v4882, %v4881
        %4899 = vmatpush.bf16.msra.mxu0 %v4890
        %4900 = vmatpush.bf16.msra.mxu0 %v4889
        %4901 = vmatpush.bf16.msra.mxu0 %v4888
        %4902 = vmatpush.bf16.msra.mxu0 %v4887
        %4903 = vmatpush.bf16.msra.mxu0 %v4886
        %4904 = vmatpush.bf16.msra.mxu0 %v4885
        %4905 = vmatpush.bf16.msra.mxu0 %v4884
        %4906 = vmatpush.bf16.msra.mxu0 %v4883
        %4907 = vmatmul.bf16.gmra.mxu0 %v4833
        %v4908 = vpop.f32.mrf.mxu0
        %v4909 = vadd.f32 0.0, %v4908
        %v4910 = vpop.f32.mrf.mxu0
        %4911 = vdwg.mxu0
        %v4912 = vadd.f32 %v4832, %v4909
        %v4913 = vpack.c.bf16 %v3794, %v3794
        %s4914 = scalar_lea.vmem %s5, 896
        %v4915 = vld [vmem:[%s4914] sm:$0xf]
        %v4916 = vld [vmem:[%s4914 + $0x4] sm:$0xf]
        %v4917 = vld [vmem:[%s4914 + $0x8] sm:$0xf]
        %v4918 = vld [vmem:[%s4914 + $0xc] sm:$0xf]
        %v4919 = vld [vmem:[%s4914 + $0x10] sm:$0xf]
        %v4920 = vld [vmem:[%s4914 + $0x14] sm:$0xf]
        %v4921 = vld [vmem:[%s4914 + $0x18] sm:$0xf]
        %v4922 = vld [vmem:[%s4914 + $0x1c] sm:$0xf]
        %v4923 = vld [vmem:[%s4914 + $0x20] sm:$0xf]
        %v4924 = vld [vmem:[%s4914 + $0x24] sm:$0xf]
        %v4925 = vld [vmem:[%s4914 + $0x28] sm:$0xf]
        %v4926 = vld [vmem:[%s4914 + $0x2c] sm:$0xf]
        %v4927 = vld [vmem:[%s4914 + $0x30] sm:$0xf]
        %v4928 = vld [vmem:[%s4914 + $0x34] sm:$0xf]
        %v4929 = vld [vmem:[%s4914 + $0x38] sm:$0xf]
        %v4930 = vld [vmem:[%s4914 + $0x3c] sm:$0xf]
        %v4947 = vunpack.c.l.b16 %v4915
        %v4948 = vunpack.c.l.b16 %v4916
        %v4949 = vunpack.c.l.b16 %v4917
        %v4950 = vunpack.c.l.b16 %v4918
        %v4951 = vunpack.c.l.b16 %v4919
        %v4952 = vunpack.c.l.b16 %v4920
        %v4953 = vunpack.c.l.b16 %v4921
        %v4954 = vunpack.c.l.b16 %v4922
        %v4955 = vunpack.c.l.b16 %v4923
        %v4956 = vunpack.c.l.b16 %v4924
        %v4957 = vunpack.c.l.b16 %v4925
        %v4958 = vunpack.c.l.b16 %v4926
        %v4959 = vunpack.c.l.b16 %v4927
        %v4960 = vunpack.c.l.b16 %v4928
        %v4961 = vunpack.c.l.b16 %v4929
        %v4962 = vunpack.c.l.b16 %v4930
        %v4963 = vpack.c.b16 %v4948, %v4947
        %v4964 = vpack.c.b16 %v4950, %v4949
        %v4965 = vpack.c.b16 %v4952, %v4951
        %v4966 = vpack.c.b16 %v4954, %v4953
        %v4967 = vpack.c.b16 %v4956, %v4955
        %v4968 = vpack.c.b16 %v4958, %v4957
        %v4969 = vpack.c.b16 %v4960, %v4959
        %v4970 = vpack.c.b16 %v4962, %v4961
        %4979 = vmatpush.bf16.msra.mxu0 %v4970
        %4980 = vmatpush.bf16.msra.mxu0 %v4969
        %4981 = vmatpush.bf16.msra.mxu0 %v4968
        %4982 = vmatpush.bf16.msra.mxu0 %v4967
        %4983 = vmatpush.bf16.msra.mxu0 %v4966
        %4984 = vmatpush.bf16.msra.mxu0 %v4965
        %4985 = vmatpush.bf16.msra.mxu0 %v4964
        %4986 = vmatpush.bf16.msra.mxu0 %v4963
        %4987 = vmatmul.bf16.gmra.mxu0 %v4913
        %v4988 = vpop.f32.mrf.mxu0
        %v4989 = vadd.f32 0.0, %v4988
        %v4990 = vpop.f32.mrf.mxu0
        %4991 = vdwg.mxu0
        %v4992 = vadd.f32 %v4912, %v4989
        %v4993 = vpack.c.bf16 %v3795, %v3795
        %s4994 = scalar_lea.vmem %s5, 960
        %v4995 = vld [vmem:[%s4994] sm:$0xf]
        %v4996 = vld [vmem:[%s4994 + $0x4] sm:$0xf]
        %v4997 = vld [vmem:[%s4994 + $0x8] sm:$0xf]
        %v4998 = vld [vmem:[%s4994 + $0xc] sm:$0xf]
        %v4999 = vld [vmem:[%s4994 + $0x10] sm:$0xf]
        %v5000 = vld [vmem:[%s4994 + $0x14] sm:$0xf]
        %v5001 = vld [vmem:[%s4994 + $0x18] sm:$0xf]
        %v5002 = vld [vmem:[%s4994 + $0x1c] sm:$0xf]
        %v5003 = vld [vmem:[%s4994 + $0x20] sm:$0xf]
        %v5004 = vld [vmem:[%s4994 + $0x24] sm:$0xf]
        %v5005 = vld [vmem:[%s4994 + $0x28] sm:$0xf]
        %v5006 = vld [vmem:[%s4994 + $0x2c] sm:$0xf]
        %v5007 = vld [vmem:[%s4994 + $0x30] sm:$0xf]
        %v5008 = vld [vmem:[%s4994 + $0x34] sm:$0xf]
        %v5009 = vld [vmem:[%s4994 + $0x38] sm:$0xf]
        %v5010 = vld [vmem:[%s4994 + $0x3c] sm:$0xf]
        %v5027 = vunpack.c.l.b16 %v4995
        %v5028 = vunpack.c.l.b16 %v4996
        %v5029 = vunpack.c.l.b16 %v4997
        %v5030 = vunpack.c.l.b16 %v4998
        %v5031 = vunpack.c.l.b16 %v4999
        %v5032 = vunpack.c.l.b16 %v5000
        %v5033 = vunpack.c.l.b16 %v5001
        %v5034 = vunpack.c.l.b16 %v5002
        %v5035 = vunpack.c.l.b16 %v5003
        %v5036 = vunpack.c.l.b16 %v5004
        %v5037 = vunpack.c.l.b16 %v5005
        %v5038 = vunpack.c.l.b16 %v5006
        %v5039 = vunpack.c.l.b16 %v5007
        %v5040 = vunpack.c.l.b16 %v5008
        %v5041 = vunpack.c.l.b16 %v5009
        %v5042 = vunpack.c.l.b16 %v5010
        %v5043 = vpack.c.b16 %v5028, %v5027
        %v5044 = vpack.c.b16 %v5030, %v5029
        %v5045 = vpack.c.b16 %v5032, %v5031
        %v5046 = vpack.c.b16 %v5034, %v5033
        %v5047 = vpack.c.b16 %v5036, %v5035
        %v5048 = vpack.c.b16 %v5038, %v5037
        %v5049 = vpack.c.b16 %v5040, %v5039
        %v5050 = vpack.c.b16 %v5042, %v5041
        %5059 = vmatpush.bf16.msra.mxu0 %v5050
        %5060 = vmatpush.bf16.msra.mxu0 %v5049
        %5061 = vmatpush.bf16.msra.mxu0 %v5048
        %5062 = vmatpush.bf16.msra.mxu0 %v5047
        %5063 = vmatpush.bf16.msra.mxu0 %v5046
        %5064 = vmatpush.bf16.msra.mxu0 %v5045
        %5065 = vmatpush.bf16.msra.mxu0 %v5044
        %5066 = vmatpush.bf16.msra.mxu0 %v5043
        %5067 = vmatmul.bf16.gmra.mxu0 %v4993
        %v5068 = vpop.f32.mrf.mxu0
        %v5069 = vadd.f32 0.0, %v5068
        %v5070 = vpop.f32.mrf.mxu0
        %5071 = vdwg.mxu0
        %v5072 = vadd.f32 %v4992, %v5069
        %v5073 = vld [vmem:[%s6] sm:$0x1]
        %v5074 = vadd.f32 %v5072, %v5073
        %v5075 = vmax.f32 %v5074, 0.0
        %v5076 = vpack.c.bf16 %v5075, %v5075
        %v5077 = vld [vmem:[%s7] sm:$0xf]
        %v5078 = vld [vmem:[%s7 + $0x4] sm:$0xf]
        %v5079 = vld [vmem:[%s7 + $0x8] sm:$0xf]
        %v5080 = vld [vmem:[%s7 + $0xc] sm:$0xf]
        %v5081 = vld [vmem:[%s7 + $0x10] sm:$0xf]
        %v5082 = vld [vmem:[%s7 + $0x14] sm:$0xf]
        %v5083 = vld [vmem:[%s7 + $0x18] sm:$0xf]
        %v5084 = vld [vmem:[%s7 + $0x1c] sm:$0xf]
        %v5085 = vld [vmem:[%s7 + $0x20] sm:$0xf]
        %v5086 = vld [vmem:[%s7 + $0x24] sm:$0xf]
        %v5087 = vld [vmem:[%s7 + $0x28] sm:$0xf]
        %v5088 = vld [vmem:[%s7 + $0x2c] sm:$0xf]
        %v5089 = vld [vmem:[%s7 + $0x30] sm:$0xf]
        %v5090 = vld [vmem:[%s7 + $0x34] sm:$0xf]
        %v5091 = vld [vmem:[%s7 + $0x38] sm:$0xf]
        %v5092 = vld [vmem:[%s7 + $0x3c] sm:$0xf]
        %v5093 = vld [vmem:[%s8] sm:$0x1]
        %v5110 = vunpack.c.l.b16 %v5077
        %v5111 = vunpack.c.l.b16 %v5078
        %v5112 = vunpack.c.l.b16 %v5079
        %v5113 = vunpack.c.l.b16 %v5080
        %v5114 = vunpack.c.l.b16 %v5081
        %v5115 = vunpack.c.l.b16 %v5082
        %v5116 = vunpack.c.l.b16 %v5083
        %v5117 = vunpack.c.l.b16 %v5084
        %v5118 = vunpack.c.l.b16 %v5085
        %v5119 = vunpack.c.l.b16 %v5086
        %v5120 = vunpack.c.l.b16 %v5087
        %v5121 = vunpack.c.l.b16 %v5088
        %v5122 = vunpack.c.l.b16 %v5089
        %v5123 = vunpack.c.l.b16 %v5090
        %v5124 = vunpack.c.l.b16 %v5091
        %v5125 = vunpack.c.l.b16 %v5092
        %v5126 = vpack.c.b16 %v5111, %v5110
        %v5127 = vpack.c.b16 %v5113, %v5112
        %v5128 = vpack.c.b16 %v5115, %v5114
        %v5129 = vpack.c.b16 %v5117, %v5116
        %v5130 = vpack.c.b16 %v5119, %v5118
        %v5131 = vpack.c.b16 %v5121, %v5120
        %v5132 = vpack.c.b16 %v5123, %v5122
        %v5133 = vpack.c.b16 %v5125, %v5124
        %5142 = vmatpush.bf16.msra.mxu0 %v5133
        %5143 = vmatpush.bf16.msra.mxu0 %v5132
        %5144 = vmatpush.bf16.msra.mxu0 %v5131
        %5145 = vmatpush.bf16.msra.mxu0 %v5130
        %5146 = vmatpush.bf16.msra.mxu0 %v5129
        %5147 = vmatpush.bf16.msra.mxu0 %v5128
        %5148 = vmatpush.bf16.msra.mxu0 %v5127
        %5149 = vmatpush.bf16.msra.mxu0 %v5126
        %5150 = vmatmul.bf16.gmra.mxu0 %v5076
        %v5151 = vpop.f32.mrf.mxu0
        %v5152 = vadd.f32 %v5093, %v5151
        %v5153 = vpop.f32.mrf.mxu0
        %5154 = vdwg.mxu0
        %v5155 = vmax.f32 %v5152, 0.0
        %v5156 = vpack.c.bf16 %v5155, %v5155
        %v5157 = vld [vmem:[%s9] sm:$0xf]
        %v5158 = vld [vmem:[%s9 + $0x4] sm:$0xf]
        %v5159 = vld [vmem:[%s9 + $0x8] sm:$0xf]
        %v5160 = vld [vmem:[%s9 + $0xc] sm:$0xf]
        %v5161 = vld [vmem:[%s9 + $0x10] sm:$0xf]
        %v5162 = vld [vmem:[%s9 + $0x14] sm:$0xf]
        %v5163 = vld [vmem:[%s9 + $0x18] sm:$0xf]
        %v5164 = vld [vmem:[%s9 + $0x1c] sm:$0xf]
        %v5165 = vld [vmem:[%s9 + $0x20] sm:$0xf]
        %v5166 = vld [vmem:[%s9 + $0x24] sm:$0xf]
        %v5167 = vld [vmem:[%s9 + $0x28] sm:$0xf]
        %v5168 = vld [vmem:[%s9 + $0x2c] sm:$0xf]
        %v5169 = vld [vmem:[%s9 + $0x30] sm:$0xf]
        %v5170 = vld [vmem:[%s9 + $0x34] sm:$0xf]
        %v5171 = vld [vmem:[%s9 + $0x38] sm:$0xf]
        %v5172 = vld [vmem:[%s9 + $0x3c] sm:$0xf]
        %v5173 = vld [vmem:[%s10] sm:$0x1]
        %v5190 = vunpack.c.l.b16 %v5157
        %v5191 = vunpack.c.l.b16 %v5158
        %v5192 = vunpack.c.l.b16 %v5159
        %v5193 = vunpack.c.l.b16 %v5160
        %v5194 = vunpack.c.l.b16 %v5161
        %v5195 = vunpack.c.l.b16 %v5162
        %v5196 = vunpack.c.l.b16 %v5163
        %v5197 = vunpack.c.l.b16 %v5164
        %v5198 = vunpack.c.l.b16 %v5165
        %v5199 = vunpack.c.l.b16 %v5166
        %v5200 = vunpack.c.l.b16 %v5167
        %v5201 = vunpack.c.l.b16 %v5168
        %v5202 = vunpack.c.l.b16 %v5169
        %v5203 = vunpack.c.l.b16 %v5170
        %v5204 = vunpack.c.l.b16 %v5171
        %v5205 = vunpack.c.l.b16 %v5172
        %v5206 = vpack.c.b16 %v5191, %v5190
        %v5207 = vpack.c.b16 %v5193, %v5192
        %v5208 = vpack.c.b16 %v5195, %v5194
        %v5209 = vpack.c.b16 %v5197, %v5196
        %v5210 = vpack.c.b16 %v5199, %v5198
        %v5211 = vpack.c.b16 %v5201, %v5200
        %v5212 = vpack.c.b16 %v5203, %v5202
        %v5213 = vpack.c.b16 %v5205, %v5204
        %5222 = vmatpush.bf16.msra.mxu0 %v5213
        %5223 = vmatpush.bf16.msra.mxu0 %v5212
        %5224 = vmatpush.bf16.msra.mxu0 %v5211
        %5225 = vmatpush.bf16.msra.mxu0 %v5210
        %5226 = vmatpush.bf16.msra.mxu0 %v5209
        %5227 = vmatpush.bf16.msra.mxu0 %v5208
        %5228 = vmatpush.bf16.msra.mxu0 %v5207
        %5229 = vmatpush.bf16.msra.mxu0 %v5206
        %5230 = vmatmul.bf16.gmra.mxu0 %v5156
        %v5231 = vpop.f32.mrf.mxu0
        %v5232 = vadd.f32 %v5173, %v5231
        %v5233 = vpop.f32.mrf.mxu0
        %5234 = vdwg.mxu0
        %5235 = vst [vmem:[%s378] sm:$0x1] %v5232
        %s5236 = sand.u32 %s269, 1
        %s5237 = scalar_lea.sflag [#allocation4], %s5236
        %s5238 = sand.u32 %s269, 1
        %s5239 = scalar_lea.vmem [#allocation3], %s5238
        // Predicated region
        $region65: #{mnist_net_forward.1} parent=63 // pred_check
          %p5240 = pneg %p279
        $region66: #{mnist_net_forward.1} parent=63 // pred_check_branch
          %5242 = sbr.rel (%p5240) target = $region68
        $region67: #{mnist_net_forward.1} parent=63 // pred_region
          %5244 = vsyncadd %s5237, 0
          %s5245 = scalar_lea.hbm %s11, %s25
          %s5247 = sshll.u32 %s5239, 4
          %s5248 = int_to_ptr.vmem [resolvable:$true] %s5247
          %s5249 = sshll.u32 %s5245, 4
          %s5250 = int_to_ptr.hbm [resolvable:$true] %s5249
          %5252 = dma.vmem_to_hbm [thread:$0]  %s5248, 16, %s5250, %s5237
        $region68: #{mnist_net_forward.1} parent=63 // pred_fallthru
          _
      $region64: #{mnist_net_forward.1} parent=5 // pred_fallthru
        _
      %p5253 = scmp.le.s32.totalorder 2, %s20
      // Predicated region
      $region69: #{mnist_net_forward.1} parent=5 // pred_check
        %p5254 = pneg %p5253
      $region70: #{mnist_net_forward.1} parent=5 // pred_check_branch
        %5256 = sbr.rel (%p5254) target = $region72
      $region71: #{mnist_net_forward.1} parent=5 // pred_region
        %s5257 = ssub.s32 %s20, 2
        // Predicated region
        $region73: #{mnist_net_forward.1} parent=71 // pred_check
          %p5258 = pneg %p285
        $region74: #{mnist_net_forward.1} parent=71 // pred_check_branch
          %5260 = sbr.rel (%p5258) target = $region76
        $region75: #{mnist_net_forward.1} parent=71 // pred_region
          %s5261 = sand.u32 %s270, 1
          %s5262 = scalar_lea.sflag [#allocation4], %s5261
          %s5263 = sand.u32 %s270, 1
          %s5264 = scalar_lea.vmem [#allocation3], %s5263
          %5266 = dma.done %s5262, 16
        $region76: #{mnist_net_forward.1} parent=71 // pred_fallthru
          _
      $region72: #{mnist_net_forward.1} parent=5 // pred_fallthru
        _
    $region6: #{mnist_net_forward.1} parent=1 // loop_footer
      %s24 = sadd.s32 1, %s20
    $region7: #{mnist_net_forward.1} parent=1 // loop_footer_branch
      %19 = sbr.rel target = $region3
    $region8: #{mnist_net_forward.1} parent=1 // loop_exit
      _
    %5267 = vsyncpa [#allocation4], 1
    %s5268 = scalar_lea.sflag [#allocation4], 1
    %5269 = vsyncpa %s5268, 1

</llo_original>
